<compile_context>
chip_gen: v7x
topology: tpu7x:2x2x1
jax: 0.10.0
libtpu: 0.0.40
codegen_flags: <defaults>
</compile_context>

<pallas_src>
import functools

import numpy as np
import jax
import jax.numpy as jnp
from jax.experimental import pallas as pl
from jax.experimental.pallas import tpu as pltpu  # noqa: F401

D_MODEL = 32
N_HEADS = 4
HEAD_DIM = D_MODEL // N_HEADS
D_FF = 64
LN_EPS = 1e-5
SLAB_W = D_FF  # width of both parameter slabs (max of D_MODEL, D_FF)

# ---------------------------------------------------------------------------
# parameter slab layouts (static, computed once at import time)
# ---------------------------------------------------------------------------
_W_ENTRIES = [
    # (name, in_dim, out_dim) -- row band of size in_dim, cols [0:out_dim)
    ("e_wq", D_MODEL, D_MODEL), ("e_wk", D_MODEL, D_MODEL),
    ("e_wv", D_MODEL, D_MODEL), ("e_wo", D_MODEL, D_MODEL),
    ("e_w1", D_MODEL, D_FF), ("e_w2", D_FF, D_MODEL),
    ("d_wq", D_MODEL, D_MODEL), ("d_wk", D_MODEL, D_MODEL),
    ("d_wv", D_MODEL, D_MODEL), ("d_wo", D_MODEL, D_MODEL),
    ("c_wq", D_MODEL, D_MODEL), ("c_wk", D_MODEL, D_MODEL),
    ("c_wv", D_MODEL, D_MODEL), ("c_wo", D_MODEL, D_MODEL),
    ("d_w1", D_MODEL, D_FF), ("d_w2", D_FF, D_MODEL),
    ("w_out", D_MODEL, D_MODEL),
]

_B_ENTRIES = [
    # (name, dim) -- one row per vector, cols [0:dim)
    ("e_bq", D_MODEL), ("e_bk", D_MODEL), ("e_bv", D_MODEL), ("e_bo", D_MODEL),
    ("e_ln1g", D_MODEL), ("e_ln1b", D_MODEL),
    ("e_b1", D_FF), ("e_b2", D_MODEL),
    ("e_ln2g", D_MODEL), ("e_ln2b", D_MODEL),
    ("d_bq", D_MODEL), ("d_bk", D_MODEL), ("d_bv", D_MODEL), ("d_bo", D_MODEL),
    ("d_ln1g", D_MODEL), ("d_ln1b", D_MODEL),
    ("c_bq", D_MODEL), ("c_bk", D_MODEL), ("c_bv", D_MODEL), ("c_bo", D_MODEL),
    ("d_ln2g", D_MODEL), ("d_ln2b", D_MODEL),
    ("d_b1", D_FF), ("d_b2", D_MODEL),
    ("d_ln3g", D_MODEL), ("d_ln3b", D_MODEL),
    ("b_out", D_MODEL),
    ("hmask0", D_MODEL), ("hmask1", D_MODEL),
    ("hmask2", D_MODEL), ("hmask3", D_MODEL),
]


def _build_layouts():
    w_off, r = {}, 0
    for name, din, dout in _W_ENTRIES:
        w_off[name] = (r, din, dout)
        r += din
    w_rows = ((r + 7) // 8) * 8
    b_off = {name: (i, dim) for i, (name, dim) in enumerate(_B_ENTRIES)}
    b_rows = ((len(_B_ENTRIES) + 7) // 8) * 8
    return w_off, w_rows, b_off, b_rows


W_OFF, W_ROWS, B_OFF, B_ROWS = _build_layouts()


# ---------------------------------------------------------------------------
# single fused kernel: encoder layer + decoder layer + output projection
# ---------------------------------------------------------------------------
def _model_kernel(src_ref, tgt_ref, w_ref, b_ref, masks_ref, out_ref):
    ns = src_ref.shape[0]          # src_len * batch
    nt = tgt_ref.shape[0]          # tgt_len * batch

    def W(name):                   # (in, out) weight band; sublane-aligned, lane 0
        r, din, dout = W_OFF[name]
        return w_ref[r:r + din, 0:dout]

    def V(name):                   # (1, dim) vector row
        r, dim = B_OFF[name]
        return b_ref[r:r + 1, 0:dim]

    def dot(a, b):
        return jnp.dot(a, b, preferred_element_type=jnp.float32)

    def dot_t(a, b):               # a @ b.T without a transpose op
        return jax.lax.dot_general(a, b, (((1,), (1,)), ((), ())),
                                   preferred_element_type=jnp.float32)

    hmasks = [V("hmask%d" % h) for h in range(N_HEADS)]   # (1, D) lane indicators

    def layernorm(x, gname, bname):
        mu = jnp.mean(x, axis=-1, keepdims=True)
        xc = x - mu
        var = jnp.mean(xc * xc, axis=-1, keepdims=True)
        return xc * jax.lax.rsqrt(var + LN_EPS) * V(gname) + V(bname)

    def mha(q, k, v, wo, bo, mask):
        # Heads are handled by lane-indicator masks on K/V (VPU) instead of
        # 8-lane slices (XLU); each head's context lands in its own lanes,
        # so a single full (D, D) dot with Wo finishes attention.
        ctx = None
        for hm in hmasks:
            s = dot_t(q, k * hm) + mask          # per-head scores + batch/causal mask
            mx = jnp.max(s, axis=-1, keepdims=True)
            p = jnp.exp(s - mx)
            inv = pl.reciprocal(jnp.sum(p, axis=-1, keepdims=True), approx=True)
            c = dot(p * inv, v * hm)             # nonzero only in head's lanes
            ctx = c if ctx is None else ctx + c
        return dot(ctx, wo) + bo

    mask_enc = masks_ref[0:ns, 0:ns]             # same-batch
    mask_dec = masks_ref[ns:ns + nt, 0:nt]       # same-batch & causal
    mask_crs = masks_ref[ns + nt:ns + 2 * nt, 0:ns]  # same-batch

    # ------------------------- encoder (post-LN) -------------------------
    # 1/sqrt(head_dim) is folded into e_wq / e_bq (likewise d_*, c_*).
    src = src_ref[...]
    q = dot(src, W("e_wq")) + V("e_bq")
    k = dot(src, W("e_wk")) + V("e_bk")
    v = dot(src, W("e_wv")) + V("e_bv")
    x = layernorm(src + mha(q, k, v, W("e_wo"), V("e_bo"), mask_enc),
                  "e_ln1g", "e_ln1b")
    h = jnp.maximum(dot(x, W("e_w1")) + V("e_b1"), 0.0)
    mem = layernorm(x + dot(h, W("e_w2")) + V("e_b2"), "e_ln2g", "e_ln2b")

    # ------------------------- decoder (post-LN) -------------------------
    tgt = tgt_ref[...]
    q = dot(tgt, W("d_wq")) + V("d_bq")
    k = dot(tgt, W("d_wk")) + V("d_bk")
    v = dot(tgt, W("d_wv")) + V("d_bv")
    x = layernorm(tgt + mha(q, k, v, W("d_wo"), V("d_bo"), mask_dec),
                  "d_ln1g", "d_ln1b")

    q = dot(x, W("c_wq")) + V("c_bq")
    k = dot(mem, W("c_wk")) + V("c_bk")
    v = dot(mem, W("c_wv")) + V("c_bv")
    x = layernorm(x + mha(q, k, v, W("c_wo"), V("c_bo"), mask_crs),
                  "d_ln2g", "d_ln2b")

    h = jnp.maximum(dot(x, W("d_w1")) + V("d_b1"), 0.0)
    x = layernorm(x + dot(h, W("d_w2")) + V("d_b2"), "d_ln3g", "d_ln3b")

    out_ref[...] = dot(x, W("w_out")) + V("b_out")   # 2-D (Lt*B, D) output


# ---------------------------------------------------------------------------
# wrapper
# ---------------------------------------------------------------------------
def _full_spec(shape):
    """BlockSpec covering the whole (small) array as a single VMEM block."""
    ndim = len(shape)
    return pl.BlockSpec(shape, lambda: (0,) * ndim)


def _build_masks(src_len, tgt_len, batch):
    """Additive attention masks for the seq-first (L*B, D) token flattening.

    Pure function of static shapes -> constant-folded under jit (no runtime cost).
    """
    ns, nt = src_len * batch, tgt_len * batch
    ncol = max(ns, nt)

    def block(q_len, k_len, causal):
        nq, nk = q_len * batch, k_len * batch
        i = np.arange(nq)[:, None]
        j = np.arange(nk)[None, :]
        ok = (i % batch) == (j % batch)                      # same-batch only
        if causal:
            ok = ok & ((i // batch) >= (j // batch))
        m = np.where(ok, 0.0, -1e9).astype(np.float32)
        if nk < ncol:
            m = np.pad(m, ((0, 0), (0, ncol - nk)), constant_values=-1e9)
        return m

    enc = block(src_len, src_len, False)
    dec = block(tgt_len, tgt_len, True)
    crs = block(tgt_len, src_len, False)
    return jnp.asarray(np.concatenate([enc, dec, crs], axis=0))


def model_forward(params, source, target, module="train"):
    # Mirrors Model.forward: memory = encoder(source); prediction = decoder(target, memory)
    # TODO(synk): dropout ('train' mode) is omitted; this is the deterministic forward pass.
    del module
    src_len, batch, d_model = source.shape
    tgt_len = target.shape[0]
    ns, nt = src_len * batch, tgt_len * batch
    w_slab, b_slab = params

    src2 = source.reshape(ns, d_model)   # contiguous reshape: free, no transpose
    tgt2 = target.reshape(nt, d_model)
    masks = _build_masks(src_len, tgt_len, batch)

    args = (src2, tgt2, w_slab, b_slab, masks)
    out = pl.pallas_call(
        _model_kernel,
        out_shape=jax.ShapeDtypeStruct((nt, d_model), jnp.float32),
        in_specs=[_full_spec(a.shape) for a in args],
        out_specs=_full_spec((nt, d_model)),
    )(*args)
    return out.reshape(tgt_len, batch, d_model)   # free reshape back to (Lt, B, D)


# ---------------------------------------------------------------------------
# deterministic parameter init + slab packing (scale folded into query weights)
# ---------------------------------------------------------------------------
def _init_linear(key, din, dout):
    k1, k2 = jax.random.split(key)
    w = jax.random.normal(k1, (din, dout), jnp.float32) * (din ** -0.5)
    b = jax.random.normal(k2, (dout,), jnp.float32) * 0.01
    return w, b


def init_params(seed=0):
    key = jax.random.PRNGKey(seed)
    keys = iter(jax.random.split(key, 32))
    s = HEAD_DIM ** -0.5
    weights, vecs = {}, {}

    def lin(wname, bname, din, dout, scale=1.0):
        w, b = _init_linear(next(keys), din, dout)
        weights[wname] = w * scale
        vecs[bname] = b * scale

    # encoder layer
    lin("e_wq", "e_bq", D_MODEL, D_MODEL, s)
    lin("e_wk", "e_bk", D_MODEL, D_MODEL)
    lin("e_wv", "e_bv", D_MODEL, D_MODEL)
    lin("e_wo", "e_bo", D_MODEL, D_MODEL)
    lin("e_w1", "e_b1", D_MODEL, D_FF)
    lin("e_w2", "e_b2", D_FF, D_MODEL)
    # decoder self-attention
    lin("d_wq", "d_bq", D_MODEL, D_MODEL, s)
    lin("d_wk", "d_bk", D_MODEL, D_MODEL)
    lin("d_wv", "d_bv", D_MODEL, D_MODEL)
    lin("d_wo", "d_bo", D_MODEL, D_MODEL)
    # decoder cross-attention
    lin("c_wq", "c_bq", D_MODEL, D_MODEL, s)
    lin("c_wk", "c_bk", D_MODEL, D_MODEL)
    lin("c_wv", "c_bv", D_MODEL, D_MODEL)
    lin("c_wo", "c_bo", D_MODEL, D_MODEL)
    # decoder FFN + output projection
    lin("d_w1", "d_b1", D_MODEL, D_FF)
    lin("d_w2", "d_b2", D_FF, D_MODEL)
    lin("w_out", "b_out", D_MODEL, D_MODEL)

    # layernorm params
    for n in ("e_ln1", "e_ln2", "d_ln1", "d_ln2", "d_ln3"):
        vecs[n + "g"] = jnp.ones((D_MODEL,), jnp.float32)
        vecs[n + "b"] = jnp.zeros((D_MODEL,), jnp.float32)

    # per-head lane indicator masks
    for h in range(N_HEADS):
        m = np.zeros((D_MODEL,), np.float32)
        m[h * HEAD_DIM:(h + 1) * HEAD_DIM] = 1.0
        vecs["hmask%d" % h] = jnp.asarray(m)

    # pack into slabs
    w_slab = jnp.zeros((W_ROWS, SLAB_W), jnp.float32)
    for name, (r, din, dout) in W_OFF.items():
        w_slab = w_slab.at[r:r + din, :dout].set(weights[name])
    b_slab = jnp.zeros((B_ROWS, SLAB_W), jnp.float32)
    for name, (i, dim) in B_OFF.items():
        b_slab = b_slab.at[i, :dim].set(vecs[name])
    return w_slab, b_slab


# ---------------------------------------------------------------------------
if __name__ == "__main__":
    SRC_LEN, TRG_LEN, BATCH = 8, 8, 2

    key = jax.random.PRNGKey(0)
    k_src, k_tgt = jax.random.split(key)
    source = jax.random.normal(k_src, (SRC_LEN, BATCH, D_MODEL), jnp.float32)
    target = jax.random.normal(k_tgt, (TRG_LEN, BATCH, D_MODEL), jnp.float32)

    params = init_params(seed=0)

    fwd = jax.jit(functools.partial(model_forward, module="train"))
    prediction = fwd(params, source, target)
    prediction = jax.block_until_ready(prediction)

    assert prediction.shape == (TRG_LEN, BATCH, D_MODEL)
    assert bool(jnp.all(jnp.isfinite(prediction)))
    print("KERNEL_OK")
</pallas_src>

<mosaic_0001>
module attributes {stable_mosaic.version = 11 : i64} {
  func.func @_model_kernel(%arg0: memref<16x32xf32, #tpu.memory_space<vmem>>, %arg1: memref<16x32xf32, #tpu.memory_space<vmem>>, %arg2: memref<608x64xf32, #tpu.memory_space<vmem>>, %arg3: memref<32x64xf32, #tpu.memory_space<vmem>>, %arg4: memref<48x16xf32, #tpu.memory_space<vmem>>, %arg5: memref<16x32xf32, #tpu.memory_space<vmem>>) attributes {dimension_semantics = [], scalar_prefetch = 0 : i64, scratch_operands = 0 : i64, tpu.core_type = #tpu.core_type<tc>} {
    %c27 = arith.constant 27 : index
    %c0 = arith.constant 0 : index
    %0 = vector.load %arg3[%c27, %c0] : memref<32x64xf32, #tpu.memory_space<vmem>>, vector<1x32xf32>
    %c28 = arith.constant 28 : index
    %c0_0 = arith.constant 0 : index
    %1 = vector.load %arg3[%c28, %c0_0] : memref<32x64xf32, #tpu.memory_space<vmem>>, vector<1x32xf32>
    %c29 = arith.constant 29 : index
    %c0_1 = arith.constant 0 : index
    %2 = vector.load %arg3[%c29, %c0_1] : memref<32x64xf32, #tpu.memory_space<vmem>>, vector<1x32xf32>
    %c30 = arith.constant 30 : index
    %c0_2 = arith.constant 0 : index
    %3 = vector.load %arg3[%c30, %c0_2] : memref<32x64xf32, #tpu.memory_space<vmem>>, vector<1x32xf32>
    %c0_3 = arith.constant 0 : index
    %c0_4 = arith.constant 0 : index
    %4 = vector.load %arg4[%c0_3, %c0_4] : memref<48x16xf32, #tpu.memory_space<vmem>>, vector<16x16xf32>
    %c16 = arith.constant 16 : index
    %c0_5 = arith.constant 0 : index
    %5 = vector.load %arg4[%c16, %c0_5] : memref<48x16xf32, #tpu.memory_space<vmem>>, vector<16x16xf32>
    %c32 = arith.constant 32 : index
    %c0_6 = arith.constant 0 : index
    %6 = vector.load %arg4[%c32, %c0_6] : memref<48x16xf32, #tpu.memory_space<vmem>>, vector<16x16xf32>
    %c0_7 = arith.constant 0 : index
    %c0_8 = arith.constant 0 : index
    %7 = vector.load %arg0[%c0_7, %c0_8] : memref<16x32xf32, #tpu.memory_space<vmem>>, vector<16x32xf32>
    %c0_9 = arith.constant 0 : index
    %c0_10 = arith.constant 0 : index
    %8 = vector.load %arg2[%c0_9, %c0_10] : memref<608x64xf32, #tpu.memory_space<vmem>>, vector<32x32xf32>
    %cst = arith.constant dense<0.000000e+00> : vector<16x32xf32>
    %9 = tpu.matmul %7, %8, %cst {dimension_numbers = #tpu.dot_dimension_numbers<[1], [0], [0], [1], [0, 0, 1, 1], [], []>} : vector<16x32xf32>, vector<32x32xf32>, vector<16x32xf32> -> vector<16x32xf32>
    %c0_11 = arith.constant 0 : index
    %c0_12 = arith.constant 0 : index
    %10 = vector.load %arg3[%c0_11, %c0_12] : memref<32x64xf32, #tpu.memory_space<vmem>>, vector<1x32xf32>
    %11 = vector.broadcast %10 : vector<1x32xf32> to vector<16x32xf32>
    %12 = arith.addf %9, %11 : vector<16x32xf32>
    %c32_13 = arith.constant 32 : index
    %c0_14 = arith.constant 0 : index
    %13 = vector.load %arg2[%c32_13, %c0_14] : memref<608x64xf32, #tpu.memory_space<vmem>>, vector<32x32xf32>
    %cst_15 = arith.constant dense<0.000000e+00> : vector<16x32xf32>
    %14 = tpu.matmul %7, %13, %cst_15 {dimension_numbers = #tpu.dot_dimension_numbers<[1], [0], [0], [1], [0, 0, 1, 1], [], []>} : vector<16x32xf32>, vector<32x32xf32>, vector<16x32xf32> -> vector<16x32xf32>
    %c1 = arith.constant 1 : index
    %c0_16 = arith.constant 0 : index
    %15 = vector.load %arg3[%c1, %c0_16] : memref<32x64xf32, #tpu.memory_space<vmem>>, vector<1x32xf32>
    %16 = vector.broadcast %15 : vector<1x32xf32> to vector<16x32xf32>
    %17 = arith.addf %14, %16 : vector<16x32xf32>
    %c64 = arith.constant 64 : index
    %c0_17 = arith.constant 0 : index
    %18 = vector.load %arg2[%c64, %c0_17] : memref<608x64xf32, #tpu.memory_space<vmem>>, vector<32x32xf32>
    %cst_18 = arith.constant dense<0.000000e+00> : vector<16x32xf32>
    %19 = tpu.matmul %7, %18, %cst_18 {dimension_numbers = #tpu.dot_dimension_numbers<[1], [0], [0], [1], [0, 0, 1, 1], [], []>} : vector<16x32xf32>, vector<32x32xf32>, vector<16x32xf32> -> vector<16x32xf32>
    %c2 = arith.constant 2 : index
    %c0_19 = arith.constant 0 : index
    %20 = vector.load %arg3[%c2, %c0_19] : memref<32x64xf32, #tpu.memory_space<vmem>>, vector<1x32xf32>
    %21 = vector.broadcast %20 : vector<1x32xf32> to vector<16x32xf32>
    %22 = arith.addf %19, %21 : vector<16x32xf32>
    %c96 = arith.constant 96 : index
    %c0_20 = arith.constant 0 : index
    %23 = vector.load %arg2[%c96, %c0_20] : memref<608x64xf32, #tpu.memory_space<vmem>>, vector<32x32xf32>
    %c3 = arith.constant 3 : index
    %c0_21 = arith.constant 0 : index
    %24 = vector.load %arg3[%c3, %c0_21] : memref<32x64xf32, #tpu.memory_space<vmem>>, vector<1x32xf32>
    %25 = vector.broadcast %0 : vector<1x32xf32> to vector<16x32xf32>
    %26 = arith.mulf %17, %25 : vector<16x32xf32>
    %cst_22 = arith.constant dense<0.000000e+00> : vector<16x16xf32>
    %27 = tpu.matmul %12, %26, %cst_22 {dimension_numbers = #tpu.dot_dimension_numbers<[1], [1], [0], [0], [0, 0, 1, 0], [], []>} : vector<16x32xf32>, vector<16x32xf32>, vector<16x16xf32> -> vector<16x16xf32>
    %28 = arith.addf %27, %4 : vector<16x16xf32>
    %cst_23 = arith.constant dense<0xFF800000> : vector<16xf32>
    %29 = vector.multi_reduction <maximumf>, %28, %cst_23 [1] : vector<16x16xf32> to vector<16xf32>
    %30 = vector.shape_cast %29 : vector<16xf32> to vector<16x1xf32>
    %31 = vector.broadcast %30 : vector<16x1xf32> to vector<16x16xf32>
    %32 = arith.subf %28, %31 : vector<16x16xf32>
    %33 = math.exp %32 : vector<16x16xf32>
    %cst_24 = arith.constant dense<0.000000e+00> : vector<16xf32>
    %34 = vector.multi_reduction <add>, %33, %cst_24 [1] : vector<16x16xf32> to vector<16xf32>
    %35 = vector.shape_cast %34 : vector<16xf32> to vector<16x1xf32>
    %36 = tpu.reciprocal %35 {approx = true} : vector<16x1xf32> -> vector<16x1xf32>
    %37 = vector.broadcast %36 : vector<16x1xf32> to vector<16x16xf32>
    %38 = arith.mulf %33, %37 : vector<16x16xf32>
    %39 = vector.broadcast %0 : vector<1x32xf32> to vector<16x32xf32>
    %40 = arith.mulf %22, %39 : vector<16x32xf32>
    %cst_25 = arith.constant dense<0.000000e+00> : vector<16x32xf32>
    %41 = tpu.matmul %38, %40, %cst_25 {dimension_numbers = #tpu.dot_dimension_numbers<[1], [0], [0], [1], [0, 0, 1, 1], [], []>} : vector<16x16xf32>, vector<16x32xf32>, vector<16x32xf32> -> vector<16x32xf32>
    %42 = vector.broadcast %1 : vector<1x32xf32> to vector<16x32xf32>
    %43 = arith.mulf %17, %42 : vector<16x32xf32>
    %cst_26 = arith.constant dense<0.000000e+00> : vector<16x16xf32>
    %44 = tpu.matmul %12, %43, %cst_26 {dimension_numbers = #tpu.dot_dimension_numbers<[1], [1], [0], [0], [0, 0, 1, 0], [], []>} : vector<16x32xf32>, vector<16x32xf32>, vector<16x16xf32> -> vector<16x16xf32>
    %45 = arith.addf %44, %4 : vector<16x16xf32>
    %cst_27 = arith.constant dense<0xFF800000> : vector<16xf32>
    %46 = vector.multi_reduction <maximumf>, %45, %cst_27 [1] : vector<16x16xf32> to vector<16xf32>
    %47 = vector.shape_cast %46 : vector<16xf32> to vector<16x1xf32>
    %48 = vector.broadcast %47 : vector<16x1xf32> to vector<16x16xf32>
    %49 = arith.subf %45, %48 : vector<16x16xf32>
    %50 = math.exp %49 : vector<16x16xf32>
    %cst_28 = arith.constant dense<0.000000e+00> : vector<16xf32>
    %51 = vector.multi_reduction <add>, %50, %cst_28 [1] : vector<16x16xf32> to vector<16xf32>
    %52 = vector.shape_cast %51 : vector<16xf32> to vector<16x1xf32>
    %53 = tpu.reciprocal %52 {approx = true} : vector<16x1xf32> -> vector<16x1xf32>
    %54 = vector.broadcast %53 : vector<16x1xf32> to vector<16x16xf32>
    %55 = arith.mulf %50, %54 : vector<16x16xf32>
    %56 = vector.broadcast %1 : vector<1x32xf32> to vector<16x32xf32>
    %57 = arith.mulf %22, %56 : vector<16x32xf32>
    %cst_29 = arith.constant dense<0.000000e+00> : vector<16x32xf32>
    %58 = tpu.matmul %55, %57, %cst_29 {dimension_numbers = #tpu.dot_dimension_numbers<[1], [0], [0], [1], [0, 0, 1, 1], [], []>} : vector<16x16xf32>, vector<16x32xf32>, vector<16x32xf32> -> vector<16x32xf32>
    %59 = arith.addf %41, %58 : vector<16x32xf32>
    %60 = vector.broadcast %2 : vector<1x32xf32> to vector<16x32xf32>
    %61 = arith.mulf %17, %60 : vector<16x32xf32>
    %cst_30 = arith.constant dense<0.000000e+00> : vector<16x16xf32>
    %62 = tpu.matmul %12, %61, %cst_30 {dimension_numbers = #tpu.dot_dimension_numbers<[1], [1], [0], [0], [0, 0, 1, 0], [], []>} : vector<16x32xf32>, vector<16x32xf32>, vector<16x16xf32> -> vector<16x16xf32>
    %63 = arith.addf %62, %4 : vector<16x16xf32>
    %cst_31 = arith.constant dense<0xFF800000> : vector<16xf32>
    %64 = vector.multi_reduction <maximumf>, %63, %cst_31 [1] : vector<16x16xf32> to vector<16xf32>
    %65 = vector.shape_cast %64 : vector<16xf32> to vector<16x1xf32>
    %66 = vector.broadcast %65 : vector<16x1xf32> to vector<16x16xf32>
    %67 = arith.subf %63, %66 : vector<16x16xf32>
    %68 = math.exp %67 : vector<16x16xf32>
    %cst_32 = arith.constant dense<0.000000e+00> : vector<16xf32>
    %69 = vector.multi_reduction <add>, %68, %cst_32 [1] : vector<16x16xf32> to vector<16xf32>
    %70 = vector.shape_cast %69 : vector<16xf32> to vector<16x1xf32>
    %71 = tpu.reciprocal %70 {approx = true} : vector<16x1xf32> -> vector<16x1xf32>
    %72 = vector.broadcast %71 : vector<16x1xf32> to vector<16x16xf32>
    %73 = arith.mulf %68, %72 : vector<16x16xf32>
    %74 = vector.broadcast %2 : vector<1x32xf32> to vector<16x32xf32>
    %75 = arith.mulf %22, %74 : vector<16x32xf32>
    %cst_33 = arith.constant dense<0.000000e+00> : vector<16x32xf32>
    %76 = tpu.matmul %73, %75, %cst_33 {dimension_numbers = #tpu.dot_dimension_numbers<[1], [0], [0], [1], [0, 0, 1, 1], [], []>} : vector<16x16xf32>, vector<16x32xf32>, vector<16x32xf32> -> vector<16x32xf32>
    %77 = arith.addf %59, %76 : vector<16x32xf32>
    %78 = vector.broadcast %3 : vector<1x32xf32> to vector<16x32xf32>
    %79 = arith.mulf %17, %78 : vector<16x32xf32>
    %cst_34 = arith.constant dense<0.000000e+00> : vector<16x16xf32>
    %80 = tpu.matmul %12, %79, %cst_34 {dimension_numbers = #tpu.dot_dimension_numbers<[1], [1], [0], [0], [0, 0, 1, 0], [], []>} : vector<16x32xf32>, vector<16x32xf32>, vector<16x16xf32> -> vector<16x16xf32>
    %81 = arith.addf %80, %4 : vector<16x16xf32>
    %cst_35 = arith.constant dense<0xFF800000> : vector<16xf32>
    %82 = vector.multi_reduction <maximumf>, %81, %cst_35 [1] : vector<16x16xf32> to vector<16xf32>
    %83 = vector.shape_cast %82 : vector<16xf32> to vector<16x1xf32>
    %84 = vector.broadcast %83 : vector<16x1xf32> to vector<16x16xf32>
    %85 = arith.subf %81, %84 : vector<16x16xf32>
    %86 = math.exp %85 : vector<16x16xf32>
    %cst_36 = arith.constant dense<0.000000e+00> : vector<16xf32>
    %87 = vector.multi_reduction <add>, %86, %cst_36 [1] : vector<16x16xf32> to vector<16xf32>
    %88 = vector.shape_cast %87 : vector<16xf32> to vector<16x1xf32>
    %89 = tpu.reciprocal %88 {approx = true} : vector<16x1xf32> -> vector<16x1xf32>
    %90 = vector.broadcast %89 : vector<16x1xf32> to vector<16x16xf32>
    %91 = arith.mulf %86, %90 : vector<16x16xf32>
    %92 = vector.broadcast %3 : vector<1x32xf32> to vector<16x32xf32>
    %93 = arith.mulf %22, %92 : vector<16x32xf32>
    %cst_37 = arith.constant dense<0.000000e+00> : vector<16x32xf32>
    %94 = tpu.matmul %91, %93, %cst_37 {dimension_numbers = #tpu.dot_dimension_numbers<[1], [0], [0], [1], [0, 0, 1, 1], [], []>} : vector<16x16xf32>, vector<16x32xf32>, vector<16x32xf32> -> vector<16x32xf32>
    %95 = arith.addf %77, %94 : vector<16x32xf32>
    %cst_38 = arith.constant dense<0.000000e+00> : vector<16x32xf32>
    %96 = tpu.matmul %95, %23, %cst_38 {dimension_numbers = #tpu.dot_dimension_numbers<[1], [0], [0], [1], [0, 0, 1, 1], [], []>} : vector<16x32xf32>, vector<32x32xf32>, vector<16x32xf32> -> vector<16x32xf32>
    %97 = vector.broadcast %24 : vector<1x32xf32> to vector<16x32xf32>
    %98 = arith.addf %96, %97 : vector<16x32xf32>
    %99 = arith.addf %7, %98 : vector<16x32xf32>
    %cst_39 = arith.constant dense<0.000000e+00> : vector<16xf32>
    %100 = vector.multi_reduction <add>, %99, %cst_39 [1] : vector<16x32xf32> to vector<16xf32>
    %101 = vector.shape_cast %100 : vector<16xf32> to vector<16x1xf32>
    %cst_40 = arith.constant 3.200000e+01 : f32
    %102 = vector.broadcast %cst_40 : f32 to vector<16x1xf32>
    %103 = arith.divf %101, %102 : vector<16x1xf32>
    %104 = vector.broadcast %103 : vector<16x1xf32> to vector<16x32xf32>
    %105 = arith.subf %99, %104 : vector<16x32xf32>
    %106 = arith.mulf %105, %105 : vector<16x32xf32>
    %cst_41 = arith.constant dense<0.000000e+00> : vector<16xf32>
    %107 = vector.multi_reduction <add>, %106, %cst_41 [1] : vector<16x32xf32> to vector<16xf32>
    %108 = vector.shape_cast %107 : vector<16xf32> to vector<16x1xf32>
    %cst_42 = arith.constant 3.200000e+01 : f32
    %109 = vector.broadcast %cst_42 : f32 to vector<16x1xf32>
    %110 = arith.divf %108, %109 : vector<16x1xf32>
    %cst_43 = arith.constant 9.99999974E-6 : f32
    %111 = vector.broadcast %cst_43 : f32 to vector<16x1xf32>
    %112 = arith.addf %110, %111 : vector<16x1xf32>
    %113 = math.rsqrt %112 : vector<16x1xf32>
    %114 = vector.broadcast %113 : vector<16x1xf32> to vector<16x32xf32>
    %115 = arith.mulf %105, %114 : vector<16x32xf32>
    %c4 = arith.constant 4 : index
    %c0_44 = arith.constant 0 : index
    %116 = vector.load %arg3[%c4, %c0_44] : memref<32x64xf32, #tpu.memory_space<vmem>>, vector<1x32xf32>
    %117 = vector.broadcast %116 : vector<1x32xf32> to vector<16x32xf32>
    %118 = arith.mulf %115, %117 : vector<16x32xf32>
    %c5 = arith.constant 5 : index
    %c0_45 = arith.constant 0 : index
    %119 = vector.load %arg3[%c5, %c0_45] : memref<32x64xf32, #tpu.memory_space<vmem>>, vector<1x32xf32>
    %120 = vector.broadcast %119 : vector<1x32xf32> to vector<16x32xf32>
    %121 = arith.addf %118, %120 : vector<16x32xf32>
    %c128 = arith.constant 128 : index
    %c0_46 = arith.constant 0 : index
    %122 = vector.load %arg2[%c128, %c0_46] : memref<608x64xf32, #tpu.memory_space<vmem>>, vector<32x64xf32>
    %cst_47 = arith.constant dense<0.000000e+00> : vector<16x64xf32>
    %123 = tpu.matmul %121, %122, %cst_47 {dimension_numbers = #tpu.dot_dimension_numbers<[1], [0], [0], [1], [0, 0, 1, 1], [], []>} : vector<16x32xf32>, vector<32x64xf32>, vector<16x64xf32> -> vector<16x64xf32>
    %c6 = arith.constant 6 : index
    %c0_48 = arith.constant 0 : index
    %124 = vector.load %arg3[%c6, %c0_48] : memref<32x64xf32, #tpu.memory_space<vmem>>, vector<1x64xf32>
    %125 = vector.broadcast %124 : vector<1x64xf32> to vector<16x64xf32>
    %126 = arith.addf %123, %125 : vector<16x64xf32>
    %cst_49 = arith.constant 0.000000e+00 : f32
    %127 = vector.broadcast %cst_49 : f32 to vector<16x64xf32>
    %128 = arith.maximumf %126, %127 : vector<16x64xf32>
    %c160 = arith.constant 160 : index
    %c0_50 = arith.constant 0 : index
    %129 = vector.load %arg2[%c160, %c0_50] : memref<608x64xf32, #tpu.memory_space<vmem>>, vector<64x32xf32>
    %cst_51 = arith.constant dense<0.000000e+00> : vector<16x32xf32>
    %130 = tpu.matmul %128, %129, %cst_51 {dimension_numbers = #tpu.dot_dimension_numbers<[1], [0], [0], [1], [0, 0, 1, 1], [], []>} : vector<16x64xf32>, vector<64x32xf32>, vector<16x32xf32> -> vector<16x32xf32>
    %131 = arith.addf %121, %130 : vector<16x32xf32>
    %c7 = arith.constant 7 : index
    %c0_52 = arith.constant 0 : index
    %132 = vector.load %arg3[%c7, %c0_52] : memref<32x64xf32, #tpu.memory_space<vmem>>, vector<1x32xf32>
    %133 = vector.broadcast %132 : vector<1x32xf32> to vector<16x32xf32>
    %134 = arith.addf %131, %133 : vector<16x32xf32>
    %cst_53 = arith.constant dense<0.000000e+00> : vector<16xf32>
    %135 = vector.multi_reduction <add>, %134, %cst_53 [1] : vector<16x32xf32> to vector<16xf32>
    %136 = vector.shape_cast %135 : vector<16xf32> to vector<16x1xf32>
    %cst_54 = arith.constant 3.200000e+01 : f32
    %137 = vector.broadcast %cst_54 : f32 to vector<16x1xf32>
    %138 = arith.divf %136, %137 : vector<16x1xf32>
    %139 = vector.broadcast %138 : vector<16x1xf32> to vector<16x32xf32>
    %140 = arith.subf %134, %139 : vector<16x32xf32>
    %141 = arith.mulf %140, %140 : vector<16x32xf32>
    %cst_55 = arith.constant dense<0.000000e+00> : vector<16xf32>
    %142 = vector.multi_reduction <add>, %141, %cst_55 [1] : vector<16x32xf32> to vector<16xf32>
    %143 = vector.shape_cast %142 : vector<16xf32> to vector<16x1xf32>
    %cst_56 = arith.constant 3.200000e+01 : f32
    %144 = vector.broadcast %cst_56 : f32 to vector<16x1xf32>
    %145 = arith.divf %143, %144 : vector<16x1xf32>
    %cst_57 = arith.constant 9.99999974E-6 : f32
    %146 = vector.broadcast %cst_57 : f32 to vector<16x1xf32>
    %147 = arith.addf %145, %146 : vector<16x1xf32>
    %148 = math.rsqrt %147 : vector<16x1xf32>
    %149 = vector.broadcast %148 : vector<16x1xf32> to vector<16x32xf32>
    %150 = arith.mulf %140, %149 : vector<16x32xf32>
    %c8 = arith.constant 8 : index
    %c0_58 = arith.constant 0 : index
    %151 = vector.load %arg3[%c8, %c0_58] : memref<32x64xf32, #tpu.memory_space<vmem>>, vector<1x32xf32>
    %152 = vector.broadcast %151 : vector<1x32xf32> to vector<16x32xf32>
    %153 = arith.mulf %150, %152 : vector<16x32xf32>
    %c9 = arith.constant 9 : index
    %c0_59 = arith.constant 0 : index
    %154 = vector.load %arg3[%c9, %c0_59] : memref<32x64xf32, #tpu.memory_space<vmem>>, vector<1x32xf32>
    %155 = vector.broadcast %154 : vector<1x32xf32> to vector<16x32xf32>
    %156 = arith.addf %153, %155 : vector<16x32xf32>
    %c0_60 = arith.constant 0 : index
    %c0_61 = arith.constant 0 : index
    %157 = vector.load %arg1[%c0_60, %c0_61] : memref<16x32xf32, #tpu.memory_space<vmem>>, vector<16x32xf32>
    %c224 = arith.constant 224 : index
    %c0_62 = arith.constant 0 : index
    %158 = vector.load %arg2[%c224, %c0_62] : memref<608x64xf32, #tpu.memory_space<vmem>>, vector<32x32xf32>
    %cst_63 = arith.constant dense<0.000000e+00> : vector<16x32xf32>
    %159 = tpu.matmul %157, %158, %cst_63 {dimension_numbers = #tpu.dot_dimension_numbers<[1], [0], [0], [1], [0, 0, 1, 1], [], []>} : vector<16x32xf32>, vector<32x32xf32>, vector<16x32xf32> -> vector<16x32xf32>
    %c10 = arith.constant 10 : index
    %c0_64 = arith.constant 0 : index
    %160 = vector.load %arg3[%c10, %c0_64] : memref<32x64xf32, #tpu.memory_space<vmem>>, vector<1x32xf32>
    %161 = vector.broadcast %160 : vector<1x32xf32> to vector<16x32xf32>
    %162 = arith.addf %159, %161 : vector<16x32xf32>
    %c256 = arith.constant 256 : index
    %c0_65 = arith.constant 0 : index
    %163 = vector.load %arg2[%c256, %c0_65] : memref<608x64xf32, #tpu.memory_space<vmem>>, vector<32x32xf32>
    %cst_66 = arith.constant dense<0.000000e+00> : vector<16x32xf32>
    %164 = tpu.matmul %157, %163, %cst_66 {dimension_numbers = #tpu.dot_dimension_numbers<[1], [0], [0], [1], [0, 0, 1, 1], [], []>} : vector<16x32xf32>, vector<32x32xf32>, vector<16x32xf32> -> vector<16x32xf32>
    %c11 = arith.constant 11 : index
    %c0_67 = arith.constant 0 : index
    %165 = vector.load %arg3[%c11, %c0_67] : memref<32x64xf32, #tpu.memory_space<vmem>>, vector<1x32xf32>
    %166 = vector.broadcast %165 : vector<1x32xf32> to vector<16x32xf32>
    %167 = arith.addf %164, %166 : vector<16x32xf32>
    %c288 = arith.constant 288 : index
    %c0_68 = arith.constant 0 : index
    %168 = vector.load %arg2[%c288, %c0_68] : memref<608x64xf32, #tpu.memory_space<vmem>>, vector<32x32xf32>
    %cst_69 = arith.constant dense<0.000000e+00> : vector<16x32xf32>
    %169 = tpu.matmul %157, %168, %cst_69 {dimension_numbers = #tpu.dot_dimension_numbers<[1], [0], [0], [1], [0, 0, 1, 1], [], []>} : vector<16x32xf32>, vector<32x32xf32>, vector<16x32xf32> -> vector<16x32xf32>
    %c12 = arith.constant 12 : index
    %c0_70 = arith.constant 0 : index
    %170 = vector.load %arg3[%c12, %c0_70] : memref<32x64xf32, #tpu.memory_space<vmem>>, vector<1x32xf32>
    %171 = vector.broadcast %170 : vector<1x32xf32> to vector<16x32xf32>
    %172 = arith.addf %169, %171 : vector<16x32xf32>
    %c320 = arith.constant 320 : index
    %c0_71 = arith.constant 0 : index
    %173 = vector.load %arg2[%c320, %c0_71] : memref<608x64xf32, #tpu.memory_space<vmem>>, vector<32x32xf32>
    %c13 = arith.constant 13 : index
    %c0_72 = arith.constant 0 : index
    %174 = vector.load %arg3[%c13, %c0_72] : memref<32x64xf32, #tpu.memory_space<vmem>>, vector<1x32xf32>
    %175 = vector.broadcast %0 : vector<1x32xf32> to vector<16x32xf32>
    %176 = arith.mulf %167, %175 : vector<16x32xf32>
    %cst_73 = arith.constant dense<0.000000e+00> : vector<16x16xf32>
    %177 = tpu.matmul %162, %176, %cst_73 {dimension_numbers = #tpu.dot_dimension_numbers<[1], [1], [0], [0], [0, 0, 1, 0], [], []>} : vector<16x32xf32>, vector<16x32xf32>, vector<16x16xf32> -> vector<16x16xf32>
    %178 = arith.addf %177, %5 : vector<16x16xf32>
    %cst_74 = arith.constant dense<0xFF800000> : vector<16xf32>
    %179 = vector.multi_reduction <maximumf>, %178, %cst_74 [1] : vector<16x16xf32> to vector<16xf32>
    %180 = vector.shape_cast %179 : vector<16xf32> to vector<16x1xf32>
    %181 = vector.broadcast %180 : vector<16x1xf32> to vector<16x16xf32>
    %182 = arith.subf %178, %181 : vector<16x16xf32>
    %183 = math.exp %182 : vector<16x16xf32>
    %cst_75 = arith.constant dense<0.000000e+00> : vector<16xf32>
    %184 = vector.multi_reduction <add>, %183, %cst_75 [1] : vector<16x16xf32> to vector<16xf32>
    %185 = vector.shape_cast %184 : vector<16xf32> to vector<16x1xf32>
    %186 = tpu.reciprocal %185 {approx = true} : vector<16x1xf32> -> vector<16x1xf32>
    %187 = vector.broadcast %186 : vector<16x1xf32> to vector<16x16xf32>
    %188 = arith.mulf %183, %187 : vector<16x16xf32>
    %189 = vector.broadcast %0 : vector<1x32xf32> to vector<16x32xf32>
    %190 = arith.mulf %172, %189 : vector<16x32xf32>
    %cst_76 = arith.constant dense<0.000000e+00> : vector<16x32xf32>
    %191 = tpu.matmul %188, %190, %cst_76 {dimension_numbers = #tpu.dot_dimension_numbers<[1], [0], [0], [1], [0, 0, 1, 1], [], []>} : vector<16x16xf32>, vector<16x32xf32>, vector<16x32xf32> -> vector<16x32xf32>
    %192 = vector.broadcast %1 : vector<1x32xf32> to vector<16x32xf32>
    %193 = arith.mulf %167, %192 : vector<16x32xf32>
    %cst_77 = arith.constant dense<0.000000e+00> : vector<16x16xf32>
    %194 = tpu.matmul %162, %193, %cst_77 {dimension_numbers = #tpu.dot_dimension_numbers<[1], [1], [0], [0], [0, 0, 1, 0], [], []>} : vector<16x32xf32>, vector<16x32xf32>, vector<16x16xf32> -> vector<16x16xf32>
    %195 = arith.addf %194, %5 : vector<16x16xf32>
    %cst_78 = arith.constant dense<0xFF800000> : vector<16xf32>
    %196 = vector.multi_reduction <maximumf>, %195, %cst_78 [1] : vector<16x16xf32> to vector<16xf32>
    %197 = vector.shape_cast %196 : vector<16xf32> to vector<16x1xf32>
    %198 = vector.broadcast %197 : vector<16x1xf32> to vector<16x16xf32>
    %199 = arith.subf %195, %198 : vector<16x16xf32>
    %200 = math.exp %199 : vector<16x16xf32>
    %cst_79 = arith.constant dense<0.000000e+00> : vector<16xf32>
    %201 = vector.multi_reduction <add>, %200, %cst_79 [1] : vector<16x16xf32> to vector<16xf32>
    %202 = vector.shape_cast %201 : vector<16xf32> to vector<16x1xf32>
    %203 = tpu.reciprocal %202 {approx = true} : vector<16x1xf32> -> vector<16x1xf32>
    %204 = vector.broadcast %203 : vector<16x1xf32> to vector<16x16xf32>
    %205 = arith.mulf %200, %204 : vector<16x16xf32>
    %206 = vector.broadcast %1 : vector<1x32xf32> to vector<16x32xf32>
    %207 = arith.mulf %172, %206 : vector<16x32xf32>
    %cst_80 = arith.constant dense<0.000000e+00> : vector<16x32xf32>
    %208 = tpu.matmul %205, %207, %cst_80 {dimension_numbers = #tpu.dot_dimension_numbers<[1], [0], [0], [1], [0, 0, 1, 1], [], []>} : vector<16x16xf32>, vector<16x32xf32>, vector<16x32xf32> -> vector<16x32xf32>
    %209 = arith.addf %191, %208 : vector<16x32xf32>
    %210 = vector.broadcast %2 : vector<1x32xf32> to vector<16x32xf32>
    %211 = arith.mulf %167, %210 : vector<16x32xf32>
    %cst_81 = arith.constant dense<0.000000e+00> : vector<16x16xf32>
    %212 = tpu.matmul %162, %211, %cst_81 {dimension_numbers = #tpu.dot_dimension_numbers<[1], [1], [0], [0], [0, 0, 1, 0], [], []>} : vector<16x32xf32>, vector<16x32xf32>, vector<16x16xf32> -> vector<16x16xf32>
    %213 = arith.addf %212, %5 : vector<16x16xf32>
    %cst_82 = arith.constant dense<0xFF800000> : vector<16xf32>
    %214 = vector.multi_reduction <maximumf>, %213, %cst_82 [1] : vector<16x16xf32> to vector<16xf32>
    %215 = vector.shape_cast %214 : vector<16xf32> to vector<16x1xf32>
    %216 = vector.broadcast %215 : vector<16x1xf32> to vector<16x16xf32>
    %217 = arith.subf %213, %216 : vector<16x16xf32>
    %218 = math.exp %217 : vector<16x16xf32>
    %cst_83 = arith.constant dense<0.000000e+00> : vector<16xf32>
    %219 = vector.multi_reduction <add>, %218, %cst_83 [1] : vector<16x16xf32> to vector<16xf32>
    %220 = vector.shape_cast %219 : vector<16xf32> to vector<16x1xf32>
    %221 = tpu.reciprocal %220 {approx = true} : vector<16x1xf32> -> vector<16x1xf32>
    %222 = vector.broadcast %221 : vector<16x1xf32> to vector<16x16xf32>
    %223 = arith.mulf %218, %222 : vector<16x16xf32>
    %224 = vector.broadcast %2 : vector<1x32xf32> to vector<16x32xf32>
    %225 = arith.mulf %172, %224 : vector<16x32xf32>
    %cst_84 = arith.constant dense<0.000000e+00> : vector<16x32xf32>
    %226 = tpu.matmul %223, %225, %cst_84 {dimension_numbers = #tpu.dot_dimension_numbers<[1], [0], [0], [1], [0, 0, 1, 1], [], []>} : vector<16x16xf32>, vector<16x32xf32>, vector<16x32xf32> -> vector<16x32xf32>
    %227 = arith.addf %209, %226 : vector<16x32xf32>
    %228 = vector.broadcast %3 : vector<1x32xf32> to vector<16x32xf32>
    %229 = arith.mulf %167, %228 : vector<16x32xf32>
    %cst_85 = arith.constant dense<0.000000e+00> : vector<16x16xf32>
    %230 = tpu.matmul %162, %229, %cst_85 {dimension_numbers = #tpu.dot_dimension_numbers<[1], [1], [0], [0], [0, 0, 1, 0], [], []>} : vector<16x32xf32>, vector<16x32xf32>, vector<16x16xf32> -> vector<16x16xf32>
    %231 = arith.addf %230, %5 : vector<16x16xf32>
    %cst_86 = arith.constant dense<0xFF800000> : vector<16xf32>
    %232 = vector.multi_reduction <maximumf>, %231, %cst_86 [1] : vector<16x16xf32> to vector<16xf32>
    %233 = vector.shape_cast %232 : vector<16xf32> to vector<16x1xf32>
    %234 = vector.broadcast %233 : vector<16x1xf32> to vector<16x16xf32>
    %235 = arith.subf %231, %234 : vector<16x16xf32>
    %236 = math.exp %235 : vector<16x16xf32>
    %cst_87 = arith.constant dense<0.000000e+00> : vector<16xf32>
    %237 = vector.multi_reduction <add>, %236, %cst_87 [1] : vector<16x16xf32> to vector<16xf32>
    %238 = vector.shape_cast %237 : vector<16xf32> to vector<16x1xf32>
    %239 = tpu.reciprocal %238 {approx = true} : vector<16x1xf32> -> vector<16x1xf32>
    %240 = vector.broadcast %239 : vector<16x1xf32> to vector<16x16xf32>
    %241 = arith.mulf %236, %240 : vector<16x16xf32>
    %242 = vector.broadcast %3 : vector<1x32xf32> to vector<16x32xf32>
    %243 = arith.mulf %172, %242 : vector<16x32xf32>
    %cst_88 = arith.constant dense<0.000000e+00> : vector<16x32xf32>
    %244 = tpu.matmul %241, %243, %cst_88 {dimension_numbers = #tpu.dot_dimension_numbers<[1], [0], [0], [1], [0, 0, 1, 1], [], []>} : vector<16x16xf32>, vector<16x32xf32>, vector<16x32xf32> -> vector<16x32xf32>
    %245 = arith.addf %227, %244 : vector<16x32xf32>
    %cst_89 = arith.constant dense<0.000000e+00> : vector<16x32xf32>
    %246 = tpu.matmul %245, %173, %cst_89 {dimension_numbers = #tpu.dot_dimension_numbers<[1], [0], [0], [1], [0, 0, 1, 1], [], []>} : vector<16x32xf32>, vector<32x32xf32>, vector<16x32xf32> -> vector<16x32xf32>
    %247 = vector.broadcast %174 : vector<1x32xf32> to vector<16x32xf32>
    %248 = arith.addf %246, %247 : vector<16x32xf32>
    %249 = arith.addf %157, %248 : vector<16x32xf32>
    %cst_90 = arith.constant dense<0.000000e+00> : vector<16xf32>
    %250 = vector.multi_reduction <add>, %249, %cst_90 [1] : vector<16x32xf32> to vector<16xf32>
    %251 = vector.shape_cast %250 : vector<16xf32> to vector<16x1xf32>
    %cst_91 = arith.constant 3.200000e+01 : f32
    %252 = vector.broadcast %cst_91 : f32 to vector<16x1xf32>
    %253 = arith.divf %251, %252 : vector<16x1xf32>
    %254 = vector.broadcast %253 : vector<16x1xf32> to vector<16x32xf32>
    %255 = arith.subf %249, %254 : vector<16x32xf32>
    %256 = arith.mulf %255, %255 : vector<16x32xf32>
    %cst_92 = arith.constant dense<0.000000e+00> : vector<16xf32>
    %257 = vector.multi_reduction <add>, %256, %cst_92 [1] : vector<16x32xf32> to vector<16xf32>
    %258 = vector.shape_cast %257 : vector<16xf32> to vector<16x1xf32>
    %cst_93 = arith.constant 3.200000e+01 : f32
    %259 = vector.broadcast %cst_93 : f32 to vector<16x1xf32>
    %260 = arith.divf %258, %259 : vector<16x1xf32>
    %cst_94 = arith.constant 9.99999974E-6 : f32
    %261 = vector.broadcast %cst_94 : f32 to vector<16x1xf32>
    %262 = arith.addf %260, %261 : vector<16x1xf32>
    %263 = math.rsqrt %262 : vector<16x1xf32>
    %264 = vector.broadcast %263 : vector<16x1xf32> to vector<16x32xf32>
    %265 = arith.mulf %255, %264 : vector<16x32xf32>
    %c14 = arith.constant 14 : index
    %c0_95 = arith.constant 0 : index
    %266 = vector.load %arg3[%c14, %c0_95] : memref<32x64xf32, #tpu.memory_space<vmem>>, vector<1x32xf32>
    %267 = vector.broadcast %266 : vector<1x32xf32> to vector<16x32xf32>
    %268 = arith.mulf %265, %267 : vector<16x32xf32>
    %c15 = arith.constant 15 : index
    %c0_96 = arith.constant 0 : index
    %269 = vector.load %arg3[%c15, %c0_96] : memref<32x64xf32, #tpu.memory_space<vmem>>, vector<1x32xf32>
    %270 = vector.broadcast %269 : vector<1x32xf32> to vector<16x32xf32>
    %271 = arith.addf %268, %270 : vector<16x32xf32>
    %c352 = arith.constant 352 : index
    %c0_97 = arith.constant 0 : index
    %272 = vector.load %arg2[%c352, %c0_97] : memref<608x64xf32, #tpu.memory_space<vmem>>, vector<32x32xf32>
    %cst_98 = arith.constant dense<0.000000e+00> : vector<16x32xf32>
    %273 = tpu.matmul %271, %272, %cst_98 {dimension_numbers = #tpu.dot_dimension_numbers<[1], [0], [0], [1], [0, 0, 1, 1], [], []>} : vector<16x32xf32>, vector<32x32xf32>, vector<16x32xf32> -> vector<16x32xf32>
    %c16_99 = arith.constant 16 : index
    %c0_100 = arith.constant 0 : index
    %274 = vector.load %arg3[%c16_99, %c0_100] : memref<32x64xf32, #tpu.memory_space<vmem>>, vector<1x32xf32>
    %275 = vector.broadcast %274 : vector<1x32xf32> to vector<16x32xf32>
    %276 = arith.addf %273, %275 : vector<16x32xf32>
    %c384 = arith.constant 384 : index
    %c0_101 = arith.constant 0 : index
    %277 = vector.load %arg2[%c384, %c0_101] : memref<608x64xf32, #tpu.memory_space<vmem>>, vector<32x32xf32>
    %cst_102 = arith.constant dense<0.000000e+00> : vector<16x32xf32>
    %278 = tpu.matmul %156, %277, %cst_102 {dimension_numbers = #tpu.dot_dimension_numbers<[1], [0], [0], [1], [0, 0, 1, 1], [], []>} : vector<16x32xf32>, vector<32x32xf32>, vector<16x32xf32> -> vector<16x32xf32>
    %c17 = arith.constant 17 : index
    %c0_103 = arith.constant 0 : index
    %279 = vector.load %arg3[%c17, %c0_103] : memref<32x64xf32, #tpu.memory_space<vmem>>, vector<1x32xf32>
    %280 = vector.broadcast %279 : vector<1x32xf32> to vector<16x32xf32>
    %281 = arith.addf %278, %280 : vector<16x32xf32>
    %c416 = arith.constant 416 : index
    %c0_104 = arith.constant 0 : index
    %282 = vector.load %arg2[%c416, %c0_104] : memref<608x64xf32, #tpu.memory_space<vmem>>, vector<32x32xf32>
    %cst_105 = arith.constant dense<0.000000e+00> : vector<16x32xf32>
    %283 = tpu.matmul %156, %282, %cst_105 {dimension_numbers = #tpu.dot_dimension_numbers<[1], [0], [0], [1], [0, 0, 1, 1], [], []>} : vector<16x32xf32>, vector<32x32xf32>, vector<16x32xf32> -> vector<16x32xf32>
    %c18 = arith.constant 18 : index
    %c0_106 = arith.constant 0 : index
    %284 = vector.load %arg3[%c18, %c0_106] : memref<32x64xf32, #tpu.memory_space<vmem>>, vector<1x32xf32>
    %285 = vector.broadcast %284 : vector<1x32xf32> to vector<16x32xf32>
    %286 = arith.addf %283, %285 : vector<16x32xf32>
    %c448 = arith.constant 448 : index
    %c0_107 = arith.constant 0 : index
    %287 = vector.load %arg2[%c448, %c0_107] : memref<608x64xf32, #tpu.memory_space<vmem>>, vector<32x32xf32>
    %c19 = arith.constant 19 : index
    %c0_108 = arith.constant 0 : index
    %288 = vector.load %arg3[%c19, %c0_108] : memref<32x64xf32, #tpu.memory_space<vmem>>, vector<1x32xf32>
    %289 = vector.broadcast %0 : vector<1x32xf32> to vector<16x32xf32>
    %290 = arith.mulf %281, %289 : vector<16x32xf32>
    %cst_109 = arith.constant dense<0.000000e+00> : vector<16x16xf32>
    %291 = tpu.matmul %276, %290, %cst_109 {dimension_numbers = #tpu.dot_dimension_numbers<[1], [1], [0], [0], [0, 0, 1, 0], [], []>} : vector<16x32xf32>, vector<16x32xf32>, vector<16x16xf32> -> vector<16x16xf32>
    %292 = arith.addf %291, %6 : vector<16x16xf32>
    %cst_110 = arith.constant dense<0xFF800000> : vector<16xf32>
    %293 = vector.multi_reduction <maximumf>, %292, %cst_110 [1] : vector<16x16xf32> to vector<16xf32>
    %294 = vector.shape_cast %293 : vector<16xf32> to vector<16x1xf32>
    %295 = vector.broadcast %294 : vector<16x1xf32> to vector<16x16xf32>
    %296 = arith.subf %292, %295 : vector<16x16xf32>
    %297 = math.exp %296 : vector<16x16xf32>
    %cst_111 = arith.constant dense<0.000000e+00> : vector<16xf32>
    %298 = vector.multi_reduction <add>, %297, %cst_111 [1] : vector<16x16xf32> to vector<16xf32>
    %299 = vector.shape_cast %298 : vector<16xf32> to vector<16x1xf32>
    %300 = tpu.reciprocal %299 {approx = true} : vector<16x1xf32> -> vector<16x1xf32>
    %301 = vector.broadcast %300 : vector<16x1xf32> to vector<16x16xf32>
    %302 = arith.mulf %297, %301 : vector<16x16xf32>
    %303 = vector.broadcast %0 : vector<1x32xf32> to vector<16x32xf32>
    %304 = arith.mulf %286, %303 : vector<16x32xf32>
    %cst_112 = arith.constant dense<0.000000e+00> : vector<16x32xf32>
    %305 = tpu.matmul %302, %304, %cst_112 {dimension_numbers = #tpu.dot_dimension_numbers<[1], [0], [0], [1], [0, 0, 1, 1], [], []>} : vector<16x16xf32>, vector<16x32xf32>, vector<16x32xf32> -> vector<16x32xf32>
    %306 = vector.broadcast %1 : vector<1x32xf32> to vector<16x32xf32>
    %307 = arith.mulf %281, %306 : vector<16x32xf32>
    %cst_113 = arith.constant dense<0.000000e+00> : vector<16x16xf32>
    %308 = tpu.matmul %276, %307, %cst_113 {dimension_numbers = #tpu.dot_dimension_numbers<[1], [1], [0], [0], [0, 0, 1, 0], [], []>} : vector<16x32xf32>, vector<16x32xf32>, vector<16x16xf32> -> vector<16x16xf32>
    %309 = arith.addf %308, %6 : vector<16x16xf32>
    %cst_114 = arith.constant dense<0xFF800000> : vector<16xf32>
    %310 = vector.multi_reduction <maximumf>, %309, %cst_114 [1] : vector<16x16xf32> to vector<16xf32>
    %311 = vector.shape_cast %310 : vector<16xf32> to vector<16x1xf32>
    %312 = vector.broadcast %311 : vector<16x1xf32> to vector<16x16xf32>
    %313 = arith.subf %309, %312 : vector<16x16xf32>
    %314 = math.exp %313 : vector<16x16xf32>
    %cst_115 = arith.constant dense<0.000000e+00> : vector<16xf32>
    %315 = vector.multi_reduction <add>, %314, %cst_115 [1] : vector<16x16xf32> to vector<16xf32>
    %316 = vector.shape_cast %315 : vector<16xf32> to vector<16x1xf32>
    %317 = tpu.reciprocal %316 {approx = true} : vector<16x1xf32> -> vector<16x1xf32>
    %318 = vector.broadcast %317 : vector<16x1xf32> to vector<16x16xf32>
    %319 = arith.mulf %314, %318 : vector<16x16xf32>
    %320 = vector.broadcast %1 : vector<1x32xf32> to vector<16x32xf32>
    %321 = arith.mulf %286, %320 : vector<16x32xf32>
    %cst_116 = arith.constant dense<0.000000e+00> : vector<16x32xf32>
    %322 = tpu.matmul %319, %321, %cst_116 {dimension_numbers = #tpu.dot_dimension_numbers<[1], [0], [0], [1], [0, 0, 1, 1], [], []>} : vector<16x16xf32>, vector<16x32xf32>, vector<16x32xf32> -> vector<16x32xf32>
    %323 = arith.addf %305, %322 : vector<16x32xf32>
    %324 = vector.broadcast %2 : vector<1x32xf32> to vector<16x32xf32>
    %325 = arith.mulf %281, %324 : vector<16x32xf32>
    %cst_117 = arith.constant dense<0.000000e+00> : vector<16x16xf32>
    %326 = tpu.matmul %276, %325, %cst_117 {dimension_numbers = #tpu.dot_dimension_numbers<[1], [1], [0], [0], [0, 0, 1, 0], [], []>} : vector<16x32xf32>, vector<16x32xf32>, vector<16x16xf32> -> vector<16x16xf32>
    %327 = arith.addf %326, %6 : vector<16x16xf32>
    %cst_118 = arith.constant dense<0xFF800000> : vector<16xf32>
    %328 = vector.multi_reduction <maximumf>, %327, %cst_118 [1] : vector<16x16xf32> to vector<16xf32>
    %329 = vector.shape_cast %328 : vector<16xf32> to vector<16x1xf32>
    %330 = vector.broadcast %329 : vector<16x1xf32> to vector<16x16xf32>
    %331 = arith.subf %327, %330 : vector<16x16xf32>
    %332 = math.exp %331 : vector<16x16xf32>
    %cst_119 = arith.constant dense<0.000000e+00> : vector<16xf32>
    %333 = vector.multi_reduction <add>, %332, %cst_119 [1] : vector<16x16xf32> to vector<16xf32>
    %334 = vector.shape_cast %333 : vector<16xf32> to vector<16x1xf32>
    %335 = tpu.reciprocal %334 {approx = true} : vector<16x1xf32> -> vector<16x1xf32>
    %336 = vector.broadcast %335 : vector<16x1xf32> to vector<16x16xf32>
    %337 = arith.mulf %332, %336 : vector<16x16xf32>
    %338 = vector.broadcast %2 : vector<1x32xf32> to vector<16x32xf32>
    %339 = arith.mulf %286, %338 : vector<16x32xf32>
    %cst_120 = arith.constant dense<0.000000e+00> : vector<16x32xf32>
    %340 = tpu.matmul %337, %339, %cst_120 {dimension_numbers = #tpu.dot_dimension_numbers<[1], [0], [0], [1], [0, 0, 1, 1], [], []>} : vector<16x16xf32>, vector<16x32xf32>, vector<16x32xf32> -> vector<16x32xf32>
    %341 = arith.addf %323, %340 : vector<16x32xf32>
    %342 = vector.broadcast %3 : vector<1x32xf32> to vector<16x32xf32>
    %343 = arith.mulf %281, %342 : vector<16x32xf32>
    %cst_121 = arith.constant dense<0.000000e+00> : vector<16x16xf32>
    %344 = tpu.matmul %276, %343, %cst_121 {dimension_numbers = #tpu.dot_dimension_numbers<[1], [1], [0], [0], [0, 0, 1, 0], [], []>} : vector<16x32xf32>, vector<16x32xf32>, vector<16x16xf32> -> vector<16x16xf32>
    %345 = arith.addf %344, %6 : vector<16x16xf32>
    %cst_122 = arith.constant dense<0xFF800000> : vector<16xf32>
    %346 = vector.multi_reduction <maximumf>, %345, %cst_122 [1] : vector<16x16xf32> to vector<16xf32>
    %347 = vector.shape_cast %346 : vector<16xf32> to vector<16x1xf32>
    %348 = vector.broadcast %347 : vector<16x1xf32> to vector<16x16xf32>
    %349 = arith.subf %345, %348 : vector<16x16xf32>
    %350 = math.exp %349 : vector<16x16xf32>
    %cst_123 = arith.constant dense<0.000000e+00> : vector<16xf32>
    %351 = vector.multi_reduction <add>, %350, %cst_123 [1] : vector<16x16xf32> to vector<16xf32>
    %352 = vector.shape_cast %351 : vector<16xf32> to vector<16x1xf32>
    %353 = tpu.reciprocal %352 {approx = true} : vector<16x1xf32> -> vector<16x1xf32>
    %354 = vector.broadcast %353 : vector<16x1xf32> to vector<16x16xf32>
    %355 = arith.mulf %350, %354 : vector<16x16xf32>
    %356 = vector.broadcast %3 : vector<1x32xf32> to vector<16x32xf32>
    %357 = arith.mulf %286, %356 : vector<16x32xf32>
    %cst_124 = arith.constant dense<0.000000e+00> : vector<16x32xf32>
    %358 = tpu.matmul %355, %357, %cst_124 {dimension_numbers = #tpu.dot_dimension_numbers<[1], [0], [0], [1], [0, 0, 1, 1], [], []>} : vector<16x16xf32>, vector<16x32xf32>, vector<16x32xf32> -> vector<16x32xf32>
    %359 = arith.addf %341, %358 : vector<16x32xf32>
    %cst_125 = arith.constant dense<0.000000e+00> : vector<16x32xf32>
    %360 = tpu.matmul %359, %287, %cst_125 {dimension_numbers = #tpu.dot_dimension_numbers<[1], [0], [0], [1], [0, 0, 1, 1], [], []>} : vector<16x32xf32>, vector<32x32xf32>, vector<16x32xf32> -> vector<16x32xf32>
    %361 = vector.broadcast %288 : vector<1x32xf32> to vector<16x32xf32>
    %362 = arith.addf %360, %361 : vector<16x32xf32>
    %363 = arith.addf %271, %362 : vector<16x32xf32>
    %cst_126 = arith.constant dense<0.000000e+00> : vector<16xf32>
    %364 = vector.multi_reduction <add>, %363, %cst_126 [1] : vector<16x32xf32> to vector<16xf32>
    %365 = vector.shape_cast %364 : vector<16xf32> to vector<16x1xf32>
    %cst_127 = arith.constant 3.200000e+01 : f32
    %366 = vector.broadcast %cst_127 : f32 to vector<16x1xf32>
    %367 = arith.divf %365, %366 : vector<16x1xf32>
    %368 = vector.broadcast %367 : vector<16x1xf32> to vector<16x32xf32>
    %369 = arith.subf %363, %368 : vector<16x32xf32>
    %370 = arith.mulf %369, %369 : vector<16x32xf32>
    %cst_128 = arith.constant dense<0.000000e+00> : vector<16xf32>
    %371 = vector.multi_reduction <add>, %370, %cst_128 [1] : vector<16x32xf32> to vector<16xf32>
    %372 = vector.shape_cast %371 : vector<16xf32> to vector<16x1xf32>
    %cst_129 = arith.constant 3.200000e+01 : f32
    %373 = vector.broadcast %cst_129 : f32 to vector<16x1xf32>
    %374 = arith.divf %372, %373 : vector<16x1xf32>
    %cst_130 = arith.constant 9.99999974E-6 : f32
    %375 = vector.broadcast %cst_130 : f32 to vector<16x1xf32>
    %376 = arith.addf %374, %375 : vector<16x1xf32>
    %377 = math.rsqrt %376 : vector<16x1xf32>
    %378 = vector.broadcast %377 : vector<16x1xf32> to vector<16x32xf32>
    %379 = arith.mulf %369, %378 : vector<16x32xf32>
    %c20 = arith.constant 20 : index
    %c0_131 = arith.constant 0 : index
    %380 = vector.load %arg3[%c20, %c0_131] : memref<32x64xf32, #tpu.memory_space<vmem>>, vector<1x32xf32>
    %381 = vector.broadcast %380 : vector<1x32xf32> to vector<16x32xf32>
    %382 = arith.mulf %379, %381 : vector<16x32xf32>
    %c21 = arith.constant 21 : index
    %c0_132 = arith.constant 0 : index
    %383 = vector.load %arg3[%c21, %c0_132] : memref<32x64xf32, #tpu.memory_space<vmem>>, vector<1x32xf32>
    %384 = vector.broadcast %383 : vector<1x32xf32> to vector<16x32xf32>
    %385 = arith.addf %382, %384 : vector<16x32xf32>
    %c480 = arith.constant 480 : index
    %c0_133 = arith.constant 0 : index
    %386 = vector.load %arg2[%c480, %c0_133] : memref<608x64xf32, #tpu.memory_space<vmem>>, vector<32x64xf32>
    %cst_134 = arith.constant dense<0.000000e+00> : vector<16x64xf32>
    %387 = tpu.matmul %385, %386, %cst_134 {dimension_numbers = #tpu.dot_dimension_numbers<[1], [0], [0], [1], [0, 0, 1, 1], [], []>} : vector<16x32xf32>, vector<32x64xf32>, vector<16x64xf32> -> vector<16x64xf32>
    %c22 = arith.constant 22 : index
    %c0_135 = arith.constant 0 : index
    %388 = vector.load %arg3[%c22, %c0_135] : memref<32x64xf32, #tpu.memory_space<vmem>>, vector<1x64xf32>
    %389 = vector.broadcast %388 : vector<1x64xf32> to vector<16x64xf32>
    %390 = arith.addf %387, %389 : vector<16x64xf32>
    %cst_136 = arith.constant 0.000000e+00 : f32
    %391 = vector.broadcast %cst_136 : f32 to vector<16x64xf32>
    %392 = arith.maximumf %390, %391 : vector<16x64xf32>
    %c512 = arith.constant 512 : index
    %c0_137 = arith.constant 0 : index
    %393 = vector.load %arg2[%c512, %c0_137] : memref<608x64xf32, #tpu.memory_space<vmem>>, vector<64x32xf32>
    %cst_138 = arith.constant dense<0.000000e+00> : vector<16x32xf32>
    %394 = tpu.matmul %392, %393, %cst_138 {dimension_numbers = #tpu.dot_dimension_numbers<[1], [0], [0], [1], [0, 0, 1, 1], [], []>} : vector<16x64xf32>, vector<64x32xf32>, vector<16x32xf32> -> vector<16x32xf32>
    %395 = arith.addf %385, %394 : vector<16x32xf32>
    %c23 = arith.constant 23 : index
    %c0_139 = arith.constant 0 : index
    %396 = vector.load %arg3[%c23, %c0_139] : memref<32x64xf32, #tpu.memory_space<vmem>>, vector<1x32xf32>
    %397 = vector.broadcast %396 : vector<1x32xf32> to vector<16x32xf32>
    %398 = arith.addf %395, %397 : vector<16x32xf32>
    %cst_140 = arith.constant dense<0.000000e+00> : vector<16xf32>
    %399 = vector.multi_reduction <add>, %398, %cst_140 [1] : vector<16x32xf32> to vector<16xf32>
    %400 = vector.shape_cast %399 : vector<16xf32> to vector<16x1xf32>
    %cst_141 = arith.constant 3.200000e+01 : f32
    %401 = vector.broadcast %cst_141 : f32 to vector<16x1xf32>
    %402 = arith.divf %400, %401 : vector<16x1xf32>
    %403 = vector.broadcast %402 : vector<16x1xf32> to vector<16x32xf32>
    %404 = arith.subf %398, %403 : vector<16x32xf32>
    %405 = arith.mulf %404, %404 : vector<16x32xf32>
    %cst_142 = arith.constant dense<0.000000e+00> : vector<16xf32>
    %406 = vector.multi_reduction <add>, %405, %cst_142 [1] : vector<16x32xf32> to vector<16xf32>
    %407 = vector.shape_cast %406 : vector<16xf32> to vector<16x1xf32>
    %cst_143 = arith.constant 3.200000e+01 : f32
    %408 = vector.broadcast %cst_143 : f32 to vector<16x1xf32>
    %409 = arith.divf %407, %408 : vector<16x1xf32>
    %cst_144 = arith.constant 9.99999974E-6 : f32
    %410 = vector.broadcast %cst_144 : f32 to vector<16x1xf32>
    %411 = arith.addf %409, %410 : vector<16x1xf32>
    %412 = math.rsqrt %411 : vector<16x1xf32>
    %413 = vector.broadcast %412 : vector<16x1xf32> to vector<16x32xf32>
    %414 = arith.mulf %404, %413 : vector<16x32xf32>
    %c24 = arith.constant 24 : index
    %c0_145 = arith.constant 0 : index
    %415 = vector.load %arg3[%c24, %c0_145] : memref<32x64xf32, #tpu.memory_space<vmem>>, vector<1x32xf32>
    %416 = vector.broadcast %415 : vector<1x32xf32> to vector<16x32xf32>
    %417 = arith.mulf %414, %416 : vector<16x32xf32>
    %c25 = arith.constant 25 : index
    %c0_146 = arith.constant 0 : index
    %418 = vector.load %arg3[%c25, %c0_146] : memref<32x64xf32, #tpu.memory_space<vmem>>, vector<1x32xf32>
    %419 = vector.broadcast %418 : vector<1x32xf32> to vector<16x32xf32>
    %420 = arith.addf %417, %419 : vector<16x32xf32>
    %c576 = arith.constant 576 : index
    %c0_147 = arith.constant 0 : index
    %421 = vector.load %arg2[%c576, %c0_147] : memref<608x64xf32, #tpu.memory_space<vmem>>, vector<32x32xf32>
    %cst_148 = arith.constant dense<0.000000e+00> : vector<16x32xf32>
    %422 = tpu.matmul %420, %421, %cst_148 {dimension_numbers = #tpu.dot_dimension_numbers<[1], [0], [0], [1], [0, 0, 1, 1], [], []>} : vector<16x32xf32>, vector<32x32xf32>, vector<16x32xf32> -> vector<16x32xf32>
    %c26 = arith.constant 26 : index
    %c0_149 = arith.constant 0 : index
    %423 = vector.load %arg3[%c26, %c0_149] : memref<32x64xf32, #tpu.memory_space<vmem>>, vector<1x32xf32>
    %424 = vector.broadcast %423 : vector<1x32xf32> to vector<16x32xf32>
    %425 = arith.addf %422, %424 : vector<16x32xf32>
    %c0_150 = arith.constant 0 : index
    %c0_151 = arith.constant 0 : index
    %426 = vector.load %arg5[%c0_150, %c0_151] : memref<16x32xf32, #tpu.memory_space<vmem>>, vector<16x32xf32>
    tpu.vector_store %arg5[%c0_150, %c0_151], %425 {strides = array<i32>} : memref<16x32xf32, #tpu.memory_space<vmem>>, vector<16x32xf32>,
    return
  }
}

</mosaic_0001>

<llo_original>
// kernel: model_forward.1
$region0: #{model_forward.1}
  #allocation0 [shape = 'u32[]', space=smem, size = 0x4, offset = 0x4, fixed_abs, tag = 'smem constant byte address 0x4 - core index']
  #allocation1 [shape = 'u32[144,128]{1,0:T(1,128)}', space=vmem, size = 0x12000, scoped, tag = 'internal scratch']
  %s0 = inlined_call_operand.vmem [shape: f32[16,32], index: 0, kind: input, shape index: {}]
  %s1 = inlined_call_operand.vmem [shape: f32[16,32], index: 1, kind: input, shape index: {}]
  %s2 = inlined_call_operand.vmem [shape: f32[608,64], index: 2, kind: input, shape index: {}]
  %s3 = inlined_call_operand.vmem [shape: f32[32,64], index: 3, kind: input, shape index: {}]
  %s4 = inlined_call_operand.vmem [shape: f32[48,16], index: 4, kind: input, shape index: {}]
  %s5 = inlined_call_operand.hbm [shape: f32[16,32], index: 5, kind: output, shape index: {}]
  %s6 = sld [smem:[#allocation0]]
  $region30: #{model_forward.1} parent=0
    _
  %s8 = ssub.s32 1, %s6
  %s9 = scalar_select 0, %s8, %s6
  $region1: #{model_forward.1} parent=0
    #allocation2 [shape = 'u8[8192]{0}', space=vmem, size = 0x2000, scoped, tag = 'output window, operand 0, single buffered']
    #allocation3 [shape = 's32[1]{0}', space=sflag, size = 0x4, scoped, tag = 'scoped memory for model_forward.1']
    %10 = vsyncpa [#allocation3], 0
    // Predicated region
    $region2: #{model_forward.1} parent=1 // pred_check
      _
    $region3: #{model_forward.1} parent=1 // pred_check_branch
      %12 = sbr.rel (0) target = $region5
    $region4: #{model_forward.1} parent=1 // pred_region
      _
    $region5: #{model_forward.1} parent=1 // pred_fallthru
      _
    // Predicated region
    $region6: #{model_forward.1} parent=1 // pred_check
      _
    $region7: #{model_forward.1} parent=1 // pred_check_branch
      %14 = sbr.rel (0) target = $region9
    $region8: #{model_forward.1} parent=1 // pred_region
      _
    $region9: #{model_forward.1} parent=1 // pred_fallthru
      _
    // Predicated region
    $region10: #{model_forward.1} parent=1 // pred_check
      _
    $region11: #{model_forward.1} parent=1 // pred_check_branch
      %16 = sbr.rel (0) target = $region13
    $region12: #{model_forward.1} parent=1 // pred_region
      _
    $region13: #{model_forward.1} parent=1 // pred_fallthru
      _
    // Predicated region
    $region14: #{model_forward.1} parent=1 // pred_check
      _
    $region15: #{model_forward.1} parent=1 // pred_check_branch
      %18 = sbr.rel (0) target = $region17
    $region16: #{model_forward.1} parent=1 // pred_region
      _
    $region17: #{model_forward.1} parent=1 // pred_fallthru
      _
    // Predicated region
    $region18: #{model_forward.1} parent=1 // pred_check
      _
    $region19: #{model_forward.1} parent=1 // pred_check_branch
      %20 = sbr.rel (0) target = $region21
    $region20: #{model_forward.1} parent=1 // pred_region
      _
    $region21: #{model_forward.1} parent=1 // pred_fallthru
      _
    %v21 = vld [vmem:[%s3 + $0x1b] sm:$0x1]
    %v22 = vld [vmem:[%s3 + $0x1c] sm:$0x1]
    %v23 = vld [vmem:[%s3 + $0x1d] sm:$0x1]
    %v24 = vld [vmem:[%s3 + $0x1e] sm:$0x1]
    %v25 = vld [vmem:[%s4] sm:$0xff]
    %v26 = vld [vmem:[%s4 + $0x8] sm:$0xff]
    %v27 = vld [vmem:[%s4 + $0x10] sm:$0xff]
    %v28 = vld [vmem:[%s4 + $0x18] sm:$0xff]
    %v29 = vld [vmem:[%s4 + $0x20] sm:$0xff]
    %v30 = vld [vmem:[%s4 + $0x28] sm:$0xff]
    %v31 = vld [vmem:[%s0] sm:$0xff]
    %v32 = vld [vmem:[%s0 + $0x8] sm:$0xff]
    %v33 = vld [vmem:[%s2] sm:$0xff]
    %v34 = vld [vmem:[%s2 + $0x8] sm:$0xff]
    %v35 = vld [vmem:[%s2 + $0x10] sm:$0xff]
    %v36 = vld [vmem:[%s2 + $0x18] sm:$0xff]
    %v37 = vld [vmem:[%s3] sm:$0x1]
    %v38 = vlaneseq
    %v39 = vshrl.u32 %v38, 7
    %v40 = vsub.s32 0, %v39
    %v41 = vrot.slane %v37, %v40
    %vm42 = vcmask 261120
    %v44 = vsel %vm42, %v31, 0
    %v47 = vsel %vm42, %v32, 0
    %49 = vmatprep.subr.mxu0 0.0
    %50 = vmatpush1.msra.mxu0 %v33
    %51 = vmatprep.subr.mxu0 0.0
    %52 = vmatpush1.msra.mxu0 %v34
    %53 = vmatprep.subr.mxu0 0.0
    %54 = vmatpush1.msra.mxu0 %v35
    %55 = vmatprep.subr.mxu0 0.0
    %56 = vmatpush1.msra.mxu0 %v36
    %57 = vmatprep.subr.mxu0 0.0
    %58 = vmatpush1.msra.mxu0 0.0
    %59 = vmatprep.subr.mxu0 0.0
    %60 = vmatpush1.msra.mxu0 0.0
    %61 = vmatprep.subr.mxu0 0.0
    %62 = vmatpush1.msra.mxu0 0.0
    %63 = vmatprep.subr.mxu0 0.0
    %64 = vmatpush1.msra.mxu0 0.0
    %65 = vmatprep.subr.mxu0 0.0
    %66 = vmatpush1.msra.mxu0 0.0
    %67 = vmatprep.subr.mxu0 0.0
    %68 = vmatpush1.msra.mxu0 0.0
    %69 = vmatprep.subr.mxu0 0.0
    %70 = vmatpush1.msra.mxu0 0.0
    %71 = vmatprep.subr.mxu0 0.0
    %72 = vmatpush1.msra.mxu0 0.0
    %73 = vmatprep.subr.mxu0 0.0
    %74 = vmatpush1.msra.mxu0 0.0
    %75 = vmatprep.subr.mxu0 0.0
    %76 = vmatpush1.msra.mxu0 0.0
    %77 = vmatprep.subr.mxu0 0.0
    %78 = vmatpush1.msra.mxu0 0.0
    %79 = vmatprep.subr.mxu0 0.0
    %80 = vmatpush1.msra.mxu0 0.0
    %81 = vmatprep.subr.mxu0 0.0
    %82 = vmatpush1.msra.mxu0 0.0
    %83 = vmatprep.subr.mxu0 0.0
    %84 = vmatpush1.msra.mxu0 0.0
    %85 = vmatprep.subr.mxu0 0.0
    %86 = vmatpush1.msra.mxu0 0.0
    %87 = vmatprep.subr.mxu0 0.0
    %88 = vmatpush1.msra.mxu0 0.0
    %89 = vmatprep.subr.mxu0 0.0
    %90 = vmatpush1.msra.mxu0 0.0
    %91 = vmatprep.subr.mxu0 0.0
    %92 = vmatpush1.msra.mxu0 0.0
    %93 = vmatprep.subr.mxu0 0.0
    %94 = vmatpush1.msra.mxu0 0.0
    %95 = vmatprep.subr.mxu0 0.0
    %96 = vmatpush1.msra.mxu0 0.0
    %97 = vmatprep.subr.mxu0 0.0
    %98 = vmatpush1.msra.mxu0 0.0
    %99 = vmatprep.subr.mxu0 0.0
    %100 = vmatpush1.msra.mxu0 0.0
    %101 = vmatprep.subr.mxu0 0.0
    %102 = vmatpush1.msra.mxu0 0.0
    %103 = vmatprep.subr.mxu0 0.0
    %104 = vmatpush1.msra.mxu0 0.0
    %105 = vmatprep.subr.mxu0 0.0
    %106 = vmatpush1.msra.mxu0 0.0
    %107 = vmatprep.subr.mxu0 0.0
    %108 = vmatpush1.msra.mxu0 0.0
    %109 = vmatprep.subr.mxu0 0.0
    %110 = vmatpush1.msra.mxu0 0.0
    %111 = vmatprep.subr.mxu0 0.0
    %112 = vmatpush1.msra.mxu0 0.0
    %113 = vmatprep.mubr.f32.mxu0 0.0
    %114 = vmatmul.mubr.f32.gmra.mrb[0].mxu0 %v44
    %v115 = vpop.f32.mrb[0].mxu0
    %v116 = vadd.f32 %v41, %v115
    %v117 = vpop.f32.mrb[0].mxu0
    %118 = vmatprep.mubr.f32.mxu0 0.0
    %119 = vmatmul.mubr.f32.gmra.mrb[0].mxu0 %v47
    %v120 = vpop.f32.mrb[0].mxu0
    %v121 = vadd.f32 %v41, %v120
    %v122 = vpop.f32.mrb[0].mxu0
    %123 = vdwg.mxu0
    %v124 = vld [vmem:[%s2 + $0x20] sm:$0xff]
    %v125 = vld [vmem:[%s2 + $0x28] sm:$0xff]
    %v126 = vld [vmem:[%s2 + $0x30] sm:$0xff]
    %v127 = vld [vmem:[%s2 + $0x38] sm:$0xff]
    %v128 = vld [vmem:[%s3 + $0x1] sm:$0x1]
    %v129 = vlaneseq
    %v130 = vshrl.u32 %v129, 7
    %v131 = vsub.s32 0, %v130
    %v132 = vrot.slane %v128, %v131
    %133 = vmatprep.subr.mxu0 0.0
    %134 = vmatpush1.msra.mxu0 %v124
    %135 = vmatprep.subr.mxu0 0.0
    %136 = vmatpush1.msra.mxu0 %v125
    %137 = vmatprep.subr.mxu0 0.0
    %138 = vmatpush1.msra.mxu0 %v126
    %139 = vmatprep.subr.mxu0 0.0
    %140 = vmatpush1.msra.mxu0 %v127
    %141 = vmatprep.subr.mxu0 0.0
    %142 = vmatpush1.msra.mxu0 0.0
    %143 = vmatprep.subr.mxu0 0.0
    %144 = vmatpush1.msra.mxu0 0.0
    %145 = vmatprep.subr.mxu0 0.0
    %146 = vmatpush1.msra.mxu0 0.0
    %147 = vmatprep.subr.mxu0 0.0
    %148 = vmatpush1.msra.mxu0 0.0
    %149 = vmatprep.subr.mxu0 0.0
    %150 = vmatpush1.msra.mxu0 0.0
    %151 = vmatprep.subr.mxu0 0.0
    %152 = vmatpush1.msra.mxu0 0.0
    %153 = vmatprep.subr.mxu0 0.0
    %154 = vmatpush1.msra.mxu0 0.0
    %155 = vmatprep.subr.mxu0 0.0
    %156 = vmatpush1.msra.mxu0 0.0
    %157 = vmatprep.subr.mxu0 0.0
    %158 = vmatpush1.msra.mxu0 0.0
    %159 = vmatprep.subr.mxu0 0.0
    %160 = vmatpush1.msra.mxu0 0.0
    %161 = vmatprep.subr.mxu0 0.0
    %162 = vmatpush1.msra.mxu0 0.0
    %163 = vmatprep.subr.mxu0 0.0
    %164 = vmatpush1.msra.mxu0 0.0
    %165 = vmatprep.subr.mxu0 0.0
    %166 = vmatpush1.msra.mxu0 0.0
    %167 = vmatprep.subr.mxu0 0.0
    %168 = vmatpush1.msra.mxu0 0.0
    %169 = vmatprep.subr.mxu0 0.0
    %170 = vmatpush1.msra.mxu0 0.0
    %171 = vmatprep.subr.mxu0 0.0
    %172 = vmatpush1.msra.mxu0 0.0
    %173 = vmatprep.subr.mxu0 0.0
    %174 = vmatpush1.msra.mxu0 0.0
    %175 = vmatprep.subr.mxu0 0.0
    %176 = vmatpush1.msra.mxu0 0.0
    %177 = vmatprep.subr.mxu0 0.0
    %178 = vmatpush1.msra.mxu0 0.0
    %179 = vmatprep.subr.mxu0 0.0
    %180 = vmatpush1.msra.mxu0 0.0
    %181 = vmatprep.subr.mxu0 0.0
    %182 = vmatpush1.msra.mxu0 0.0
    %183 = vmatprep.subr.mxu0 0.0
    %184 = vmatpush1.msra.mxu0 0.0
    %185 = vmatprep.subr.mxu0 0.0
    %186 = vmatpush1.msra.mxu0 0.0
    %187 = vmatprep.subr.mxu0 0.0
    %188 = vmatpush1.msra.mxu0 0.0
    %189 = vmatprep.subr.mxu0 0.0
    %190 = vmatpush1.msra.mxu0 0.0
    %191 = vmatprep.subr.mxu0 0.0
    %192 = vmatpush1.msra.mxu0 0.0
    %193 = vmatprep.subr.mxu0 0.0
    %194 = vmatpush1.msra.mxu0 0.0
    %195 = vmatprep.subr.mxu0 0.0
    %196 = vmatpush1.msra.mxu0 0.0
    %197 = vmatprep.mubr.f32.mxu0 0.0
    %198 = vmatmul.mubr.f32.gmra.mrb[0].mxu0 %v44
    %v199 = vpop.f32.mrb[0].mxu0
    %v200 = vadd.f32 %v132, %v199
    %v201 = vpop.f32.mrb[0].mxu0
    %202 = vmatprep.mubr.f32.mxu0 0.0
    %203 = vmatmul.mubr.f32.gmra.mrb[0].mxu0 %v47
    %v204 = vpop.f32.mrb[0].mxu0
    %v205 = vadd.f32 %v132, %v204
    %v206 = vpop.f32.mrb[0].mxu0
    %207 = vdwg.mxu0
    %v208 = vld [vmem:[%s2 + $0x40] sm:$0xff]
    %v209 = vld [vmem:[%s2 + $0x48] sm:$0xff]
    %v210 = vld [vmem:[%s2 + $0x50] sm:$0xff]
    %v211 = vld [vmem:[%s2 + $0x58] sm:$0xff]
    %v212 = vld [vmem:[%s3 + $0x2] sm:$0x1]
    %v213 = vlaneseq
    %v214 = vshrl.u32 %v213, 7
    %v215 = vsub.s32 0, %v214
    %v216 = vrot.slane %v212, %v215
    %217 = vmatprep.subr.mxu0 0.0
    %218 = vmatpush1.msra.mxu0 %v208
    %219 = vmatprep.subr.mxu0 0.0
    %220 = vmatpush1.msra.mxu0 %v209
    %221 = vmatprep.subr.mxu0 0.0
    %222 = vmatpush1.msra.mxu0 %v210
    %223 = vmatprep.subr.mxu0 0.0
    %224 = vmatpush1.msra.mxu0 %v211
    %225 = vmatprep.subr.mxu0 0.0
    %226 = vmatpush1.msra.mxu0 0.0
    %227 = vmatprep.subr.mxu0 0.0
    %228 = vmatpush1.msra.mxu0 0.0
    %229 = vmatprep.subr.mxu0 0.0
    %230 = vmatpush1.msra.mxu0 0.0
    %231 = vmatprep.subr.mxu0 0.0
    %232 = vmatpush1.msra.mxu0 0.0
    %233 = vmatprep.subr.mxu0 0.0
    %234 = vmatpush1.msra.mxu0 0.0
    %235 = vmatprep.subr.mxu0 0.0
    %236 = vmatpush1.msra.mxu0 0.0
    %237 = vmatprep.subr.mxu0 0.0
    %238 = vmatpush1.msra.mxu0 0.0
    %239 = vmatprep.subr.mxu0 0.0
    %240 = vmatpush1.msra.mxu0 0.0
    %241 = vmatprep.subr.mxu0 0.0
    %242 = vmatpush1.msra.mxu0 0.0
    %243 = vmatprep.subr.mxu0 0.0
    %244 = vmatpush1.msra.mxu0 0.0
    %245 = vmatprep.subr.mxu0 0.0
    %246 = vmatpush1.msra.mxu0 0.0
    %247 = vmatprep.subr.mxu0 0.0
    %248 = vmatpush1.msra.mxu0 0.0
    %249 = vmatprep.subr.mxu0 0.0
    %250 = vmatpush1.msra.mxu0 0.0
    %251 = vmatprep.subr.mxu0 0.0
    %252 = vmatpush1.msra.mxu0 0.0
    %253 = vmatprep.subr.mxu0 0.0
    %254 = vmatpush1.msra.mxu0 0.0
    %255 = vmatprep.subr.mxu0 0.0
    %256 = vmatpush1.msra.mxu0 0.0
    %257 = vmatprep.subr.mxu0 0.0
    %258 = vmatpush1.msra.mxu0 0.0
    %259 = vmatprep.subr.mxu0 0.0
    %260 = vmatpush1.msra.mxu0 0.0
    %261 = vmatprep.subr.mxu0 0.0
    %262 = vmatpush1.msra.mxu0 0.0
    %263 = vmatprep.subr.mxu0 0.0
    %264 = vmatpush1.msra.mxu0 0.0
    %265 = vmatprep.subr.mxu0 0.0
    %266 = vmatpush1.msra.mxu0 0.0
    %267 = vmatprep.subr.mxu0 0.0
    %268 = vmatpush1.msra.mxu0 0.0
    %269 = vmatprep.subr.mxu0 0.0
    %270 = vmatpush1.msra.mxu0 0.0
    %271 = vmatprep.subr.mxu0 0.0
    %272 = vmatpush1.msra.mxu0 0.0
    %273 = vmatprep.subr.mxu0 0.0
    %274 = vmatpush1.msra.mxu0 0.0
    %275 = vmatprep.subr.mxu0 0.0
    %276 = vmatpush1.msra.mxu0 0.0
    %277 = vmatprep.subr.mxu0 0.0
    %278 = vmatpush1.msra.mxu0 0.0
    %279 = vmatprep.subr.mxu0 0.0
    %280 = vmatpush1.msra.mxu0 0.0
    %281 = vmatprep.mubr.f32.mxu0 0.0
    %282 = vmatmul.mubr.f32.gmra.mrb[0].mxu0 %v44
    %v283 = vpop.f32.mrb[0].mxu0
    %v284 = vadd.f32 %v216, %v283
    %v285 = vpop.f32.mrb[0].mxu0
    %286 = vmatprep.mubr.f32.mxu0 0.0
    %287 = vmatmul.mubr.f32.gmra.mrb[0].mxu0 %v47
    %v288 = vpop.f32.mrb[0].mxu0
    %v289 = vadd.f32 %v216, %v288
    %v290 = vpop.f32.mrb[0].mxu0
    %291 = vdwg.mxu0
    %v292 = vld [vmem:[%s2 + $0x60] sm:$0xff]
    %v293 = vld [vmem:[%s2 + $0x68] sm:$0xff]
    %v294 = vld [vmem:[%s2 + $0x70] sm:$0xff]
    %v295 = vld [vmem:[%s2 + $0x78] sm:$0xff]
    %v296 = vld [vmem:[%s3 + $0x3] sm:$0x1]
    %v297 = vlaneseq
    %v298 = vshrl.u32 %v297, 7
    %v299 = vsub.s32 0, %v298
    %v300 = vrot.slane %v21, %v299
    %v301 = vmul.f32 %v200, %v300
    %v302 = vmul.f32 %v205, %v300
    %v304 = vsel %vm42, %v116, 0
    %v307 = vsel %vm42, %v121, 0
    %v310 = vsel %vm42, %v301, 0
    %v313 = vsel %vm42, %v302, 0
    %315 = vmatprep.subr.mxu0 0.0
    %316 = vmatpush1.xpose.msra.mxu0 %v310
    %317 = vmatprep.subr.mxu0 0.0
    %318 = vmatpush1.xpose.msra.mxu0 %v313
    %319 = vmatprep.subr.mxu0 0.0
    %320 = vmatpush1.xpose.msra.mxu0 0.0
    %321 = vmatprep.subr.mxu0 0.0
    %322 = vmatpush1.xpose.msra.mxu0 0.0
    %323 = vmatprep.subr.mxu0 0.0
    %324 = vmatpush1.xpose.msra.mxu0 0.0
    %325 = vmatprep.subr.mxu0 0.0
    %326 = vmatpush1.xpose.msra.mxu0 0.0
    %327 = vmatprep.subr.mxu0 0.0
    %328 = vmatpush1.xpose.msra.mxu0 0.0
    %329 = vmatprep.subr.mxu0 0.0
    %330 = vmatpush1.xpose.msra.mxu0 0.0
    %331 = vmatprep.subr.mxu0 0.0
    %332 = vmatpush1.xpose.msra.mxu0 0.0
    %333 = vmatprep.subr.mxu0 0.0
    %334 = vmatpush1.xpose.msra.mxu0 0.0
    %335 = vmatprep.subr.mxu0 0.0
    %336 = vmatpush1.xpose.msra.mxu0 0.0
    %337 = vmatprep.subr.mxu0 0.0
    %338 = vmatpush1.xpose.msra.mxu0 0.0
    %339 = vmatprep.subr.mxu0 0.0
    %340 = vmatpush1.xpose.msra.mxu0 0.0
    %341 = vmatprep.subr.mxu0 0.0
    %342 = vmatpush1.xpose.msra.mxu0 0.0
    %343 = vmatprep.subr.mxu0 0.0
    %344 = vmatpush1.xpose.msra.mxu0 0.0
    %345 = vmatprep.subr.mxu0 0.0
    %346 = vmatpush1.xpose.msra.mxu0 0.0
    %347 = vmatprep.subr.mxu0 0.0
    %348 = vmatpush1.xpose.msra.mxu0 0.0
    %349 = vmatprep.subr.mxu0 0.0
    %350 = vmatpush1.xpose.msra.mxu0 0.0
    %351 = vmatprep.subr.mxu0 0.0
    %352 = vmatpush1.xpose.msra.mxu0 0.0
    %353 = vmatprep.subr.mxu0 0.0
    %354 = vmatpush1.xpose.msra.mxu0 0.0
    %355 = vmatprep.subr.mxu0 0.0
    %356 = vmatpush1.xpose.msra.mxu0 0.0
    %357 = vmatprep.subr.mxu0 0.0
    %358 = vmatpush1.xpose.msra.mxu0 0.0
    %359 = vmatprep.subr.mxu0 0.0
    %360 = vmatpush1.xpose.msra.mxu0 0.0
    %361 = vmatprep.subr.mxu0 0.0
    %362 = vmatpush1.xpose.msra.mxu0 0.0
    %363 = vmatprep.subr.mxu0 0.0
    %364 = vmatpush1.xpose.msra.mxu0 0.0
    %365 = vmatprep.subr.mxu0 0.0
    %366 = vmatpush1.xpose.msra.mxu0 0.0
    %367 = vmatprep.subr.mxu0 0.0
    %368 = vmatpush1.xpose.msra.mxu0 0.0
    %369 = vmatprep.subr.mxu0 0.0
    %370 = vmatpush1.xpose.msra.mxu0 0.0
    %371 = vmatprep.subr.mxu0 0.0
    %372 = vmatpush1.xpose.msra.mxu0 0.0
    %373 = vmatprep.subr.mxu0 0.0
    %374 = vmatpush1.xpose.msra.mxu0 0.0
    %375 = vmatprep.subr.mxu0 0.0
    %376 = vmatpush1.xpose.msra.mxu0 0.0
    %377 = vmatprep.subr.mxu0 0.0
    %378 = vmatpush1.xpose.msra.mxu0 0.0
    %379 = vmatprep.mubr.f32.mxu0 0.0
    %380 = vmatmul.mubr.f32.gmra.mrb[0].mxu0 %v304
    %v381 = vpop.f32.mrb[0].mxu0
    %v382 = vadd.f32 %v25, %v381
    %v383 = vpop.f32.mrb[0].mxu0
    %384 = vmatprep.mubr.f32.mxu0 0.0
    %385 = vmatmul.mubr.f32.gmra.mrb[0].mxu0 %v307
    %v386 = vpop.f32.mrb[0].mxu0
    %v387 = vadd.f32 %v26, %v386
    %v388 = vpop.f32.mrb[0].mxu0
    %389 = vdwg.mxu0
    %vm390 = vcmask 130048
    %v391 = vsel %vm390, %v382, -inf
    %392 = vmax.xlane.f32.xlu0 %v391
    %v393 = vpop.xlane.xlu0 %392
    %v394 = vsel %vm390, %v387, -inf
    %395 = vmax.xlane.f32.xlu0 %v394
    %v396 = vpop.xlane.xlu0 %395
    %v397 = vsub.f32 %v382, %v393
    %v398 = vsub.f32 %v387, %v396
    %v399 = vmul.f32 %v397, 1.442695
    %v400 = vpow.pop %v399
    %v401 = vmul.f32 %v398, 1.442695
    %v402 = vpow.pop %v401
    %v403 = vsel %vm390, %v400, 0.0
    %404 = vadd.xlane.f32.xlu0 %v403
    %v405 = vpop.xlane.xlu0 %404
    %v406 = vsel %vm390, %v402, 0.0
    %407 = vadd.xlane.f32.xlu0 %v406
    %v408 = vpop.xlane.xlu0 %407
    %v409 = vrcp.pop %v405
    %v410 = vrcp.pop %v408
    %v411 = vmul.f32 %v400, %v409
    %v412 = vmul.f32 %v402, %v410
    %v413 = vmul.f32 %v284, %v300
    %v414 = vmul.f32 %v289, %v300
    %v415 = vlaneseq
    %v416 = vshrl.u32 %v415, 7
    %v417 = vsub.s32 0, %v416
    %v418 = vrot.slane %v22, %v417
    %v419 = vmul.f32 %v200, %v418
    %v420 = vmul.f32 %v205, %v418
    %v422 = vsel %vm42, %v419, 0
    %v425 = vsel %vm42, %v420, 0
    %427 = vmatprep.subr.mxu0 0.0
    %428 = vmatpush1.xpose.msra.mxu0 %v422
    %429 = vmatprep.subr.mxu0 0.0
    %430 = vmatpush1.xpose.msra.mxu0 %v425
    %431 = vmatprep.subr.mxu0 0.0
    %432 = vmatpush1.xpose.msra.mxu0 0.0
    %433 = vmatprep.subr.mxu0 0.0
    %434 = vmatpush1.xpose.msra.mxu0 0.0
    %435 = vmatprep.subr.mxu0 0.0
    %436 = vmatpush1.xpose.msra.mxu0 0.0
    %437 = vmatprep.subr.mxu0 0.0
    %438 = vmatpush1.xpose.msra.mxu0 0.0
    %439 = vmatprep.subr.mxu0 0.0
    %440 = vmatpush1.xpose.msra.mxu0 0.0
    %441 = vmatprep.subr.mxu0 0.0
    %442 = vmatpush1.xpose.msra.mxu0 0.0
    %443 = vmatprep.subr.mxu0 0.0
    %444 = vmatpush1.xpose.msra.mxu0 0.0
    %445 = vmatprep.subr.mxu0 0.0
    %446 = vmatpush1.xpose.msra.mxu0 0.0
    %447 = vmatprep.subr.mxu0 0.0
    %448 = vmatpush1.xpose.msra.mxu0 0.0
    %449 = vmatprep.subr.mxu0 0.0
    %450 = vmatpush1.xpose.msra.mxu0 0.0
    %451 = vmatprep.subr.mxu0 0.0
    %452 = vmatpush1.xpose.msra.mxu0 0.0
    %453 = vmatprep.subr.mxu0 0.0
    %454 = vmatpush1.xpose.msra.mxu0 0.0
    %455 = vmatprep.subr.mxu0 0.0
    %456 = vmatpush1.xpose.msra.mxu0 0.0
    %457 = vmatprep.subr.mxu0 0.0
    %458 = vmatpush1.xpose.msra.mxu0 0.0
    %459 = vmatprep.subr.mxu0 0.0
    %460 = vmatpush1.xpose.msra.mxu0 0.0
    %461 = vmatprep.subr.mxu0 0.0
    %462 = vmatpush1.xpose.msra.mxu0 0.0
    %463 = vmatprep.subr.mxu0 0.0
    %464 = vmatpush1.xpose.msra.mxu0 0.0
    %465 = vmatprep.subr.mxu0 0.0
    %466 = vmatpush1.xpose.msra.mxu0 0.0
    %467 = vmatprep.subr.mxu0 0.0
    %468 = vmatpush1.xpose.msra.mxu0 0.0
    %469 = vmatprep.subr.mxu0 0.0
    %470 = vmatpush1.xpose.msra.mxu0 0.0
    %471 = vmatprep.subr.mxu0 0.0
    %472 = vmatpush1.xpose.msra.mxu0 0.0
    %473 = vmatprep.subr.mxu0 0.0
    %474 = vmatpush1.xpose.msra.mxu0 0.0
    %475 = vmatprep.subr.mxu0 0.0
    %476 = vmatpush1.xpose.msra.mxu0 0.0
    %477 = vmatprep.subr.mxu0 0.0
    %478 = vmatpush1.xpose.msra.mxu0 0.0
    %479 = vmatprep.subr.mxu0 0.0
    %480 = vmatpush1.xpose.msra.mxu0 0.0
    %481 = vmatprep.subr.mxu0 0.0
    %482 = vmatpush1.xpose.msra.mxu0 0.0
    %483 = vmatprep.subr.mxu0 0.0
    %484 = vmatpush1.xpose.msra.mxu0 0.0
    %485 = vmatprep.subr.mxu0 0.0
    %486 = vmatpush1.xpose.msra.mxu0 0.0
    %487 = vmatprep.subr.mxu0 0.0
    %488 = vmatpush1.xpose.msra.mxu0 0.0
    %489 = vmatprep.subr.mxu0 0.0
    %490 = vmatpush1.xpose.msra.mxu0 0.0
    %491 = vmatprep.mubr.f32.mxu0 0.0
    %492 = vmatmul.mubr.f32.gmra.mrb[0].mxu0 %v304
    %v493 = vpop.f32.mrb[0].mxu0
    %v494 = vadd.f32 %v25, %v493
    %v495 = vpop.f32.mrb[0].mxu0
    %496 = vmatprep.mubr.f32.mxu0 0.0
    %497 = vmatmul.mubr.f32.gmra.mrb[0].mxu0 %v307
    %v498 = vpop.f32.mrb[0].mxu0
    %v499 = vadd.f32 %v26, %v498
    %v500 = vpop.f32.mrb[0].mxu0
    %501 = vdwg.mxu0
    %v502 = vsel %vm390, %v494, -inf
    %503 = vmax.xlane.f32.xlu0 %v502
    %v504 = vpop.xlane.xlu0 %503
    %v505 = vsel %vm390, %v499, -inf
    %506 = vmax.xlane.f32.xlu0 %v505
    %v507 = vpop.xlane.xlu0 %506
    %v508 = vsub.f32 %v494, %v504
    %v509 = vsub.f32 %v499, %v507
    %v510 = vmul.f32 %v508, 1.442695
    %v511 = vpow.pop %v510
    %v512 = vmul.f32 %v509, 1.442695
    %v513 = vpow.pop %v512
    %v514 = vsel %vm390, %v511, 0.0
    %515 = vadd.xlane.f32.xlu0 %v514
    %v516 = vpop.xlane.xlu0 %515
    %v517 = vsel %vm390, %v513, 0.0
    %518 = vadd.xlane.f32.xlu0 %v517
    %v519 = vpop.xlane.xlu0 %518
    %v520 = vrcp.pop %v516
    %v521 = vrcp.pop %v519
    %v522 = vmul.f32 %v511, %v520
    %v523 = vmul.f32 %v513, %v521
    %v524 = vmul.f32 %v284, %v418
    %v525 = vmul.f32 %v289, %v418
    %v527 = vsel %vm390, %v522, 0
    %v530 = vsel %vm390, %v523, 0
    %532 = vmatprep.subr.mxu0 0.0
    %533 = vmatpush1.msra.mxu0 %v524
    %534 = vmatprep.subr.mxu0 0.0
    %535 = vmatpush1.msra.mxu0 %v525
    %536 = vmatprep.subr.mxu0 0.0
    %537 = vmatpush1.msra.mxu0 0.0
    %538 = vmatprep.subr.mxu0 0.0
    %539 = vmatpush1.msra.mxu0 0.0
    %540 = vmatprep.subr.mxu0 0.0
    %541 = vmatpush1.msra.mxu0 0.0
    %542 = vmatprep.subr.mxu0 0.0
    %543 = vmatpush1.msra.mxu0 0.0
    %544 = vmatprep.subr.mxu0 0.0
    %545 = vmatpush1.msra.mxu0 0.0
    %546 = vmatprep.subr.mxu0 0.0
    %547 = vmatpush1.msra.mxu0 0.0
    %548 = vmatprep.subr.mxu0 0.0
    %549 = vmatpush1.msra.mxu0 0.0
    %550 = vmatprep.subr.mxu0 0.0
    %551 = vmatpush1.msra.mxu0 0.0
    %552 = vmatprep.subr.mxu0 0.0
    %553 = vmatpush1.msra.mxu0 0.0
    %554 = vmatprep.subr.mxu0 0.0
    %555 = vmatpush1.msra.mxu0 0.0
    %556 = vmatprep.subr.mxu0 0.0
    %557 = vmatpush1.msra.mxu0 0.0
    %558 = vmatprep.subr.mxu0 0.0
    %559 = vmatpush1.msra.mxu0 0.0
    %560 = vmatprep.subr.mxu0 0.0
    %561 = vmatpush1.msra.mxu0 0.0
    %562 = vmatprep.subr.mxu0 0.0
    %563 = vmatpush1.msra.mxu0 0.0
    %564 = vmatprep.subr.mxu0 0.0
    %565 = vmatpush1.msra.mxu0 0.0
    %566 = vmatprep.subr.mxu0 0.0
    %567 = vmatpush1.msra.mxu0 0.0
    %568 = vmatprep.subr.mxu0 0.0
    %569 = vmatpush1.msra.mxu0 0.0
    %570 = vmatprep.subr.mxu0 0.0
    %571 = vmatpush1.msra.mxu0 0.0
    %572 = vmatprep.subr.mxu0 0.0
    %573 = vmatpush1.msra.mxu0 0.0
    %574 = vmatprep.subr.mxu0 0.0
    %575 = vmatpush1.msra.mxu0 0.0
    %576 = vmatprep.subr.mxu0 0.0
    %577 = vmatpush1.msra.mxu0 0.0
    %578 = vmatprep.subr.mxu0 0.0
    %579 = vmatpush1.msra.mxu0 0.0
    %580 = vmatprep.subr.mxu0 0.0
    %581 = vmatpush1.msra.mxu0 0.0
    %582 = vmatprep.subr.mxu0 0.0
    %583 = vmatpush1.msra.mxu0 0.0
    %584 = vmatprep.subr.mxu0 0.0
    %585 = vmatpush1.msra.mxu0 0.0
    %586 = vmatprep.subr.mxu0 0.0
    %587 = vmatpush1.msra.mxu0 0.0
    %588 = vmatprep.subr.mxu0 0.0
    %589 = vmatpush1.msra.mxu0 0.0
    %590 = vmatprep.subr.mxu0 0.0
    %591 = vmatpush1.msra.mxu0 0.0
    %592 = vmatprep.subr.mxu0 0.0
    %593 = vmatpush1.msra.mxu0 0.0
    %594 = vmatprep.subr.mxu0 0.0
    %595 = vmatpush1.msra.mxu0 0.0
    %596 = vmatprep.mubr.f32.mxu0 0.0
    %597 = vmatmul.mubr.f32.gmra.mrb[0].mxu0 %v527
    %v598 = vpop.f32.mrb[0].mxu0
    %v599 = vadd.f32 0.0, %v598
    %v600 = vpop.f32.mrb[0].mxu0
    %601 = vmatprep.mubr.f32.mxu0 0.0
    %602 = vmatmul.mubr.f32.gmra.mrb[0].mxu0 %v530
    %v603 = vpop.f32.mrb[0].mxu0
    %v604 = vadd.f32 0.0, %v603
    %v605 = vpop.f32.mrb[0].mxu0
    %606 = vdwg.mxu0
    %v608 = vsel %vm390, %v411, 0
    %v611 = vsel %vm390, %v412, 0
    %613 = vmatprep.subr.mxu0 0.0
    %614 = vmatpush1.msra.mxu0 %v413
    %615 = vmatprep.subr.mxu0 0.0
    %616 = vmatpush1.msra.mxu0 %v414
    %617 = vmatprep.subr.mxu0 0.0
    %618 = vmatpush1.msra.mxu0 0.0
    %619 = vmatprep.subr.mxu0 0.0
    %620 = vmatpush1.msra.mxu0 0.0
    %621 = vmatprep.subr.mxu0 0.0
    %622 = vmatpush1.msra.mxu0 0.0
    %623 = vmatprep.subr.mxu0 0.0
    %624 = vmatpush1.msra.mxu0 0.0
    %625 = vmatprep.subr.mxu0 0.0
    %626 = vmatpush1.msra.mxu0 0.0
    %627 = vmatprep.subr.mxu0 0.0
    %628 = vmatpush1.msra.mxu0 0.0
    %629 = vmatprep.subr.mxu0 0.0
    %630 = vmatpush1.msra.mxu0 0.0
    %631 = vmatprep.subr.mxu0 0.0
    %632 = vmatpush1.msra.mxu0 0.0
    %633 = vmatprep.subr.mxu0 0.0
    %634 = vmatpush1.msra.mxu0 0.0
    %635 = vmatprep.subr.mxu0 0.0
    %636 = vmatpush1.msra.mxu0 0.0
    %637 = vmatprep.subr.mxu0 0.0
    %638 = vmatpush1.msra.mxu0 0.0
    %639 = vmatprep.subr.mxu0 0.0
    %640 = vmatpush1.msra.mxu0 0.0
    %641 = vmatprep.subr.mxu0 0.0
    %642 = vmatpush1.msra.mxu0 0.0
    %643 = vmatprep.subr.mxu0 0.0
    %644 = vmatpush1.msra.mxu0 0.0
    %645 = vmatprep.subr.mxu0 0.0
    %646 = vmatpush1.msra.mxu0 0.0
    %647 = vmatprep.subr.mxu0 0.0
    %648 = vmatpush1.msra.mxu0 0.0
    %649 = vmatprep.subr.mxu0 0.0
    %650 = vmatpush1.msra.mxu0 0.0
    %651 = vmatprep.subr.mxu0 0.0
    %652 = vmatpush1.msra.mxu0 0.0
    %653 = vmatprep.subr.mxu0 0.0
    %654 = vmatpush1.msra.mxu0 0.0
    %655 = vmatprep.subr.mxu0 0.0
    %656 = vmatpush1.msra.mxu0 0.0
    %657 = vmatprep.subr.mxu0 0.0
    %658 = vmatpush1.msra.mxu0 0.0
    %659 = vmatprep.subr.mxu0 0.0
    %660 = vmatpush1.msra.mxu0 0.0
    %661 = vmatprep.subr.mxu0 0.0
    %662 = vmatpush1.msra.mxu0 0.0
    %663 = vmatprep.subr.mxu0 0.0
    %664 = vmatpush1.msra.mxu0 0.0
    %665 = vmatprep.subr.mxu0 0.0
    %666 = vmatpush1.msra.mxu0 0.0
    %667 = vmatprep.subr.mxu0 0.0
    %668 = vmatpush1.msra.mxu0 0.0
    %669 = vmatprep.subr.mxu0 0.0
    %670 = vmatpush1.msra.mxu0 0.0
    %671 = vmatprep.subr.mxu0 0.0
    %672 = vmatpush1.msra.mxu0 0.0
    %673 = vmatprep.subr.mxu0 0.0
    %674 = vmatpush1.msra.mxu0 0.0
    %675 = vmatprep.subr.mxu0 0.0
    %676 = vmatpush1.msra.mxu0 0.0
    %677 = vmatprep.mubr.f32.mxu0 0.0
    %678 = vmatmul.mubr.f32.gmra.mrb[0].mxu0 %v608
    %v679 = vpop.f32.mrb[0].mxu0
    %v680 = vadd.f32 %v599, %v679
    %v681 = vpop.f32.mrb[0].mxu0
    %682 = vmatprep.mubr.f32.mxu0 0.0
    %683 = vmatmul.mubr.f32.gmra.mrb[0].mxu0 %v611
    %v684 = vpop.f32.mrb[0].mxu0
    %v685 = vadd.f32 %v604, %v684
    %v686 = vpop.f32.mrb[0].mxu0
    %687 = vdwg.mxu0
    %v688 = vlaneseq
    %v689 = vshrl.u32 %v688, 7
    %v690 = vsub.s32 0, %v689
    %v691 = vrot.slane %v23, %v690
    %v692 = vmul.f32 %v200, %v691
    %v693 = vmul.f32 %v205, %v691
    %v695 = vsel %vm42, %v692, 0
    %v698 = vsel %vm42, %v693, 0
    %700 = vmatprep.subr.mxu0 0.0
    %701 = vmatpush1.xpose.msra.mxu0 %v695
    %702 = vmatprep.subr.mxu0 0.0
    %703 = vmatpush1.xpose.msra.mxu0 %v698
    %704 = vmatprep.subr.mxu0 0.0
    %705 = vmatpush1.xpose.msra.mxu0 0.0
    %706 = vmatprep.subr.mxu0 0.0
    %707 = vmatpush1.xpose.msra.mxu0 0.0
    %708 = vmatprep.subr.mxu0 0.0
    %709 = vmatpush1.xpose.msra.mxu0 0.0
    %710 = vmatprep.subr.mxu0 0.0
    %711 = vmatpush1.xpose.msra.mxu0 0.0
    %712 = vmatprep.subr.mxu0 0.0
    %713 = vmatpush1.xpose.msra.mxu0 0.0
    %714 = vmatprep.subr.mxu0 0.0
    %715 = vmatpush1.xpose.msra.mxu0 0.0
    %716 = vmatprep.subr.mxu0 0.0
    %717 = vmatpush1.xpose.msra.mxu0 0.0
    %718 = vmatprep.subr.mxu0 0.0
    %719 = vmatpush1.xpose.msra.mxu0 0.0
    %720 = vmatprep.subr.mxu0 0.0
    %721 = vmatpush1.xpose.msra.mxu0 0.0
    %722 = vmatprep.subr.mxu0 0.0
    %723 = vmatpush1.xpose.msra.mxu0 0.0
    %724 = vmatprep.subr.mxu0 0.0
    %725 = vmatpush1.xpose.msra.mxu0 0.0
    %726 = vmatprep.subr.mxu0 0.0
    %727 = vmatpush1.xpose.msra.mxu0 0.0
    %728 = vmatprep.subr.mxu0 0.0
    %729 = vmatpush1.xpose.msra.mxu0 0.0
    %730 = vmatprep.subr.mxu0 0.0
    %731 = vmatpush1.xpose.msra.mxu0 0.0
    %732 = vmatprep.subr.mxu0 0.0
    %733 = vmatpush1.xpose.msra.mxu0 0.0
    %734 = vmatprep.subr.mxu0 0.0
    %735 = vmatpush1.xpose.msra.mxu0 0.0
    %736 = vmatprep.subr.mxu0 0.0
    %737 = vmatpush1.xpose.msra.mxu0 0.0
    %738 = vmatprep.subr.mxu0 0.0
    %739 = vmatpush1.xpose.msra.mxu0 0.0
    %740 = vmatprep.subr.mxu0 0.0
    %741 = vmatpush1.xpose.msra.mxu0 0.0
    %742 = vmatprep.subr.mxu0 0.0
    %743 = vmatpush1.xpose.msra.mxu0 0.0
    %744 = vmatprep.subr.mxu0 0.0
    %745 = vmatpush1.xpose.msra.mxu0 0.0
    %746 = vmatprep.subr.mxu0 0.0
    %747 = vmatpush1.xpose.msra.mxu0 0.0
    %748 = vmatprep.subr.mxu0 0.0
    %749 = vmatpush1.xpose.msra.mxu0 0.0
    %750 = vmatprep.subr.mxu0 0.0
    %751 = vmatpush1.xpose.msra.mxu0 0.0
    %752 = vmatprep.subr.mxu0 0.0
    %753 = vmatpush1.xpose.msra.mxu0 0.0
    %754 = vmatprep.subr.mxu0 0.0
    %755 = vmatpush1.xpose.msra.mxu0 0.0
    %756 = vmatprep.subr.mxu0 0.0
    %757 = vmatpush1.xpose.msra.mxu0 0.0
    %758 = vmatprep.subr.mxu0 0.0
    %759 = vmatpush1.xpose.msra.mxu0 0.0
    %760 = vmatprep.subr.mxu0 0.0
    %761 = vmatpush1.xpose.msra.mxu0 0.0
    %762 = vmatprep.subr.mxu0 0.0
    %763 = vmatpush1.xpose.msra.mxu0 0.0
    %764 = vmatprep.mubr.f32.mxu0 0.0
    %765 = vmatmul.mubr.f32.gmra.mrb[0].mxu0 %v304
    %v766 = vpop.f32.mrb[0].mxu0
    %v767 = vadd.f32 %v25, %v766
    %v768 = vpop.f32.mrb[0].mxu0
    %769 = vmatprep.mubr.f32.mxu0 0.0
    %770 = vmatmul.mubr.f32.gmra.mrb[0].mxu0 %v307
    %v771 = vpop.f32.mrb[0].mxu0
    %v772 = vadd.f32 %v26, %v771
    %v773 = vpop.f32.mrb[0].mxu0
    %774 = vdwg.mxu0
    %v775 = vsel %vm390, %v767, -inf
    %776 = vmax.xlane.f32.xlu0 %v775
    %v777 = vpop.xlane.xlu0 %776
    %v778 = vsel %vm390, %v772, -inf
    %779 = vmax.xlane.f32.xlu0 %v778
    %v780 = vpop.xlane.xlu0 %779
    %v781 = vsub.f32 %v767, %v777
    %v782 = vsub.f32 %v772, %v780
    %v783 = vmul.f32 %v781, 1.442695
    %v784 = vpow.pop %v783
    %v785 = vmul.f32 %v782, 1.442695
    %v786 = vpow.pop %v785
    %v787 = vsel %vm390, %v784, 0.0
    %788 = vadd.xlane.f32.xlu0 %v787
    %v789 = vpop.xlane.xlu0 %788
    %v790 = vsel %vm390, %v786, 0.0
    %791 = vadd.xlane.f32.xlu0 %v790
    %v792 = vpop.xlane.xlu0 %791
    %v793 = vrcp.pop %v789
    %v794 = vrcp.pop %v792
    %v795 = vmul.f32 %v784, %v793
    %v796 = vmul.f32 %v786, %v794
    %v797 = vmul.f32 %v284, %v691
    %v798 = vmul.f32 %v289, %v691
    %v800 = vsel %vm390, %v795, 0
    %v803 = vsel %vm390, %v796, 0
    %805 = vmatprep.subr.mxu0 0.0
    %806 = vmatpush1.msra.mxu0 %v797
    %807 = vmatprep.subr.mxu0 0.0
    %808 = vmatpush1.msra.mxu0 %v798
    %809 = vmatprep.subr.mxu0 0.0
    %810 = vmatpush1.msra.mxu0 0.0
    %811 = vmatprep.subr.mxu0 0.0
    %812 = vmatpush1.msra.mxu0 0.0
    %813 = vmatprep.subr.mxu0 0.0
    %814 = vmatpush1.msra.mxu0 0.0
    %815 = vmatprep.subr.mxu0 0.0
    %816 = vmatpush1.msra.mxu0 0.0
    %817 = vmatprep.subr.mxu0 0.0
    %818 = vmatpush1.msra.mxu0 0.0
    %819 = vmatprep.subr.mxu0 0.0
    %820 = vmatpush1.msra.mxu0 0.0
    %821 = vmatprep.subr.mxu0 0.0
    %822 = vmatpush1.msra.mxu0 0.0
    %823 = vmatprep.subr.mxu0 0.0
    %824 = vmatpush1.msra.mxu0 0.0
    %825 = vmatprep.subr.mxu0 0.0
    %826 = vmatpush1.msra.mxu0 0.0
    %827 = vmatprep.subr.mxu0 0.0
    %828 = vmatpush1.msra.mxu0 0.0
    %829 = vmatprep.subr.mxu0 0.0
    %830 = vmatpush1.msra.mxu0 0.0
    %831 = vmatprep.subr.mxu0 0.0
    %832 = vmatpush1.msra.mxu0 0.0
    %833 = vmatprep.subr.mxu0 0.0
    %834 = vmatpush1.msra.mxu0 0.0
    %835 = vmatprep.subr.mxu0 0.0
    %836 = vmatpush1.msra.mxu0 0.0
    %837 = vmatprep.subr.mxu0 0.0
    %838 = vmatpush1.msra.mxu0 0.0
    %839 = vmatprep.subr.mxu0 0.0
    %840 = vmatpush1.msra.mxu0 0.0
    %841 = vmatprep.subr.mxu0 0.0
    %842 = vmatpush1.msra.mxu0 0.0
    %843 = vmatprep.subr.mxu0 0.0
    %844 = vmatpush1.msra.mxu0 0.0
    %845 = vmatprep.subr.mxu0 0.0
    %846 = vmatpush1.msra.mxu0 0.0
    %847 = vmatprep.subr.mxu0 0.0
    %848 = vmatpush1.msra.mxu0 0.0
    %849 = vmatprep.subr.mxu0 0.0
    %850 = vmatpush1.msra.mxu0 0.0
    %851 = vmatprep.subr.mxu0 0.0
    %852 = vmatpush1.msra.mxu0 0.0
    %853 = vmatprep.subr.mxu0 0.0
    %854 = vmatpush1.msra.mxu0 0.0
    %855 = vmatprep.subr.mxu0 0.0
    %856 = vmatpush1.msra.mxu0 0.0
    %857 = vmatprep.subr.mxu0 0.0
    %858 = vmatpush1.msra.mxu0 0.0
    %859 = vmatprep.subr.mxu0 0.0
    %860 = vmatpush1.msra.mxu0 0.0
    %861 = vmatprep.subr.mxu0 0.0
    %862 = vmatpush1.msra.mxu0 0.0
    %863 = vmatprep.subr.mxu0 0.0
    %864 = vmatpush1.msra.mxu0 0.0
    %865 = vmatprep.subr.mxu0 0.0
    %866 = vmatpush1.msra.mxu0 0.0
    %867 = vmatprep.subr.mxu0 0.0
    %868 = vmatpush1.msra.mxu0 0.0
    %869 = vmatprep.mubr.f32.mxu0 0.0
    %870 = vmatmul.mubr.f32.gmra.mrb[0].mxu0 %v800
    %v871 = vpop.f32.mrb[0].mxu0
    %v872 = vadd.f32 0.0, %v871
    %v873 = vpop.f32.mrb[0].mxu0
    %874 = vmatprep.mubr.f32.mxu0 0.0
    %875 = vmatmul.mubr.f32.gmra.mrb[0].mxu0 %v803
    %v876 = vpop.f32.mrb[0].mxu0
    %v877 = vadd.f32 0.0, %v876
    %v878 = vpop.f32.mrb[0].mxu0
    %879 = vdwg.mxu0
    %v880 = vadd.f32 %v680, %v872
    %v881 = vadd.f32 %v685, %v877
    %v882 = vlaneseq
    %v883 = vshrl.u32 %v882, 7
    %v884 = vsub.s32 0, %v883
    %v885 = vrot.slane %v24, %v884
    %v886 = vmul.f32 %v200, %v885
    %v887 = vmul.f32 %v205, %v885
    %v889 = vsel %vm42, %v886, 0
    %v892 = vsel %vm42, %v887, 0
    %894 = vmatprep.subr.mxu0 0.0
    %895 = vmatpush1.xpose.msra.mxu0 %v889
    %896 = vmatprep.subr.mxu0 0.0
    %897 = vmatpush1.xpose.msra.mxu0 %v892
    %898 = vmatprep.subr.mxu0 0.0
    %899 = vmatpush1.xpose.msra.mxu0 0.0
    %900 = vmatprep.subr.mxu0 0.0
    %901 = vmatpush1.xpose.msra.mxu0 0.0
    %902 = vmatprep.subr.mxu0 0.0
    %903 = vmatpush1.xpose.msra.mxu0 0.0
    %904 = vmatprep.subr.mxu0 0.0
    %905 = vmatpush1.xpose.msra.mxu0 0.0
    %906 = vmatprep.subr.mxu0 0.0
    %907 = vmatpush1.xpose.msra.mxu0 0.0
    %908 = vmatprep.subr.mxu0 0.0
    %909 = vmatpush1.xpose.msra.mxu0 0.0
    %910 = vmatprep.subr.mxu0 0.0
    %911 = vmatpush1.xpose.msra.mxu0 0.0
    %912 = vmatprep.subr.mxu0 0.0
    %913 = vmatpush1.xpose.msra.mxu0 0.0
    %914 = vmatprep.subr.mxu0 0.0
    %915 = vmatpush1.xpose.msra.mxu0 0.0
    %916 = vmatprep.subr.mxu0 0.0
    %917 = vmatpush1.xpose.msra.mxu0 0.0
    %918 = vmatprep.subr.mxu0 0.0
    %919 = vmatpush1.xpose.msra.mxu0 0.0
    %920 = vmatprep.subr.mxu0 0.0
    %921 = vmatpush1.xpose.msra.mxu0 0.0
    %922 = vmatprep.subr.mxu0 0.0
    %923 = vmatpush1.xpose.msra.mxu0 0.0
    %924 = vmatprep.subr.mxu0 0.0
    %925 = vmatpush1.xpose.msra.mxu0 0.0
    %926 = vmatprep.subr.mxu0 0.0
    %927 = vmatpush1.xpose.msra.mxu0 0.0
    %928 = vmatprep.subr.mxu0 0.0
    %929 = vmatpush1.xpose.msra.mxu0 0.0
    %930 = vmatprep.subr.mxu0 0.0
    %931 = vmatpush1.xpose.msra.mxu0 0.0
    %932 = vmatprep.subr.mxu0 0.0
    %933 = vmatpush1.xpose.msra.mxu0 0.0
    %934 = vmatprep.subr.mxu0 0.0
    %935 = vmatpush1.xpose.msra.mxu0 0.0
    %936 = vmatprep.subr.mxu0 0.0
    %937 = vmatpush1.xpose.msra.mxu0 0.0
    %938 = vmatprep.subr.mxu0 0.0
    %939 = vmatpush1.xpose.msra.mxu0 0.0
    %940 = vmatprep.subr.mxu0 0.0
    %941 = vmatpush1.xpose.msra.mxu0 0.0
    %942 = vmatprep.subr.mxu0 0.0
    %943 = vmatpush1.xpose.msra.mxu0 0.0
    %944 = vmatprep.subr.mxu0 0.0
    %945 = vmatpush1.xpose.msra.mxu0 0.0
    %946 = vmatprep.subr.mxu0 0.0
    %947 = vmatpush1.xpose.msra.mxu0 0.0
    %948 = vmatprep.subr.mxu0 0.0
    %949 = vmatpush1.xpose.msra.mxu0 0.0
    %950 = vmatprep.subr.mxu0 0.0
    %951 = vmatpush1.xpose.msra.mxu0 0.0
    %952 = vmatprep.subr.mxu0 0.0
    %953 = vmatpush1.xpose.msra.mxu0 0.0
    %954 = vmatprep.subr.mxu0 0.0
    %955 = vmatpush1.xpose.msra.mxu0 0.0
    %956 = vmatprep.subr.mxu0 0.0
    %957 = vmatpush1.xpose.msra.mxu0 0.0
    %958 = vmatprep.mubr.f32.mxu0 0.0
    %959 = vmatmul.mubr.f32.gmra.mrb[0].mxu0 %v304
    %v960 = vpop.f32.mrb[0].mxu0
    %v961 = vadd.f32 %v25, %v960
    %v962 = vpop.f32.mrb[0].mxu0
    %963 = vmatprep.mubr.f32.mxu0 0.0
    %964 = vmatmul.mubr.f32.gmra.mrb[0].mxu0 %v307
    %v965 = vpop.f32.mrb[0].mxu0
    %v966 = vadd.f32 %v26, %v965
    %v967 = vpop.f32.mrb[0].mxu0
    %968 = vdwg.mxu0
    %v969 = vsel %vm390, %v961, -inf
    %970 = vmax.xlane.f32.xlu0 %v969
    %v971 = vpop.xlane.xlu0 %970
    %v972 = vsel %vm390, %v966, -inf
    %973 = vmax.xlane.f32.xlu0 %v972
    %v974 = vpop.xlane.xlu0 %973
    %v975 = vsub.f32 %v961, %v971
    %v976 = vsub.f32 %v966, %v974
    %v977 = vmul.f32 %v975, 1.442695
    %v978 = vpow.pop %v977
    %v979 = vmul.f32 %v976, 1.442695
    %v980 = vpow.pop %v979
    %v981 = vsel %vm390, %v978, 0.0
    %982 = vadd.xlane.f32.xlu0 %v981
    %v983 = vpop.xlane.xlu0 %982
    %v984 = vsel %vm390, %v980, 0.0
    %985 = vadd.xlane.f32.xlu0 %v984
    %v986 = vpop.xlane.xlu0 %985
    %v987 = vrcp.pop %v983
    %v988 = vrcp.pop %v986
    %v989 = vmul.f32 %v978, %v987
    %v990 = vmul.f32 %v980, %v988
    %v991 = vmul.f32 %v284, %v885
    %v992 = vmul.f32 %v289, %v885
    %v994 = vsel %vm390, %v989, 0
    %v997 = vsel %vm390, %v990, 0
    %999 = vmatprep.subr.mxu0 0.0
    %1000 = vmatpush1.msra.mxu0 %v991
    %1001 = vmatprep.subr.mxu0 0.0
    %1002 = vmatpush1.msra.mxu0 %v992
    %1003 = vmatprep.subr.mxu0 0.0
    %1004 = vmatpush1.msra.mxu0 0.0
    %1005 = vmatprep.subr.mxu0 0.0
    %1006 = vmatpush1.msra.mxu0 0.0
    %1007 = vmatprep.subr.mxu0 0.0
    %1008 = vmatpush1.msra.mxu0 0.0
    %1009 = vmatprep.subr.mxu0 0.0
    %1010 = vmatpush1.msra.mxu0 0.0
    %1011 = vmatprep.subr.mxu0 0.0
    %1012 = vmatpush1.msra.mxu0 0.0
    %1013 = vmatprep.subr.mxu0 0.0
    %1014 = vmatpush1.msra.mxu0 0.0
    %1015 = vmatprep.subr.mxu0 0.0
    %1016 = vmatpush1.msra.mxu0 0.0
    %1017 = vmatprep.subr.mxu0 0.0
    %1018 = vmatpush1.msra.mxu0 0.0
    %1019 = vmatprep.subr.mxu0 0.0
    %1020 = vmatpush1.msra.mxu0 0.0
    %1021 = vmatprep.subr.mxu0 0.0
    %1022 = vmatpush1.msra.mxu0 0.0
    %1023 = vmatprep.subr.mxu0 0.0
    %1024 = vmatpush1.msra.mxu0 0.0
    %1025 = vmatprep.subr.mxu0 0.0
    %1026 = vmatpush1.msra.mxu0 0.0
    %1027 = vmatprep.subr.mxu0 0.0
    %1028 = vmatpush1.msra.mxu0 0.0
    %1029 = vmatprep.subr.mxu0 0.0
    %1030 = vmatpush1.msra.mxu0 0.0
    %1031 = vmatprep.subr.mxu0 0.0
    %1032 = vmatpush1.msra.mxu0 0.0
    %1033 = vmatprep.subr.mxu0 0.0
    %1034 = vmatpush1.msra.mxu0 0.0
    %1035 = vmatprep.subr.mxu0 0.0
    %1036 = vmatpush1.msra.mxu0 0.0
    %1037 = vmatprep.subr.mxu0 0.0
    %1038 = vmatpush1.msra.mxu0 0.0
    %1039 = vmatprep.subr.mxu0 0.0
    %1040 = vmatpush1.msra.mxu0 0.0
    %1041 = vmatprep.subr.mxu0 0.0
    %1042 = vmatpush1.msra.mxu0 0.0
    %1043 = vmatprep.subr.mxu0 0.0
    %1044 = vmatpush1.msra.mxu0 0.0
    %1045 = vmatprep.subr.mxu0 0.0
    %1046 = vmatpush1.msra.mxu0 0.0
    %1047 = vmatprep.subr.mxu0 0.0
    %1048 = vmatpush1.msra.mxu0 0.0
    %1049 = vmatprep.subr.mxu0 0.0
    %1050 = vmatpush1.msra.mxu0 0.0
    %1051 = vmatprep.subr.mxu0 0.0
    %1052 = vmatpush1.msra.mxu0 0.0
    %1053 = vmatprep.subr.mxu0 0.0
    %1054 = vmatpush1.msra.mxu0 0.0
    %1055 = vmatprep.subr.mxu0 0.0
    %1056 = vmatpush1.msra.mxu0 0.0
    %1057 = vmatprep.subr.mxu0 0.0
    %1058 = vmatpush1.msra.mxu0 0.0
    %1059 = vmatprep.subr.mxu0 0.0
    %1060 = vmatpush1.msra.mxu0 0.0
    %1061 = vmatprep.subr.mxu0 0.0
    %1062 = vmatpush1.msra.mxu0 0.0
    %1063 = vmatprep.mubr.f32.mxu0 0.0
    %1064 = vmatmul.mubr.f32.gmra.mrb[0].mxu0 %v994
    %v1065 = vpop.f32.mrb[0].mxu0
    %v1066 = vadd.f32 0.0, %v1065
    %v1067 = vpop.f32.mrb[0].mxu0
    %1068 = vmatprep.mubr.f32.mxu0 0.0
    %1069 = vmatmul.mubr.f32.gmra.mrb[0].mxu0 %v997
    %v1070 = vpop.f32.mrb[0].mxu0
    %v1071 = vadd.f32 0.0, %v1070
    %v1072 = vpop.f32.mrb[0].mxu0
    %1073 = vdwg.mxu0
    %v1074 = vadd.f32 %v880, %v1066
    %v1075 = vadd.f32 %v881, %v1071
    %v1076 = vlaneseq
    %v1077 = vshrl.u32 %v1076, 7
    %v1078 = vsub.s32 0, %v1077
    %v1079 = vrot.slane %v296, %v1078
    %v1081 = vsel %vm42, %v1074, 0
    %v1084 = vsel %vm42, %v1075, 0
    %1086 = vmatprep.subr.mxu0 0.0
    %1087 = vmatpush1.msra.mxu0 %v292
    %1088 = vmatprep.subr.mxu0 0.0
    %1089 = vmatpush1.msra.mxu0 %v293
    %1090 = vmatprep.subr.mxu0 0.0
    %1091 = vmatpush1.msra.mxu0 %v294
    %1092 = vmatprep.subr.mxu0 0.0
    %1093 = vmatpush1.msra.mxu0 %v295
    %1094 = vmatprep.subr.mxu0 0.0
    %1095 = vmatpush1.msra.mxu0 0.0
    %1096 = vmatprep.subr.mxu0 0.0
    %1097 = vmatpush1.msra.mxu0 0.0
    %1098 = vmatprep.subr.mxu0 0.0
    %1099 = vmatpush1.msra.mxu0 0.0
    %1100 = vmatprep.subr.mxu0 0.0
    %1101 = vmatpush1.msra.mxu0 0.0
    %1102 = vmatprep.subr.mxu0 0.0
    %1103 = vmatpush1.msra.mxu0 0.0
    %1104 = vmatprep.subr.mxu0 0.0
    %1105 = vmatpush1.msra.mxu0 0.0
    %1106 = vmatprep.subr.mxu0 0.0
    %1107 = vmatpush1.msra.mxu0 0.0
    %1108 = vmatprep.subr.mxu0 0.0
    %1109 = vmatpush1.msra.mxu0 0.0
    %1110 = vmatprep.subr.mxu0 0.0
    %1111 = vmatpush1.msra.mxu0 0.0
    %1112 = vmatprep.subr.mxu0 0.0
    %1113 = vmatpush1.msra.mxu0 0.0
    %1114 = vmatprep.subr.mxu0 0.0
    %1115 = vmatpush1.msra.mxu0 0.0
    %1116 = vmatprep.subr.mxu0 0.0
    %1117 = vmatpush1.msra.mxu0 0.0
    %1118 = vmatprep.subr.mxu0 0.0
    %1119 = vmatpush1.msra.mxu0 0.0
    %1120 = vmatprep.subr.mxu0 0.0
    %1121 = vmatpush1.msra.mxu0 0.0
    %1122 = vmatprep.subr.mxu0 0.0
    %1123 = vmatpush1.msra.mxu0 0.0
    %1124 = vmatprep.subr.mxu0 0.0
    %1125 = vmatpush1.msra.mxu0 0.0
    %1126 = vmatprep.subr.mxu0 0.0
    %1127 = vmatpush1.msra.mxu0 0.0
    %1128 = vmatprep.subr.mxu0 0.0
    %1129 = vmatpush1.msra.mxu0 0.0
    %1130 = vmatprep.subr.mxu0 0.0
    %1131 = vmatpush1.msra.mxu0 0.0
    %1132 = vmatprep.subr.mxu0 0.0
    %1133 = vmatpush1.msra.mxu0 0.0
    %1134 = vmatprep.subr.mxu0 0.0
    %1135 = vmatpush1.msra.mxu0 0.0
    %1136 = vmatprep.subr.mxu0 0.0
    %1137 = vmatpush1.msra.mxu0 0.0
    %1138 = vmatprep.subr.mxu0 0.0
    %1139 = vmatpush1.msra.mxu0 0.0
    %1140 = vmatprep.subr.mxu0 0.0
    %1141 = vmatpush1.msra.mxu0 0.0
    %1142 = vmatprep.subr.mxu0 0.0
    %1143 = vmatpush1.msra.mxu0 0.0
    %1144 = vmatprep.subr.mxu0 0.0
    %1145 = vmatpush1.msra.mxu0 0.0
    %1146 = vmatprep.subr.mxu0 0.0
    %1147 = vmatpush1.msra.mxu0 0.0
    %1148 = vmatprep.subr.mxu0 0.0
    %1149 = vmatpush1.msra.mxu0 0.0
    %1150 = vmatprep.mubr.f32.mxu0 0.0
    %1151 = vmatmul.mubr.f32.gmra.mrb[0].mxu0 %v1081
    %v1152 = vpop.f32.mrb[0].mxu0
    %v1153 = vadd.f32 %v1079, %v1152
    %v1154 = vpop.f32.mrb[0].mxu0
    %1155 = vmatprep.mubr.f32.mxu0 0.0
    %1156 = vmatmul.mubr.f32.gmra.mrb[0].mxu0 %v1084
    %v1157 = vpop.f32.mrb[0].mxu0
    %v1158 = vadd.f32 %v1079, %v1157
    %v1159 = vpop.f32.mrb[0].mxu0
    %1160 = vdwg.mxu0
    %v1161 = vadd.f32 %v31, %v1153
    %v1162 = vadd.f32 %v32, %v1158
    %v1163 = vsel %vm42, %v1161, 0.0
    %1164 = vadd.xlane.f32.xlu0 %v1163
    %v1165 = vpop.xlane.xlu0 %1164
    %v1166 = vsel %vm42, %v1162, 0.0
    %1167 = vadd.xlane.f32.xlu0 %v1166
    %v1168 = vpop.xlane.xlu0 %1167
    %v1169 = vrcp.pop 32.0
    %v1170 = vmul.f32 %v1165, %v1169
    %v1171 = vmul.f32 %v1168, %v1169
    %v1172 = vsub.f32 %v1161, %v1170
    %v1173 = vsub.f32 %v1162, %v1171
    %v1174 = vmul.f32 %v1172, %v1172
    %v1175 = vmul.f32 %v1173, %v1173
    %v1176 = vsel %vm42, %v1174, 0.0
    %1177 = vadd.xlane.f32.xlu0 %v1176
    %v1178 = vpop.xlane.xlu0 %1177
    %v1179 = vsel %vm42, %v1175, 0.0
    %1180 = vadd.xlane.f32.xlu0 %v1179
    %v1181 = vpop.xlane.xlu0 %1180
    %v1182 = vmul.f32 %v1178, %v1169
    %v1183 = vmul.f32 %v1181, %v1169
    %v1184 = vadd.f32 %v1182, 1e-05
    %v1185 = vadd.f32 %v1183, 1e-05
    %v1186 = vrsqrt.pop %v1184
    %v1187 = vrsqrt.pop %v1185
    %v1188 = vmul.f32 %v1172, %v1186
    %v1189 = vmul.f32 %v1173, %v1187
    %v1190 = vld [vmem:[%s3 + $0x4] sm:$0x1]
    %v1191 = vlaneseq
    %v1192 = vshrl.u32 %v1191, 7
    %v1193 = vsub.s32 0, %v1192
    %v1194 = vrot.slane %v1190, %v1193
    %v1195 = vmul.f32 %v1188, %v1194
    %v1196 = vmul.f32 %v1189, %v1194
    %v1197 = vld [vmem:[%s3 + $0x5] sm:$0x1]
    %v1198 = vlaneseq
    %v1199 = vshrl.u32 %v1198, 7
    %v1200 = vsub.s32 0, %v1199
    %v1201 = vrot.slane %v1197, %v1200
    %v1202 = vadd.f32 %v1195, %v1201
    %v1203 = vadd.f32 %v1196, %v1201
    %v1204 = vld [vmem:[%s2 + $0x80] sm:$0xff]
    %v1205 = vld [vmem:[%s2 + $0x88] sm:$0xff]
    %v1206 = vld [vmem:[%s2 + $0x90] sm:$0xff]
    %v1207 = vld [vmem:[%s2 + $0x98] sm:$0xff]
    %v1208 = vld [vmem:[%s3 + $0x6] sm:$0x1]
    %v1209 = vlaneseq
    %v1210 = vshrl.u32 %v1209, 7
    %v1211 = vsub.s32 0, %v1210
    %v1212 = vrot.slane %v1208, %v1211
    %v1214 = vsel %vm42, %v1202, 0
    %v1217 = vsel %vm42, %v1203, 0
    %1219 = vmatprep.subr.mxu0 0.0
    %1220 = vmatpush1.msra.mxu0 %v1204
    %1221 = vmatprep.subr.mxu0 0.0
    %1222 = vmatpush1.msra.mxu0 %v1205
    %1223 = vmatprep.subr.mxu0 0.0
    %1224 = vmatpush1.msra.mxu0 %v1206
    %1225 = vmatprep.subr.mxu0 0.0
    %1226 = vmatpush1.msra.mxu0 %v1207
    %1227 = vmatprep.subr.mxu0 0.0
    %1228 = vmatpush1.msra.mxu0 0.0
    %1229 = vmatprep.subr.mxu0 0.0
    %1230 = vmatpush1.msra.mxu0 0.0
    %1231 = vmatprep.subr.mxu0 0.0
    %1232 = vmatpush1.msra.mxu0 0.0
    %1233 = vmatprep.subr.mxu0 0.0
    %1234 = vmatpush1.msra.mxu0 0.0
    %1235 = vmatprep.subr.mxu0 0.0
    %1236 = vmatpush1.msra.mxu0 0.0
    %1237 = vmatprep.subr.mxu0 0.0
    %1238 = vmatpush1.msra.mxu0 0.0
    %1239 = vmatprep.subr.mxu0 0.0
    %1240 = vmatpush1.msra.mxu0 0.0
    %1241 = vmatprep.subr.mxu0 0.0
    %1242 = vmatpush1.msra.mxu0 0.0
    %1243 = vmatprep.subr.mxu0 0.0
    %1244 = vmatpush1.msra.mxu0 0.0
    %1245 = vmatprep.subr.mxu0 0.0
    %1246 = vmatpush1.msra.mxu0 0.0
    %1247 = vmatprep.subr.mxu0 0.0
    %1248 = vmatpush1.msra.mxu0 0.0
    %1249 = vmatprep.subr.mxu0 0.0
    %1250 = vmatpush1.msra.mxu0 0.0
    %1251 = vmatprep.subr.mxu0 0.0
    %1252 = vmatpush1.msra.mxu0 0.0
    %1253 = vmatprep.subr.mxu0 0.0
    %1254 = vmatpush1.msra.mxu0 0.0
    %1255 = vmatprep.subr.mxu0 0.0
    %1256 = vmatpush1.msra.mxu0 0.0
    %1257 = vmatprep.subr.mxu0 0.0
    %1258 = vmatpush1.msra.mxu0 0.0
    %1259 = vmatprep.subr.mxu0 0.0
    %1260 = vmatpush1.msra.mxu0 0.0
    %1261 = vmatprep.subr.mxu0 0.0
    %1262 = vmatpush1.msra.mxu0 0.0
    %1263 = vmatprep.subr.mxu0 0.0
    %1264 = vmatpush1.msra.mxu0 0.0
    %1265 = vmatprep.subr.mxu0 0.0
    %1266 = vmatpush1.msra.mxu0 0.0
    %1267 = vmatprep.subr.mxu0 0.0
    %1268 = vmatpush1.msra.mxu0 0.0
    %1269 = vmatprep.subr.mxu0 0.0
    %1270 = vmatpush1.msra.mxu0 0.0
    %1271 = vmatprep.subr.mxu0 0.0
    %1272 = vmatpush1.msra.mxu0 0.0
    %1273 = vmatprep.subr.mxu0 0.0
    %1274 = vmatpush1.msra.mxu0 0.0
    %1275 = vmatprep.subr.mxu0 0.0
    %1276 = vmatpush1.msra.mxu0 0.0
    %1277 = vmatprep.subr.mxu0 0.0
    %1278 = vmatpush1.msra.mxu0 0.0
    %1279 = vmatprep.subr.mxu0 0.0
    %1280 = vmatpush1.msra.mxu0 0.0
    %1281 = vmatprep.subr.mxu0 0.0
    %1282 = vmatpush1.msra.mxu0 0.0
    %1283 = vmatprep.mubr.f32.mxu0 0.0
    %1284 = vmatmul.mubr.f32.gmra.mrb[0].mxu0 %v1214
    %v1285 = vpop.f32.mrb[0].mxu0
    %v1286 = vadd.f32 %v1212, %v1285
    %v1287 = vpop.f32.mrb[0].mxu0
    %1288 = vmatprep.mubr.f32.mxu0 0.0
    %1289 = vmatmul.mubr.f32.gmra.mrb[0].mxu0 %v1217
    %v1290 = vpop.f32.mrb[0].mxu0
    %v1291 = vadd.f32 %v1212, %v1290
    %v1292 = vpop.f32.mrb[0].mxu0
    %1293 = vdwg.mxu0
    %v1294 = vmax.f32 %v1286, 0.0
    %v1295 = vmax.f32 %v1291, 0.0
    %v1296 = vld [vmem:[%s2 + $0xa0] sm:$0xff]
    %v1297 = vld [vmem:[%s2 + $0xa8] sm:$0xff]
    %v1298 = vld [vmem:[%s2 + $0xb0] sm:$0xff]
    %v1299 = vld [vmem:[%s2 + $0xb8] sm:$0xff]
    %v1300 = vld [vmem:[%s2 + $0xc0] sm:$0xff]
    %v1301 = vld [vmem:[%s2 + $0xc8] sm:$0xff]
    %v1302 = vld [vmem:[%s2 + $0xd0] sm:$0xff]
    %v1303 = vld [vmem:[%s2 + $0xd8] sm:$0xff]
    %vm1304 = vcmask 523264
    %v1306 = vsel %vm1304, %v1294, 0
    %v1309 = vsel %vm1304, %v1295, 0
    %1311 = vmatprep.subr.mxu0 0.0
    %1312 = vmatpush1.msra.mxu0 %v1296
    %1313 = vmatprep.subr.mxu0 0.0
    %1314 = vmatpush1.msra.mxu0 %v1297
    %1315 = vmatprep.subr.mxu0 0.0
    %1316 = vmatpush1.msra.mxu0 %v1298
    %1317 = vmatprep.subr.mxu0 0.0
    %1318 = vmatpush1.msra.mxu0 %v1299
    %1319 = vmatprep.subr.mxu0 0.0
    %1320 = vmatpush1.msra.mxu0 %v1300
    %1321 = vmatprep.subr.mxu0 0.0
    %1322 = vmatpush1.msra.mxu0 %v1301
    %1323 = vmatprep.subr.mxu0 0.0
    %1324 = vmatpush1.msra.mxu0 %v1302
    %1325 = vmatprep.subr.mxu0 0.0
    %1326 = vmatpush1.msra.mxu0 %v1303
    %1327 = vmatprep.subr.mxu0 0.0
    %1328 = vmatpush1.msra.mxu0 0.0
    %1329 = vmatprep.subr.mxu0 0.0
    %1330 = vmatpush1.msra.mxu0 0.0
    %1331 = vmatprep.subr.mxu0 0.0
    %1332 = vmatpush1.msra.mxu0 0.0
    %1333 = vmatprep.subr.mxu0 0.0
    %1334 = vmatpush1.msra.mxu0 0.0
    %1335 = vmatprep.subr.mxu0 0.0
    %1336 = vmatpush1.msra.mxu0 0.0
    %1337 = vmatprep.subr.mxu0 0.0
    %1338 = vmatpush1.msra.mxu0 0.0
    %1339 = vmatprep.subr.mxu0 0.0
    %1340 = vmatpush1.msra.mxu0 0.0
    %1341 = vmatprep.subr.mxu0 0.0
    %1342 = vmatpush1.msra.mxu0 0.0
    %1343 = vmatprep.subr.mxu0 0.0
    %1344 = vmatpush1.msra.mxu0 0.0
    %1345 = vmatprep.subr.mxu0 0.0
    %1346 = vmatpush1.msra.mxu0 0.0
    %1347 = vmatprep.subr.mxu0 0.0
    %1348 = vmatpush1.msra.mxu0 0.0
    %1349 = vmatprep.subr.mxu0 0.0
    %1350 = vmatpush1.msra.mxu0 0.0
    %1351 = vmatprep.subr.mxu0 0.0
    %1352 = vmatpush1.msra.mxu0 0.0
    %1353 = vmatprep.subr.mxu0 0.0
    %1354 = vmatpush1.msra.mxu0 0.0
    %1355 = vmatprep.subr.mxu0 0.0
    %1356 = vmatpush1.msra.mxu0 0.0
    %1357 = vmatprep.subr.mxu0 0.0
    %1358 = vmatpush1.msra.mxu0 0.0
    %1359 = vmatprep.subr.mxu0 0.0
    %1360 = vmatpush1.msra.mxu0 0.0
    %1361 = vmatprep.subr.mxu0 0.0
    %1362 = vmatpush1.msra.mxu0 0.0
    %1363 = vmatprep.subr.mxu0 0.0
    %1364 = vmatpush1.msra.mxu0 0.0
    %1365 = vmatprep.subr.mxu0 0.0
    %1366 = vmatpush1.msra.mxu0 0.0
    %1367 = vmatprep.subr.mxu0 0.0
    %1368 = vmatpush1.msra.mxu0 0.0
    %1369 = vmatprep.subr.mxu0 0.0
    %1370 = vmatpush1.msra.mxu0 0.0
    %1371 = vmatprep.subr.mxu0 0.0
    %1372 = vmatpush1.msra.mxu0 0.0
    %1373 = vmatprep.subr.mxu0 0.0
    %1374 = vmatpush1.msra.mxu0 0.0
    %1375 = vmatprep.mubr.f32.mxu0 0.0
    %1376 = vmatmul.mubr.f32.gmra.mrb[0].mxu0 %v1306
    %v1377 = vpop.f32.mrb[0].mxu0
    %v1378 = vadd.f32 0.0, %v1377
    %v1379 = vpop.f32.mrb[0].mxu0
    %1380 = vmatprep.mubr.f32.mxu0 0.0
    %1381 = vmatmul.mubr.f32.gmra.mrb[0].mxu0 %v1309
    %v1382 = vpop.f32.mrb[0].mxu0
    %v1383 = vadd.f32 0.0, %v1382
    %v1384 = vpop.f32.mrb[0].mxu0
    %1385 = vdwg.mxu0
    %v1386 = vadd.f32 %v1202, %v1378
    %v1387 = vadd.f32 %v1203, %v1383
    %v1388 = vld [vmem:[%s3 + $0x7] sm:$0x1]
    %v1389 = vlaneseq
    %v1390 = vshrl.u32 %v1389, 7
    %v1391 = vsub.s32 0, %v1390
    %v1392 = vrot.slane %v1388, %v1391
    %v1393 = vadd.f32 %v1386, %v1392
    %v1394 = vadd.f32 %v1387, %v1392
    %v1395 = vsel %vm42, %v1393, 0.0
    %1396 = vadd.xlane.f32.xlu0 %v1395
    %v1397 = vpop.xlane.xlu0 %1396
    %v1398 = vsel %vm42, %v1394, 0.0
    %1399 = vadd.xlane.f32.xlu0 %v1398
    %v1400 = vpop.xlane.xlu0 %1399
    %v1401 = vmul.f32 %v1397, %v1169
    %v1402 = vmul.f32 %v1400, %v1169
    %v1403 = vsub.f32 %v1393, %v1401
    %v1404 = vsub.f32 %v1394, %v1402
    %v1405 = vmul.f32 %v1403, %v1403
    %v1406 = vmul.f32 %v1404, %v1404
    %v1407 = vsel %vm42, %v1405, 0.0
    %1408 = vadd.xlane.f32.xlu0 %v1407
    %v1409 = vpop.xlane.xlu0 %1408
    %v1410 = vsel %vm42, %v1406, 0.0
    %1411 = vadd.xlane.f32.xlu0 %v1410
    %v1412 = vpop.xlane.xlu0 %1411
    %v1413 = vmul.f32 %v1409, %v1169
    %v1414 = vmul.f32 %v1412, %v1169
    %v1415 = vadd.f32 %v1413, 1e-05
    %v1416 = vadd.f32 %v1414, 1e-05
    %v1417 = vrsqrt.pop %v1415
    %v1418 = vrsqrt.pop %v1416
    %v1419 = vmul.f32 %v1403, %v1417
    %v1420 = vmul.f32 %v1404, %v1418
    %v1421 = vld [vmem:[%s3 + $0x8] sm:$0x1]
    %v1422 = vlaneseq
    %v1423 = vshrl.u32 %v1422, 7
    %v1424 = vsub.s32 0, %v1423
    %v1425 = vrot.slane %v1421, %v1424
    %v1426 = vmul.f32 %v1419, %v1425
    %v1427 = vmul.f32 %v1420, %v1425
    %v1428 = vld [vmem:[%s3 + $0x9] sm:$0x1]
    %v1429 = vlaneseq
    %v1430 = vshrl.u32 %v1429, 7
    %v1431 = vsub.s32 0, %v1430
    %v1432 = vrot.slane %v1428, %v1431
    %v1433 = vadd.f32 %v1426, %v1432
    %v1434 = vadd.f32 %v1427, %v1432
    %v1435 = vld [vmem:[%s1] sm:$0xff]
    %v1436 = vld [vmem:[%s1 + $0x8] sm:$0xff]
    %v1437 = vld [vmem:[%s2 + $0xe0] sm:$0xff]
    %v1438 = vld [vmem:[%s2 + $0xe8] sm:$0xff]
    %v1439 = vld [vmem:[%s2 + $0xf0] sm:$0xff]
    %v1440 = vld [vmem:[%s2 + $0xf8] sm:$0xff]
    %v1441 = vld [vmem:[%s3 + $0xa] sm:$0x1]
    %v1442 = vlaneseq
    %v1443 = vshrl.u32 %v1442, 7
    %v1444 = vsub.s32 0, %v1443
    %v1445 = vrot.slane %v1441, %v1444
    %v1447 = vsel %vm42, %v1435, 0
    %v1450 = vsel %vm42, %v1436, 0
    %1452 = vmatprep.subr.mxu0 0.0
    %1453 = vmatpush1.msra.mxu0 %v1437
    %1454 = vmatprep.subr.mxu0 0.0
    %1455 = vmatpush1.msra.mxu0 %v1438
    %1456 = vmatprep.subr.mxu0 0.0
    %1457 = vmatpush1.msra.mxu0 %v1439
    %1458 = vmatprep.subr.mxu0 0.0
    %1459 = vmatpush1.msra.mxu0 %v1440
    %1460 = vmatprep.subr.mxu0 0.0
    %1461 = vmatpush1.msra.mxu0 0.0
    %1462 = vmatprep.subr.mxu0 0.0
    %1463 = vmatpush1.msra.mxu0 0.0
    %1464 = vmatprep.subr.mxu0 0.0
    %1465 = vmatpush1.msra.mxu0 0.0
    %1466 = vmatprep.subr.mxu0 0.0
    %1467 = vmatpush1.msra.mxu0 0.0
    %1468 = vmatprep.subr.mxu0 0.0
    %1469 = vmatpush1.msra.mxu0 0.0
    %1470 = vmatprep.subr.mxu0 0.0
    %1471 = vmatpush1.msra.mxu0 0.0
    %1472 = vmatprep.subr.mxu0 0.0
    %1473 = vmatpush1.msra.mxu0 0.0
    %1474 = vmatprep.subr.mxu0 0.0
    %1475 = vmatpush1.msra.mxu0 0.0
    %1476 = vmatprep.subr.mxu0 0.0
    %1477 = vmatpush1.msra.mxu0 0.0
    %1478 = vmatprep.subr.mxu0 0.0
    %1479 = vmatpush1.msra.mxu0 0.0
    %1480 = vmatprep.subr.mxu0 0.0
    %1481 = vmatpush1.msra.mxu0 0.0
    %1482 = vmatprep.subr.mxu0 0.0
    %1483 = vmatpush1.msra.mxu0 0.0
    %1484 = vmatprep.subr.mxu0 0.0
    %1485 = vmatpush1.msra.mxu0 0.0
    %1486 = vmatprep.subr.mxu0 0.0
    %1487 = vmatpush1.msra.mxu0 0.0
    %1488 = vmatprep.subr.mxu0 0.0
    %1489 = vmatpush1.msra.mxu0 0.0
    %1490 = vmatprep.subr.mxu0 0.0
    %1491 = vmatpush1.msra.mxu0 0.0
    %1492 = vmatprep.subr.mxu0 0.0
    %1493 = vmatpush1.msra.mxu0 0.0
    %1494 = vmatprep.subr.mxu0 0.0
    %1495 = vmatpush1.msra.mxu0 0.0
    %1496 = vmatprep.subr.mxu0 0.0
    %1497 = vmatpush1.msra.mxu0 0.0
    %1498 = vmatprep.subr.mxu0 0.0
    %1499 = vmatpush1.msra.mxu0 0.0
    %1500 = vmatprep.subr.mxu0 0.0
    %1501 = vmatpush1.msra.mxu0 0.0
    %1502 = vmatprep.subr.mxu0 0.0
    %1503 = vmatpush1.msra.mxu0 0.0
    %1504 = vmatprep.subr.mxu0 0.0
    %1505 = vmatpush1.msra.mxu0 0.0
    %1506 = vmatprep.subr.mxu0 0.0
    %1507 = vmatpush1.msra.mxu0 0.0
    %1508 = vmatprep.subr.mxu0 0.0
    %1509 = vmatpush1.msra.mxu0 0.0
    %1510 = vmatprep.subr.mxu0 0.0
    %1511 = vmatpush1.msra.mxu0 0.0
    %1512 = vmatprep.subr.mxu0 0.0
    %1513 = vmatpush1.msra.mxu0 0.0
    %1514 = vmatprep.subr.mxu0 0.0
    %1515 = vmatpush1.msra.mxu0 0.0
    %1516 = vmatprep.mubr.f32.mxu0 0.0
    %1517 = vmatmul.mubr.f32.gmra.mrb[0].mxu0 %v1447
    %v1518 = vpop.f32.mrb[0].mxu0
    %v1519 = vadd.f32 %v1445, %v1518
    %v1520 = vpop.f32.mrb[0].mxu0
    %1521 = vmatprep.mubr.f32.mxu0 0.0
    %1522 = vmatmul.mubr.f32.gmra.mrb[0].mxu0 %v1450
    %v1523 = vpop.f32.mrb[0].mxu0
    %v1524 = vadd.f32 %v1445, %v1523
    %v1525 = vpop.f32.mrb[0].mxu0
    %1526 = vdwg.mxu0
    %v1527 = vld [vmem:[%s2 + $0x100] sm:$0xff]
    %v1528 = vld [vmem:[%s2 + $0x108] sm:$0xff]
    %v1529 = vld [vmem:[%s2 + $0x110] sm:$0xff]
    %v1530 = vld [vmem:[%s2 + $0x118] sm:$0xff]
    %v1531 = vld [vmem:[%s3 + $0xb] sm:$0x1]
    %v1532 = vlaneseq
    %v1533 = vshrl.u32 %v1532, 7
    %v1534 = vsub.s32 0, %v1533
    %v1535 = vrot.slane %v1531, %v1534
    %1536 = vmatprep.subr.mxu0 0.0
    %1537 = vmatpush1.msra.mxu0 %v1527
    %1538 = vmatprep.subr.mxu0 0.0
    %1539 = vmatpush1.msra.mxu0 %v1528
    %1540 = vmatprep.subr.mxu0 0.0
    %1541 = vmatpush1.msra.mxu0 %v1529
    %1542 = vmatprep.subr.mxu0 0.0
    %1543 = vmatpush1.msra.mxu0 %v1530
    %1544 = vmatprep.subr.mxu0 0.0
    %1545 = vmatpush1.msra.mxu0 0.0
    %1546 = vmatprep.subr.mxu0 0.0
    %1547 = vmatpush1.msra.mxu0 0.0
    %1548 = vmatprep.subr.mxu0 0.0
    %1549 = vmatpush1.msra.mxu0 0.0
    %1550 = vmatprep.subr.mxu0 0.0
    %1551 = vmatpush1.msra.mxu0 0.0
    %1552 = vmatprep.subr.mxu0 0.0
    %1553 = vmatpush1.msra.mxu0 0.0
    %1554 = vmatprep.subr.mxu0 0.0
    %1555 = vmatpush1.msra.mxu0 0.0
    %1556 = vmatprep.subr.mxu0 0.0
    %1557 = vmatpush1.msra.mxu0 0.0
    %1558 = vmatprep.subr.mxu0 0.0
    %1559 = vmatpush1.msra.mxu0 0.0
    %1560 = vmatprep.subr.mxu0 0.0
    %1561 = vmatpush1.msra.mxu0 0.0
    %1562 = vmatprep.subr.mxu0 0.0
    %1563 = vmatpush1.msra.mxu0 0.0
    %1564 = vmatprep.subr.mxu0 0.0
    %1565 = vmatpush1.msra.mxu0 0.0
    %1566 = vmatprep.subr.mxu0 0.0
    %1567 = vmatpush1.msra.mxu0 0.0
    %1568 = vmatprep.subr.mxu0 0.0
    %1569 = vmatpush1.msra.mxu0 0.0
    %1570 = vmatprep.subr.mxu0 0.0
    %1571 = vmatpush1.msra.mxu0 0.0
    %1572 = vmatprep.subr.mxu0 0.0
    %1573 = vmatpush1.msra.mxu0 0.0
    %1574 = vmatprep.subr.mxu0 0.0
    %1575 = vmatpush1.msra.mxu0 0.0
    %1576 = vmatprep.subr.mxu0 0.0
    %1577 = vmatpush1.msra.mxu0 0.0
    %1578 = vmatprep.subr.mxu0 0.0
    %1579 = vmatpush1.msra.mxu0 0.0
    %1580 = vmatprep.subr.mxu0 0.0
    %1581 = vmatpush1.msra.mxu0 0.0
    %1582 = vmatprep.subr.mxu0 0.0
    %1583 = vmatpush1.msra.mxu0 0.0
    %1584 = vmatprep.subr.mxu0 0.0
    %1585 = vmatpush1.msra.mxu0 0.0
    %1586 = vmatprep.subr.mxu0 0.0
    %1587 = vmatpush1.msra.mxu0 0.0
    %1588 = vmatprep.subr.mxu0 0.0
    %1589 = vmatpush1.msra.mxu0 0.0
    %1590 = vmatprep.subr.mxu0 0.0
    %1591 = vmatpush1.msra.mxu0 0.0
    %1592 = vmatprep.subr.mxu0 0.0
    %1593 = vmatpush1.msra.mxu0 0.0
    %1594 = vmatprep.subr.mxu0 0.0
    %1595 = vmatpush1.msra.mxu0 0.0
    %1596 = vmatprep.subr.mxu0 0.0
    %1597 = vmatpush1.msra.mxu0 0.0
    %1598 = vmatprep.subr.mxu0 0.0
    %1599 = vmatpush1.msra.mxu0 0.0
    %1600 = vmatprep.mubr.f32.mxu0 0.0
    %1601 = vmatmul.mubr.f32.gmra.mrb[0].mxu0 %v1447
    %v1602 = vpop.f32.mrb[0].mxu0
    %v1603 = vadd.f32 %v1535, %v1602
    %v1604 = vpop.f32.mrb[0].mxu0
    %1605 = vmatprep.mubr.f32.mxu0 0.0
    %1606 = vmatmul.mubr.f32.gmra.mrb[0].mxu0 %v1450
    %v1607 = vpop.f32.mrb[0].mxu0
    %v1608 = vadd.f32 %v1535, %v1607
    %v1609 = vpop.f32.mrb[0].mxu0
    %1610 = vdwg.mxu0
    %v1611 = vld [vmem:[%s2 + $0x120] sm:$0xff]
    %v1612 = vld [vmem:[%s2 + $0x128] sm:$0xff]
    %v1613 = vld [vmem:[%s2 + $0x130] sm:$0xff]
    %v1614 = vld [vmem:[%s2 + $0x138] sm:$0xff]
    %v1615 = vld [vmem:[%s3 + $0xc] sm:$0x1]
    %v1616 = vlaneseq
    %v1617 = vshrl.u32 %v1616, 7
    %v1618 = vsub.s32 0, %v1617
    %v1619 = vrot.slane %v1615, %v1618
    %1620 = vmatprep.subr.mxu0 0.0
    %1621 = vmatpush1.msra.mxu0 %v1611
    %1622 = vmatprep.subr.mxu0 0.0
    %1623 = vmatpush1.msra.mxu0 %v1612
    %1624 = vmatprep.subr.mxu0 0.0
    %1625 = vmatpush1.msra.mxu0 %v1613
    %1626 = vmatprep.subr.mxu0 0.0
    %1627 = vmatpush1.msra.mxu0 %v1614
    %1628 = vmatprep.subr.mxu0 0.0
    %1629 = vmatpush1.msra.mxu0 0.0
    %1630 = vmatprep.subr.mxu0 0.0
    %1631 = vmatpush1.msra.mxu0 0.0
    %1632 = vmatprep.subr.mxu0 0.0
    %1633 = vmatpush1.msra.mxu0 0.0
    %1634 = vmatprep.subr.mxu0 0.0
    %1635 = vmatpush1.msra.mxu0 0.0
    %1636 = vmatprep.subr.mxu0 0.0
    %1637 = vmatpush1.msra.mxu0 0.0
    %1638 = vmatprep.subr.mxu0 0.0
    %1639 = vmatpush1.msra.mxu0 0.0
    %1640 = vmatprep.subr.mxu0 0.0
    %1641 = vmatpush1.msra.mxu0 0.0
    %1642 = vmatprep.subr.mxu0 0.0
    %1643 = vmatpush1.msra.mxu0 0.0
    %1644 = vmatprep.subr.mxu0 0.0
    %1645 = vmatpush1.msra.mxu0 0.0
    %1646 = vmatprep.subr.mxu0 0.0
    %1647 = vmatpush1.msra.mxu0 0.0
    %1648 = vmatprep.subr.mxu0 0.0
    %1649 = vmatpush1.msra.mxu0 0.0
    %1650 = vmatprep.subr.mxu0 0.0
    %1651 = vmatpush1.msra.mxu0 0.0
    %1652 = vmatprep.subr.mxu0 0.0
    %1653 = vmatpush1.msra.mxu0 0.0
    %1654 = vmatprep.subr.mxu0 0.0
    %1655 = vmatpush1.msra.mxu0 0.0
    %1656 = vmatprep.subr.mxu0 0.0
    %1657 = vmatpush1.msra.mxu0 0.0
    %1658 = vmatprep.subr.mxu0 0.0
    %1659 = vmatpush1.msra.mxu0 0.0
    %1660 = vmatprep.subr.mxu0 0.0
    %1661 = vmatpush1.msra.mxu0 0.0
    %1662 = vmatprep.subr.mxu0 0.0
    %1663 = vmatpush1.msra.mxu0 0.0
    %1664 = vmatprep.subr.mxu0 0.0
    %1665 = vmatpush1.msra.mxu0 0.0
    %1666 = vmatprep.subr.mxu0 0.0
    %1667 = vmatpush1.msra.mxu0 0.0
    %1668 = vmatprep.subr.mxu0 0.0
    %1669 = vmatpush1.msra.mxu0 0.0
    %1670 = vmatprep.subr.mxu0 0.0
    %1671 = vmatpush1.msra.mxu0 0.0
    %1672 = vmatprep.subr.mxu0 0.0
    %1673 = vmatpush1.msra.mxu0 0.0
    %1674 = vmatprep.subr.mxu0 0.0
    %1675 = vmatpush1.msra.mxu0 0.0
    %1676 = vmatprep.subr.mxu0 0.0
    %1677 = vmatpush1.msra.mxu0 0.0
    %1678 = vmatprep.subr.mxu0 0.0
    %1679 = vmatpush1.msra.mxu0 0.0
    %1680 = vmatprep.subr.mxu0 0.0
    %1681 = vmatpush1.msra.mxu0 0.0
    %1682 = vmatprep.subr.mxu0 0.0
    %1683 = vmatpush1.msra.mxu0 0.0
    %1684 = vmatprep.mubr.f32.mxu0 0.0
    %1685 = vmatmul.mubr.f32.gmra.mrb[0].mxu0 %v1447
    %v1686 = vpop.f32.mrb[0].mxu0
    %v1687 = vadd.f32 %v1619, %v1686
    %v1688 = vpop.f32.mrb[0].mxu0
    %1689 = vmatprep.mubr.f32.mxu0 0.0
    %1690 = vmatmul.mubr.f32.gmra.mrb[0].mxu0 %v1450
    %v1691 = vpop.f32.mrb[0].mxu0
    %v1692 = vadd.f32 %v1619, %v1691
    %v1693 = vpop.f32.mrb[0].mxu0
    %1694 = vdwg.mxu0
    %v1695 = vld [vmem:[%s2 + $0x140] sm:$0xff]
    %v1696 = vld [vmem:[%s2 + $0x148] sm:$0xff]
    %v1697 = vld [vmem:[%s2 + $0x150] sm:$0xff]
    %v1698 = vld [vmem:[%s2 + $0x158] sm:$0xff]
    %v1699 = vld [vmem:[%s3 + $0xd] sm:$0x1]
    %v1700 = vmul.f32 %v1603, %v300
    %v1701 = vmul.f32 %v1608, %v300
    %v1703 = vsel %vm42, %v1519, 0
    %v1706 = vsel %vm42, %v1524, 0
    %v1709 = vsel %vm42, %v1700, 0
    %v1712 = vsel %vm42, %v1701, 0
    %1714 = vmatprep.subr.mxu0 0.0
    %1715 = vmatpush1.xpose.msra.mxu0 %v1709
    %1716 = vmatprep.subr.mxu0 0.0
    %1717 = vmatpush1.xpose.msra.mxu0 %v1712
    %1718 = vmatprep.subr.mxu0 0.0
    %1719 = vmatpush1.xpose.msra.mxu0 0.0
    %1720 = vmatprep.subr.mxu0 0.0
    %1721 = vmatpush1.xpose.msra.mxu0 0.0
    %1722 = vmatprep.subr.mxu0 0.0
    %1723 = vmatpush1.xpose.msra.mxu0 0.0
    %1724 = vmatprep.subr.mxu0 0.0
    %1725 = vmatpush1.xpose.msra.mxu0 0.0
    %1726 = vmatprep.subr.mxu0 0.0
    %1727 = vmatpush1.xpose.msra.mxu0 0.0
    %1728 = vmatprep.subr.mxu0 0.0
    %1729 = vmatpush1.xpose.msra.mxu0 0.0
    %1730 = vmatprep.subr.mxu0 0.0
    %1731 = vmatpush1.xpose.msra.mxu0 0.0
    %1732 = vmatprep.subr.mxu0 0.0
    %1733 = vmatpush1.xpose.msra.mxu0 0.0
    %1734 = vmatprep.subr.mxu0 0.0
    %1735 = vmatpush1.xpose.msra.mxu0 0.0
    %1736 = vmatprep.subr.mxu0 0.0
    %1737 = vmatpush1.xpose.msra.mxu0 0.0
    %1738 = vmatprep.subr.mxu0 0.0
    %1739 = vmatpush1.xpose.msra.mxu0 0.0
    %1740 = vmatprep.subr.mxu0 0.0
    %1741 = vmatpush1.xpose.msra.mxu0 0.0
    %1742 = vmatprep.subr.mxu0 0.0
    %1743 = vmatpush1.xpose.msra.mxu0 0.0
    %1744 = vmatprep.subr.mxu0 0.0
    %1745 = vmatpush1.xpose.msra.mxu0 0.0
    %1746 = vmatprep.subr.mxu0 0.0
    %1747 = vmatpush1.xpose.msra.mxu0 0.0
    %1748 = vmatprep.subr.mxu0 0.0
    %1749 = vmatpush1.xpose.msra.mxu0 0.0
    %1750 = vmatprep.subr.mxu0 0.0
    %1751 = vmatpush1.xpose.msra.mxu0 0.0
    %1752 = vmatprep.subr.mxu0 0.0
    %1753 = vmatpush1.xpose.msra.mxu0 0.0
    %1754 = vmatprep.subr.mxu0 0.0
    %1755 = vmatpush1.xpose.msra.mxu0 0.0
    %1756 = vmatprep.subr.mxu0 0.0
    %1757 = vmatpush1.xpose.msra.mxu0 0.0
    %1758 = vmatprep.subr.mxu0 0.0
    %1759 = vmatpush1.xpose.msra.mxu0 0.0
    %1760 = vmatprep.subr.mxu0 0.0
    %1761 = vmatpush1.xpose.msra.mxu0 0.0
    %1762 = vmatprep.subr.mxu0 0.0
    %1763 = vmatpush1.xpose.msra.mxu0 0.0
    %1764 = vmatprep.subr.mxu0 0.0
    %1765 = vmatpush1.xpose.msra.mxu0 0.0
    %1766 = vmatprep.subr.mxu0 0.0
    %1767 = vmatpush1.xpose.msra.mxu0 0.0
    %1768 = vmatprep.subr.mxu0 0.0
    %1769 = vmatpush1.xpose.msra.mxu0 0.0
    %1770 = vmatprep.subr.mxu0 0.0
    %1771 = vmatpush1.xpose.msra.mxu0 0.0
    %1772 = vmatprep.subr.mxu0 0.0
    %1773 = vmatpush1.xpose.msra.mxu0 0.0
    %1774 = vmatprep.subr.mxu0 0.0
    %1775 = vmatpush1.xpose.msra.mxu0 0.0
    %1776 = vmatprep.subr.mxu0 0.0
    %1777 = vmatpush1.xpose.msra.mxu0 0.0
    %1778 = vmatprep.mubr.f32.mxu0 0.0
    %1779 = vmatmul.mubr.f32.gmra.mrb[0].mxu0 %v1703
    %v1780 = vpop.f32.mrb[0].mxu0
    %v1781 = vadd.f32 %v27, %v1780
    %v1782 = vpop.f32.mrb[0].mxu0
    %1783 = vmatprep.mubr.f32.mxu0 0.0
    %1784 = vmatmul.mubr.f32.gmra.mrb[0].mxu0 %v1706
    %v1785 = vpop.f32.mrb[0].mxu0
    %v1786 = vadd.f32 %v28, %v1785
    %v1787 = vpop.f32.mrb[0].mxu0
    %1788 = vdwg.mxu0
    %v1789 = vsel %vm390, %v1781, -inf
    %1790 = vmax.xlane.f32.xlu0 %v1789
    %v1791 = vpop.xlane.xlu0 %1790
    %v1792 = vsel %vm390, %v1786, -inf
    %1793 = vmax.xlane.f32.xlu0 %v1792
    %v1794 = vpop.xlane.xlu0 %1793
    %v1795 = vsub.f32 %v1781, %v1791
    %v1796 = vsub.f32 %v1786, %v1794
    %v1797 = vmul.f32 %v1795, 1.442695
    %v1798 = vpow.pop %v1797
    %v1799 = vmul.f32 %v1796, 1.442695
    %v1800 = vpow.pop %v1799
    %v1801 = vsel %vm390, %v1798, 0.0
    %1802 = vadd.xlane.f32.xlu0 %v1801
    %v1803 = vpop.xlane.xlu0 %1802
    %v1804 = vsel %vm390, %v1800, 0.0
    %1805 = vadd.xlane.f32.xlu0 %v1804
    %v1806 = vpop.xlane.xlu0 %1805
    %v1807 = vrcp.pop %v1803
    %v1808 = vrcp.pop %v1806
    %v1809 = vmul.f32 %v1798, %v1807
    %v1810 = vmul.f32 %v1800, %v1808
    %v1811 = vmul.f32 %v1687, %v300
    %v1812 = vmul.f32 %v1692, %v300
    %v1813 = vmul.f32 %v1603, %v418
    %v1814 = vmul.f32 %v1608, %v418
    %v1816 = vsel %vm42, %v1813, 0
    %v1819 = vsel %vm42, %v1814, 0
    %1821 = vmatprep.subr.mxu0 0.0
    %1822 = vmatpush1.xpose.msra.mxu0 %v1816
    %1823 = vmatprep.subr.mxu0 0.0
    %1824 = vmatpush1.xpose.msra.mxu0 %v1819
    %1825 = vmatprep.subr.mxu0 0.0
    %1826 = vmatpush1.xpose.msra.mxu0 0.0
    %1827 = vmatprep.subr.mxu0 0.0
    %1828 = vmatpush1.xpose.msra.mxu0 0.0
    %1829 = vmatprep.subr.mxu0 0.0
    %1830 = vmatpush1.xpose.msra.mxu0 0.0
    %1831 = vmatprep.subr.mxu0 0.0
    %1832 = vmatpush1.xpose.msra.mxu0 0.0
    %1833 = vmatprep.subr.mxu0 0.0
    %1834 = vmatpush1.xpose.msra.mxu0 0.0
    %1835 = vmatprep.subr.mxu0 0.0
    %1836 = vmatpush1.xpose.msra.mxu0 0.0
    %1837 = vmatprep.subr.mxu0 0.0
    %1838 = vmatpush1.xpose.msra.mxu0 0.0
    %1839 = vmatprep.subr.mxu0 0.0
    %1840 = vmatpush1.xpose.msra.mxu0 0.0
    %1841 = vmatprep.subr.mxu0 0.0
    %1842 = vmatpush1.xpose.msra.mxu0 0.0
    %1843 = vmatprep.subr.mxu0 0.0
    %1844 = vmatpush1.xpose.msra.mxu0 0.0
    %1845 = vmatprep.subr.mxu0 0.0
    %1846 = vmatpush1.xpose.msra.mxu0 0.0
    %1847 = vmatprep.subr.mxu0 0.0
    %1848 = vmatpush1.xpose.msra.mxu0 0.0
    %1849 = vmatprep.subr.mxu0 0.0
    %1850 = vmatpush1.xpose.msra.mxu0 0.0
    %1851 = vmatprep.subr.mxu0 0.0
    %1852 = vmatpush1.xpose.msra.mxu0 0.0
    %1853 = vmatprep.subr.mxu0 0.0
    %1854 = vmatpush1.xpose.msra.mxu0 0.0
    %1855 = vmatprep.subr.mxu0 0.0
    %1856 = vmatpush1.xpose.msra.mxu0 0.0
    %1857 = vmatprep.subr.mxu0 0.0
    %1858 = vmatpush1.xpose.msra.mxu0 0.0
    %1859 = vmatprep.subr.mxu0 0.0
    %1860 = vmatpush1.xpose.msra.mxu0 0.0
    %1861 = vmatprep.subr.mxu0 0.0
    %1862 = vmatpush1.xpose.msra.mxu0 0.0
    %1863 = vmatprep.subr.mxu0 0.0
    %1864 = vmatpush1.xpose.msra.mxu0 0.0
    %1865 = vmatprep.subr.mxu0 0.0
    %1866 = vmatpush1.xpose.msra.mxu0 0.0
    %1867 = vmatprep.subr.mxu0 0.0
    %1868 = vmatpush1.xpose.msra.mxu0 0.0
    %1869 = vmatprep.subr.mxu0 0.0
    %1870 = vmatpush1.xpose.msra.mxu0 0.0
    %1871 = vmatprep.subr.mxu0 0.0
    %1872 = vmatpush1.xpose.msra.mxu0 0.0
    %1873 = vmatprep.subr.mxu0 0.0
    %1874 = vmatpush1.xpose.msra.mxu0 0.0
    %1875 = vmatprep.subr.mxu0 0.0
    %1876 = vmatpush1.xpose.msra.mxu0 0.0
    %1877 = vmatprep.subr.mxu0 0.0
    %1878 = vmatpush1.xpose.msra.mxu0 0.0
    %1879 = vmatprep.subr.mxu0 0.0
    %1880 = vmatpush1.xpose.msra.mxu0 0.0
    %1881 = vmatprep.subr.mxu0 0.0
    %1882 = vmatpush1.xpose.msra.mxu0 0.0
    %1883 = vmatprep.subr.mxu0 0.0
    %1884 = vmatpush1.xpose.msra.mxu0 0.0
    %1885 = vmatprep.mubr.f32.mxu0 0.0
    %1886 = vmatmul.mubr.f32.gmra.mrb[0].mxu0 %v1703
    %v1887 = vpop.f32.mrb[0].mxu0
    %v1888 = vadd.f32 %v27, %v1887
    %v1889 = vpop.f32.mrb[0].mxu0
    %1890 = vmatprep.mubr.f32.mxu0 0.0
    %1891 = vmatmul.mubr.f32.gmra.mrb[0].mxu0 %v1706
    %v1892 = vpop.f32.mrb[0].mxu0
    %v1893 = vadd.f32 %v28, %v1892
    %v1894 = vpop.f32.mrb[0].mxu0
    %1895 = vdwg.mxu0
    %v1896 = vsel %vm390, %v1888, -inf
    %1897 = vmax.xlane.f32.xlu0 %v1896
    %v1898 = vpop.xlane.xlu0 %1897
    %v1899 = vsel %vm390, %v1893, -inf
    %1900 = vmax.xlane.f32.xlu0 %v1899
    %v1901 = vpop.xlane.xlu0 %1900
    %v1902 = vsub.f32 %v1888, %v1898
    %v1903 = vsub.f32 %v1893, %v1901
    %v1904 = vmul.f32 %v1902, 1.442695
    %v1905 = vpow.pop %v1904
    %v1906 = vmul.f32 %v1903, 1.442695
    %v1907 = vpow.pop %v1906
    %v1908 = vsel %vm390, %v1905, 0.0
    %1909 = vadd.xlane.f32.xlu0 %v1908
    %v1910 = vpop.xlane.xlu0 %1909
    %v1911 = vsel %vm390, %v1907, 0.0
    %1912 = vadd.xlane.f32.xlu0 %v1911
    %v1913 = vpop.xlane.xlu0 %1912
    %v1914 = vrcp.pop %v1910
    %v1915 = vrcp.pop %v1913
    %v1916 = vmul.f32 %v1905, %v1914
    %v1917 = vmul.f32 %v1907, %v1915
    %v1918 = vmul.f32 %v1687, %v418
    %v1919 = vmul.f32 %v1692, %v418
    %v1921 = vsel %vm390, %v1916, 0
    %v1924 = vsel %vm390, %v1917, 0
    %1926 = vmatprep.subr.mxu0 0.0
    %1927 = vmatpush1.msra.mxu0 %v1918
    %1928 = vmatprep.subr.mxu0 0.0
    %1929 = vmatpush1.msra.mxu0 %v1919
    %1930 = vmatprep.subr.mxu0 0.0
    %1931 = vmatpush1.msra.mxu0 0.0
    %1932 = vmatprep.subr.mxu0 0.0
    %1933 = vmatpush1.msra.mxu0 0.0
    %1934 = vmatprep.subr.mxu0 0.0
    %1935 = vmatpush1.msra.mxu0 0.0
    %1936 = vmatprep.subr.mxu0 0.0
    %1937 = vmatpush1.msra.mxu0 0.0
    %1938 = vmatprep.subr.mxu0 0.0
    %1939 = vmatpush1.msra.mxu0 0.0
    %1940 = vmatprep.subr.mxu0 0.0
    %1941 = vmatpush1.msra.mxu0 0.0
    %1942 = vmatprep.subr.mxu0 0.0
    %1943 = vmatpush1.msra.mxu0 0.0
    %1944 = vmatprep.subr.mxu0 0.0
    %1945 = vmatpush1.msra.mxu0 0.0
    %1946 = vmatprep.subr.mxu0 0.0
    %1947 = vmatpush1.msra.mxu0 0.0
    %1948 = vmatprep.subr.mxu0 0.0
    %1949 = vmatpush1.msra.mxu0 0.0
    %1950 = vmatprep.subr.mxu0 0.0
    %1951 = vmatpush1.msra.mxu0 0.0
    %1952 = vmatprep.subr.mxu0 0.0
    %1953 = vmatpush1.msra.mxu0 0.0
    %1954 = vmatprep.subr.mxu0 0.0
    %1955 = vmatpush1.msra.mxu0 0.0
    %1956 = vmatprep.subr.mxu0 0.0
    %1957 = vmatpush1.msra.mxu0 0.0
    %1958 = vmatprep.subr.mxu0 0.0
    %1959 = vmatpush1.msra.mxu0 0.0
    %1960 = vmatprep.subr.mxu0 0.0
    %1961 = vmatpush1.msra.mxu0 0.0
    %1962 = vmatprep.subr.mxu0 0.0
    %1963 = vmatpush1.msra.mxu0 0.0
    %1964 = vmatprep.subr.mxu0 0.0
    %1965 = vmatpush1.msra.mxu0 0.0
    %1966 = vmatprep.subr.mxu0 0.0
    %1967 = vmatpush1.msra.mxu0 0.0
    %1968 = vmatprep.subr.mxu0 0.0
    %1969 = vmatpush1.msra.mxu0 0.0
    %1970 = vmatprep.subr.mxu0 0.0
    %1971 = vmatpush1.msra.mxu0 0.0
    %1972 = vmatprep.subr.mxu0 0.0
    %1973 = vmatpush1.msra.mxu0 0.0
    %1974 = vmatprep.subr.mxu0 0.0
    %1975 = vmatpush1.msra.mxu0 0.0
    %1976 = vmatprep.subr.mxu0 0.0
    %1977 = vmatpush1.msra.mxu0 0.0
    %1978 = vmatprep.subr.mxu0 0.0
    %1979 = vmatpush1.msra.mxu0 0.0
    %1980 = vmatprep.subr.mxu0 0.0
    %1981 = vmatpush1.msra.mxu0 0.0
    %1982 = vmatprep.subr.mxu0 0.0
    %1983 = vmatpush1.msra.mxu0 0.0
    %1984 = vmatprep.subr.mxu0 0.0
    %1985 = vmatpush1.msra.mxu0 0.0
    %1986 = vmatprep.subr.mxu0 0.0
    %1987 = vmatpush1.msra.mxu0 0.0
    %1988 = vmatprep.subr.mxu0 0.0
    %1989 = vmatpush1.msra.mxu0 0.0
    %1990 = vmatprep.mubr.f32.mxu0 0.0
    %1991 = vmatmul.mubr.f32.gmra.mrb[0].mxu0 %v1921
    %v1992 = vpop.f32.mrb[0].mxu0
    %v1993 = vadd.f32 0.0, %v1992
    %v1994 = vpop.f32.mrb[0].mxu0
    %1995 = vmatprep.mubr.f32.mxu0 0.0
    %1996 = vmatmul.mubr.f32.gmra.mrb[0].mxu0 %v1924
    %v1997 = vpop.f32.mrb[0].mxu0
    %v1998 = vadd.f32 0.0, %v1997
    %v1999 = vpop.f32.mrb[0].mxu0
    %2000 = vdwg.mxu0
    %v2002 = vsel %vm390, %v1809, 0
    %v2005 = vsel %vm390, %v1810, 0
    %2007 = vmatprep.subr.mxu0 0.0
    %2008 = vmatpush1.msra.mxu0 %v1811
    %2009 = vmatprep.subr.mxu0 0.0
    %2010 = vmatpush1.msra.mxu0 %v1812
    %2011 = vmatprep.subr.mxu0 0.0
    %2012 = vmatpush1.msra.mxu0 0.0
    %2013 = vmatprep.subr.mxu0 0.0
    %2014 = vmatpush1.msra.mxu0 0.0
    %2015 = vmatprep.subr.mxu0 0.0
    %2016 = vmatpush1.msra.mxu0 0.0
    %2017 = vmatprep.subr.mxu0 0.0
    %2018 = vmatpush1.msra.mxu0 0.0
    %2019 = vmatprep.subr.mxu0 0.0
    %2020 = vmatpush1.msra.mxu0 0.0
    %2021 = vmatprep.subr.mxu0 0.0
    %2022 = vmatpush1.msra.mxu0 0.0
    %2023 = vmatprep.subr.mxu0 0.0
    %2024 = vmatpush1.msra.mxu0 0.0
    %2025 = vmatprep.subr.mxu0 0.0
    %2026 = vmatpush1.msra.mxu0 0.0
    %2027 = vmatprep.subr.mxu0 0.0
    %2028 = vmatpush1.msra.mxu0 0.0
    %2029 = vmatprep.subr.mxu0 0.0
    %2030 = vmatpush1.msra.mxu0 0.0
    %2031 = vmatprep.subr.mxu0 0.0
    %2032 = vmatpush1.msra.mxu0 0.0
    %2033 = vmatprep.subr.mxu0 0.0
    %2034 = vmatpush1.msra.mxu0 0.0
    %2035 = vmatprep.subr.mxu0 0.0
    %2036 = vmatpush1.msra.mxu0 0.0
    %2037 = vmatprep.subr.mxu0 0.0
    %2038 = vmatpush1.msra.mxu0 0.0
    %2039 = vmatprep.subr.mxu0 0.0
    %2040 = vmatpush1.msra.mxu0 0.0
    %2041 = vmatprep.subr.mxu0 0.0
    %2042 = vmatpush1.msra.mxu0 0.0
    %2043 = vmatprep.subr.mxu0 0.0
    %2044 = vmatpush1.msra.mxu0 0.0
    %2045 = vmatprep.subr.mxu0 0.0
    %2046 = vmatpush1.msra.mxu0 0.0
    %2047 = vmatprep.subr.mxu0 0.0
    %2048 = vmatpush1.msra.mxu0 0.0
    %2049 = vmatprep.subr.mxu0 0.0
    %2050 = vmatpush1.msra.mxu0 0.0
    %2051 = vmatprep.subr.mxu0 0.0
    %2052 = vmatpush1.msra.mxu0 0.0
    %2053 = vmatprep.subr.mxu0 0.0
    %2054 = vmatpush1.msra.mxu0 0.0
    %2055 = vmatprep.subr.mxu0 0.0
    %2056 = vmatpush1.msra.mxu0 0.0
    %2057 = vmatprep.subr.mxu0 0.0
    %2058 = vmatpush1.msra.mxu0 0.0
    %2059 = vmatprep.subr.mxu0 0.0
    %2060 = vmatpush1.msra.mxu0 0.0
    %2061 = vmatprep.subr.mxu0 0.0
    %2062 = vmatpush1.msra.mxu0 0.0
    %2063 = vmatprep.subr.mxu0 0.0
    %2064 = vmatpush1.msra.mxu0 0.0
    %2065 = vmatprep.subr.mxu0 0.0
    %2066 = vmatpush1.msra.mxu0 0.0
    %2067 = vmatprep.subr.mxu0 0.0
    %2068 = vmatpush1.msra.mxu0 0.0
    %2069 = vmatprep.subr.mxu0 0.0
    %2070 = vmatpush1.msra.mxu0 0.0
    %2071 = vmatprep.mubr.f32.mxu0 0.0
    %2072 = vmatmul.mubr.f32.gmra.mrb[0].mxu0 %v2002
    %v2073 = vpop.f32.mrb[0].mxu0
    %v2074 = vadd.f32 %v1993, %v2073
    %v2075 = vpop.f32.mrb[0].mxu0
    %2076 = vmatprep.mubr.f32.mxu0 0.0
    %2077 = vmatmul.mubr.f32.gmra.mrb[0].mxu0 %v2005
    %v2078 = vpop.f32.mrb[0].mxu0
    %v2079 = vadd.f32 %v1998, %v2078
    %v2080 = vpop.f32.mrb[0].mxu0
    %2081 = vdwg.mxu0
    %v2082 = vmul.f32 %v1603, %v691
    %v2083 = vmul.f32 %v1608, %v691
    %v2085 = vsel %vm42, %v2082, 0
    %v2088 = vsel %vm42, %v2083, 0
    %2090 = vmatprep.subr.mxu0 0.0
    %2091 = vmatpush1.xpose.msra.mxu0 %v2085
    %2092 = vmatprep.subr.mxu0 0.0
    %2093 = vmatpush1.xpose.msra.mxu0 %v2088
    %2094 = vmatprep.subr.mxu0 0.0
    %2095 = vmatpush1.xpose.msra.mxu0 0.0
    %2096 = vmatprep.subr.mxu0 0.0
    %2097 = vmatpush1.xpose.msra.mxu0 0.0
    %2098 = vmatprep.subr.mxu0 0.0
    %2099 = vmatpush1.xpose.msra.mxu0 0.0
    %2100 = vmatprep.subr.mxu0 0.0
    %2101 = vmatpush1.xpose.msra.mxu0 0.0
    %2102 = vmatprep.subr.mxu0 0.0
    %2103 = vmatpush1.xpose.msra.mxu0 0.0
    %2104 = vmatprep.subr.mxu0 0.0
    %2105 = vmatpush1.xpose.msra.mxu0 0.0
    %2106 = vmatprep.subr.mxu0 0.0
    %2107 = vmatpush1.xpose.msra.mxu0 0.0
    %2108 = vmatprep.subr.mxu0 0.0
    %2109 = vmatpush1.xpose.msra.mxu0 0.0
    %2110 = vmatprep.subr.mxu0 0.0
    %2111 = vmatpush1.xpose.msra.mxu0 0.0
    %2112 = vmatprep.subr.mxu0 0.0
    %2113 = vmatpush1.xpose.msra.mxu0 0.0
    %2114 = vmatprep.subr.mxu0 0.0
    %2115 = vmatpush1.xpose.msra.mxu0 0.0
    %2116 = vmatprep.subr.mxu0 0.0
    %2117 = vmatpush1.xpose.msra.mxu0 0.0
    %2118 = vmatprep.subr.mxu0 0.0
    %2119 = vmatpush1.xpose.msra.mxu0 0.0
    %2120 = vmatprep.subr.mxu0 0.0
    %2121 = vmatpush1.xpose.msra.mxu0 0.0
    %2122 = vmatprep.subr.mxu0 0.0
    %2123 = vmatpush1.xpose.msra.mxu0 0.0
    %2124 = vmatprep.subr.mxu0 0.0
    %2125 = vmatpush1.xpose.msra.mxu0 0.0
    %2126 = vmatprep.subr.mxu0 0.0
    %2127 = vmatpush1.xpose.msra.mxu0 0.0
    %2128 = vmatprep.subr.mxu0 0.0
    %2129 = vmatpush1.xpose.msra.mxu0 0.0
    %2130 = vmatprep.subr.mxu0 0.0
    %2131 = vmatpush1.xpose.msra.mxu0 0.0
    %2132 = vmatprep.subr.mxu0 0.0
    %2133 = vmatpush1.xpose.msra.mxu0 0.0
    %2134 = vmatprep.subr.mxu0 0.0
    %2135 = vmatpush1.xpose.msra.mxu0 0.0
    %2136 = vmatprep.subr.mxu0 0.0
    %2137 = vmatpush1.xpose.msra.mxu0 0.0
    %2138 = vmatprep.subr.mxu0 0.0
    %2139 = vmatpush1.xpose.msra.mxu0 0.0
    %2140 = vmatprep.subr.mxu0 0.0
    %2141 = vmatpush1.xpose.msra.mxu0 0.0
    %2142 = vmatprep.subr.mxu0 0.0
    %2143 = vmatpush1.xpose.msra.mxu0 0.0
    %2144 = vmatprep.subr.mxu0 0.0
    %2145 = vmatpush1.xpose.msra.mxu0 0.0
    %2146 = vmatprep.subr.mxu0 0.0
    %2147 = vmatpush1.xpose.msra.mxu0 0.0
    %2148 = vmatprep.subr.mxu0 0.0
    %2149 = vmatpush1.xpose.msra.mxu0 0.0
    %2150 = vmatprep.subr.mxu0 0.0
    %2151 = vmatpush1.xpose.msra.mxu0 0.0
    %2152 = vmatprep.subr.mxu0 0.0
    %2153 = vmatpush1.xpose.msra.mxu0 0.0
    %2154 = vmatprep.mubr.f32.mxu0 0.0
    %2155 = vmatmul.mubr.f32.gmra.mrb[0].mxu0 %v1703
    %v2156 = vpop.f32.mrb[0].mxu0
    %v2157 = vadd.f32 %v27, %v2156
    %v2158 = vpop.f32.mrb[0].mxu0
    %2159 = vmatprep.mubr.f32.mxu0 0.0
    %2160 = vmatmul.mubr.f32.gmra.mrb[0].mxu0 %v1706
    %v2161 = vpop.f32.mrb[0].mxu0
    %v2162 = vadd.f32 %v28, %v2161
    %v2163 = vpop.f32.mrb[0].mxu0
    %2164 = vdwg.mxu0
    %v2165 = vsel %vm390, %v2157, -inf
    %2166 = vmax.xlane.f32.xlu0 %v2165
    %v2167 = vpop.xlane.xlu0 %2166
    %v2168 = vsel %vm390, %v2162, -inf
    %2169 = vmax.xlane.f32.xlu0 %v2168
    %v2170 = vpop.xlane.xlu0 %2169
    %v2171 = vsub.f32 %v2157, %v2167
    %v2172 = vsub.f32 %v2162, %v2170
    %v2173 = vmul.f32 %v2171, 1.442695
    %v2174 = vpow.pop %v2173
    %v2175 = vmul.f32 %v2172, 1.442695
    %v2176 = vpow.pop %v2175
    %v2177 = vsel %vm390, %v2174, 0.0
    %2178 = vadd.xlane.f32.xlu0 %v2177
    %v2179 = vpop.xlane.xlu0 %2178
    %v2180 = vsel %vm390, %v2176, 0.0
    %2181 = vadd.xlane.f32.xlu0 %v2180
    %v2182 = vpop.xlane.xlu0 %2181
    %v2183 = vrcp.pop %v2179
    %v2184 = vrcp.pop %v2182
    %v2185 = vmul.f32 %v2174, %v2183
    %v2186 = vmul.f32 %v2176, %v2184
    %v2187 = vmul.f32 %v1687, %v691
    %v2188 = vmul.f32 %v1692, %v691
    %v2190 = vsel %vm390, %v2185, 0
    %v2193 = vsel %vm390, %v2186, 0
    %2195 = vmatprep.subr.mxu0 0.0
    %2196 = vmatpush1.msra.mxu0 %v2187
    %2197 = vmatprep.subr.mxu0 0.0
    %2198 = vmatpush1.msra.mxu0 %v2188
    %2199 = vmatprep.subr.mxu0 0.0
    %2200 = vmatpush1.msra.mxu0 0.0
    %2201 = vmatprep.subr.mxu0 0.0
    %2202 = vmatpush1.msra.mxu0 0.0
    %2203 = vmatprep.subr.mxu0 0.0
    %2204 = vmatpush1.msra.mxu0 0.0
    %2205 = vmatprep.subr.mxu0 0.0
    %2206 = vmatpush1.msra.mxu0 0.0
    %2207 = vmatprep.subr.mxu0 0.0
    %2208 = vmatpush1.msra.mxu0 0.0
    %2209 = vmatprep.subr.mxu0 0.0
    %2210 = vmatpush1.msra.mxu0 0.0
    %2211 = vmatprep.subr.mxu0 0.0
    %2212 = vmatpush1.msra.mxu0 0.0
    %2213 = vmatprep.subr.mxu0 0.0
    %2214 = vmatpush1.msra.mxu0 0.0
    %2215 = vmatprep.subr.mxu0 0.0
    %2216 = vmatpush1.msra.mxu0 0.0
    %2217 = vmatprep.subr.mxu0 0.0
    %2218 = vmatpush1.msra.mxu0 0.0
    %2219 = vmatprep.subr.mxu0 0.0
    %2220 = vmatpush1.msra.mxu0 0.0
    %2221 = vmatprep.subr.mxu0 0.0
    %2222 = vmatpush1.msra.mxu0 0.0
    %2223 = vmatprep.subr.mxu0 0.0
    %2224 = vmatpush1.msra.mxu0 0.0
    %2225 = vmatprep.subr.mxu0 0.0
    %2226 = vmatpush1.msra.mxu0 0.0
    %2227 = vmatprep.subr.mxu0 0.0
    %2228 = vmatpush1.msra.mxu0 0.0
    %2229 = vmatprep.subr.mxu0 0.0
    %2230 = vmatpush1.msra.mxu0 0.0
    %2231 = vmatprep.subr.mxu0 0.0
    %2232 = vmatpush1.msra.mxu0 0.0
    %2233 = vmatprep.subr.mxu0 0.0
    %2234 = vmatpush1.msra.mxu0 0.0
    %2235 = vmatprep.subr.mxu0 0.0
    %2236 = vmatpush1.msra.mxu0 0.0
    %2237 = vmatprep.subr.mxu0 0.0
    %2238 = vmatpush1.msra.mxu0 0.0
    %2239 = vmatprep.subr.mxu0 0.0
    %2240 = vmatpush1.msra.mxu0 0.0
    %2241 = vmatprep.subr.mxu0 0.0
    %2242 = vmatpush1.msra.mxu0 0.0
    %2243 = vmatprep.subr.mxu0 0.0
    %2244 = vmatpush1.msra.mxu0 0.0
    %2245 = vmatprep.subr.mxu0 0.0
    %2246 = vmatpush1.msra.mxu0 0.0
    %2247 = vmatprep.subr.mxu0 0.0
    %2248 = vmatpush1.msra.mxu0 0.0
    %2249 = vmatprep.subr.mxu0 0.0
    %2250 = vmatpush1.msra.mxu0 0.0
    %2251 = vmatprep.subr.mxu0 0.0
    %2252 = vmatpush1.msra.mxu0 0.0
    %2253 = vmatprep.subr.mxu0 0.0
    %2254 = vmatpush1.msra.mxu0 0.0
    %2255 = vmatprep.subr.mxu0 0.0
    %2256 = vmatpush1.msra.mxu0 0.0
    %2257 = vmatprep.subr.mxu0 0.0
    %2258 = vmatpush1.msra.mxu0 0.0
    %2259 = vmatprep.mubr.f32.mxu0 0.0
    %2260 = vmatmul.mubr.f32.gmra.mrb[0].mxu0 %v2190
    %v2261 = vpop.f32.mrb[0].mxu0
    %v2262 = vadd.f32 0.0, %v2261
    %v2263 = vpop.f32.mrb[0].mxu0
    %2264 = vmatprep.mubr.f32.mxu0 0.0
    %2265 = vmatmul.mubr.f32.gmra.mrb[0].mxu0 %v2193
    %v2266 = vpop.f32.mrb[0].mxu0
    %v2267 = vadd.f32 0.0, %v2266
    %v2268 = vpop.f32.mrb[0].mxu0
    %2269 = vdwg.mxu0
    %v2270 = vadd.f32 %v2074, %v2262
    %v2271 = vadd.f32 %v2079, %v2267
    %v2272 = vmul.f32 %v1603, %v885
    %v2273 = vmul.f32 %v1608, %v885
    %v2275 = vsel %vm42, %v2272, 0
    %v2278 = vsel %vm42, %v2273, 0
    %2280 = vmatprep.subr.mxu0 0.0
    %2281 = vmatpush1.xpose.msra.mxu0 %v2275
    %2282 = vmatprep.subr.mxu0 0.0
    %2283 = vmatpush1.xpose.msra.mxu0 %v2278
    %2284 = vmatprep.subr.mxu0 0.0
    %2285 = vmatpush1.xpose.msra.mxu0 0.0
    %2286 = vmatprep.subr.mxu0 0.0
    %2287 = vmatpush1.xpose.msra.mxu0 0.0
    %2288 = vmatprep.subr.mxu0 0.0
    %2289 = vmatpush1.xpose.msra.mxu0 0.0
    %2290 = vmatprep.subr.mxu0 0.0
    %2291 = vmatpush1.xpose.msra.mxu0 0.0
    %2292 = vmatprep.subr.mxu0 0.0
    %2293 = vmatpush1.xpose.msra.mxu0 0.0
    %2294 = vmatprep.subr.mxu0 0.0
    %2295 = vmatpush1.xpose.msra.mxu0 0.0
    %2296 = vmatprep.subr.mxu0 0.0
    %2297 = vmatpush1.xpose.msra.mxu0 0.0
    %2298 = vmatprep.subr.mxu0 0.0
    %2299 = vmatpush1.xpose.msra.mxu0 0.0
    %2300 = vmatprep.subr.mxu0 0.0
    %2301 = vmatpush1.xpose.msra.mxu0 0.0
    %2302 = vmatprep.subr.mxu0 0.0
    %2303 = vmatpush1.xpose.msra.mxu0 0.0
    %2304 = vmatprep.subr.mxu0 0.0
    %2305 = vmatpush1.xpose.msra.mxu0 0.0
    %2306 = vmatprep.subr.mxu0 0.0
    %2307 = vmatpush1.xpose.msra.mxu0 0.0
    %2308 = vmatprep.subr.mxu0 0.0
    %2309 = vmatpush1.xpose.msra.mxu0 0.0
    %2310 = vmatprep.subr.mxu0 0.0
    %2311 = vmatpush1.xpose.msra.mxu0 0.0
    %2312 = vmatprep.subr.mxu0 0.0
    %2313 = vmatpush1.xpose.msra.mxu0 0.0
    %2314 = vmatprep.subr.mxu0 0.0
    %2315 = vmatpush1.xpose.msra.mxu0 0.0
    %2316 = vmatprep.subr.mxu0 0.0
    %2317 = vmatpush1.xpose.msra.mxu0 0.0
    %2318 = vmatprep.subr.mxu0 0.0
    %2319 = vmatpush1.xpose.msra.mxu0 0.0
    %2320 = vmatprep.subr.mxu0 0.0
    %2321 = vmatpush1.xpose.msra.mxu0 0.0
    %2322 = vmatprep.subr.mxu0 0.0
    %2323 = vmatpush1.xpose.msra.mxu0 0.0
    %2324 = vmatprep.subr.mxu0 0.0
    %2325 = vmatpush1.xpose.msra.mxu0 0.0
    %2326 = vmatprep.subr.mxu0 0.0
    %2327 = vmatpush1.xpose.msra.mxu0 0.0
    %2328 = vmatprep.subr.mxu0 0.0
    %2329 = vmatpush1.xpose.msra.mxu0 0.0
    %2330 = vmatprep.subr.mxu0 0.0
    %2331 = vmatpush1.xpose.msra.mxu0 0.0
    %2332 = vmatprep.subr.mxu0 0.0
    %2333 = vmatpush1.xpose.msra.mxu0 0.0
    %2334 = vmatprep.subr.mxu0 0.0
    %2335 = vmatpush1.xpose.msra.mxu0 0.0
    %2336 = vmatprep.subr.mxu0 0.0
    %2337 = vmatpush1.xpose.msra.mxu0 0.0
    %2338 = vmatprep.subr.mxu0 0.0
    %2339 = vmatpush1.xpose.msra.mxu0 0.0
    %2340 = vmatprep.subr.mxu0 0.0
    %2341 = vmatpush1.xpose.msra.mxu0 0.0
    %2342 = vmatprep.subr.mxu0 0.0
    %2343 = vmatpush1.xpose.msra.mxu0 0.0
    %2344 = vmatprep.mubr.f32.mxu0 0.0
    %2345 = vmatmul.mubr.f32.gmra.mrb[0].mxu0 %v1703
    %v2346 = vpop.f32.mrb[0].mxu0
    %v2347 = vadd.f32 %v27, %v2346
    %v2348 = vpop.f32.mrb[0].mxu0
    %2349 = vmatprep.mubr.f32.mxu0 0.0
    %2350 = vmatmul.mubr.f32.gmra.mrb[0].mxu0 %v1706
    %v2351 = vpop.f32.mrb[0].mxu0
    %v2352 = vadd.f32 %v28, %v2351
    %v2353 = vpop.f32.mrb[0].mxu0
    %2354 = vdwg.mxu0
    %v2355 = vsel %vm390, %v2347, -inf
    %2356 = vmax.xlane.f32.xlu0 %v2355
    %v2357 = vpop.xlane.xlu0 %2356
    %v2358 = vsel %vm390, %v2352, -inf
    %2359 = vmax.xlane.f32.xlu0 %v2358
    %v2360 = vpop.xlane.xlu0 %2359
    %v2361 = vsub.f32 %v2347, %v2357
    %v2362 = vsub.f32 %v2352, %v2360
    %v2363 = vmul.f32 %v2361, 1.442695
    %v2364 = vpow.pop %v2363
    %v2365 = vmul.f32 %v2362, 1.442695
    %v2366 = vpow.pop %v2365
    %v2367 = vsel %vm390, %v2364, 0.0
    %2368 = vadd.xlane.f32.xlu0 %v2367
    %v2369 = vpop.xlane.xlu0 %2368
    %v2370 = vsel %vm390, %v2366, 0.0
    %2371 = vadd.xlane.f32.xlu0 %v2370
    %v2372 = vpop.xlane.xlu0 %2371
    %v2373 = vrcp.pop %v2369
    %v2374 = vrcp.pop %v2372
    %v2375 = vmul.f32 %v2364, %v2373
    %v2376 = vmul.f32 %v2366, %v2374
    %v2377 = vmul.f32 %v1687, %v885
    %v2378 = vmul.f32 %v1692, %v885
    %v2380 = vsel %vm390, %v2375, 0
    %v2383 = vsel %vm390, %v2376, 0
    %2385 = vmatprep.subr.mxu0 0.0
    %2386 = vmatpush1.msra.mxu0 %v2377
    %2387 = vmatprep.subr.mxu0 0.0
    %2388 = vmatpush1.msra.mxu0 %v2378
    %2389 = vmatprep.subr.mxu0 0.0
    %2390 = vmatpush1.msra.mxu0 0.0
    %2391 = vmatprep.subr.mxu0 0.0
    %2392 = vmatpush1.msra.mxu0 0.0
    %2393 = vmatprep.subr.mxu0 0.0
    %2394 = vmatpush1.msra.mxu0 0.0
    %2395 = vmatprep.subr.mxu0 0.0
    %2396 = vmatpush1.msra.mxu0 0.0
    %2397 = vmatprep.subr.mxu0 0.0
    %2398 = vmatpush1.msra.mxu0 0.0
    %2399 = vmatprep.subr.mxu0 0.0
    %2400 = vmatpush1.msra.mxu0 0.0
    %2401 = vmatprep.subr.mxu0 0.0
    %2402 = vmatpush1.msra.mxu0 0.0
    %2403 = vmatprep.subr.mxu0 0.0
    %2404 = vmatpush1.msra.mxu0 0.0
    %2405 = vmatprep.subr.mxu0 0.0
    %2406 = vmatpush1.msra.mxu0 0.0
    %2407 = vmatprep.subr.mxu0 0.0
    %2408 = vmatpush1.msra.mxu0 0.0
    %2409 = vmatprep.subr.mxu0 0.0
    %2410 = vmatpush1.msra.mxu0 0.0
    %2411 = vmatprep.subr.mxu0 0.0
    %2412 = vmatpush1.msra.mxu0 0.0
    %2413 = vmatprep.subr.mxu0 0.0
    %2414 = vmatpush1.msra.mxu0 0.0
    %2415 = vmatprep.subr.mxu0 0.0
    %2416 = vmatpush1.msra.mxu0 0.0
    %2417 = vmatprep.subr.mxu0 0.0
    %2418 = vmatpush1.msra.mxu0 0.0
    %2419 = vmatprep.subr.mxu0 0.0
    %2420 = vmatpush1.msra.mxu0 0.0
    %2421 = vmatprep.subr.mxu0 0.0
    %2422 = vmatpush1.msra.mxu0 0.0
    %2423 = vmatprep.subr.mxu0 0.0
    %2424 = vmatpush1.msra.mxu0 0.0
    %2425 = vmatprep.subr.mxu0 0.0
    %2426 = vmatpush1.msra.mxu0 0.0
    %2427 = vmatprep.subr.mxu0 0.0
    %2428 = vmatpush1.msra.mxu0 0.0
    %2429 = vmatprep.subr.mxu0 0.0
    %2430 = vmatpush1.msra.mxu0 0.0
    %2431 = vmatprep.subr.mxu0 0.0
    %2432 = vmatpush1.msra.mxu0 0.0
    %2433 = vmatprep.subr.mxu0 0.0
    %2434 = vmatpush1.msra.mxu0 0.0
    %2435 = vmatprep.subr.mxu0 0.0
    %2436 = vmatpush1.msra.mxu0 0.0
    %2437 = vmatprep.subr.mxu0 0.0
    %2438 = vmatpush1.msra.mxu0 0.0
    %2439 = vmatprep.subr.mxu0 0.0
    %2440 = vmatpush1.msra.mxu0 0.0
    %2441 = vmatprep.subr.mxu0 0.0
    %2442 = vmatpush1.msra.mxu0 0.0
    %2443 = vmatprep.subr.mxu0 0.0
    %2444 = vmatpush1.msra.mxu0 0.0
    %2445 = vmatprep.subr.mxu0 0.0
    %2446 = vmatpush1.msra.mxu0 0.0
    %2447 = vmatprep.subr.mxu0 0.0
    %2448 = vmatpush1.msra.mxu0 0.0
    %2449 = vmatprep.mubr.f32.mxu0 0.0
    %2450 = vmatmul.mubr.f32.gmra.mrb[0].mxu0 %v2380
    %v2451 = vpop.f32.mrb[0].mxu0
    %v2452 = vadd.f32 0.0, %v2451
    %v2453 = vpop.f32.mrb[0].mxu0
    %2454 = vmatprep.mubr.f32.mxu0 0.0
    %2455 = vmatmul.mubr.f32.gmra.mrb[0].mxu0 %v2383
    %v2456 = vpop.f32.mrb[0].mxu0
    %v2457 = vadd.f32 0.0, %v2456
    %v2458 = vpop.f32.mrb[0].mxu0
    %2459 = vdwg.mxu0
    %v2460 = vadd.f32 %v2270, %v2452
    %v2461 = vadd.f32 %v2271, %v2457
    %v2462 = vlaneseq
    %v2463 = vshrl.u32 %v2462, 7
    %v2464 = vsub.s32 0, %v2463
    %v2465 = vrot.slane %v1699, %v2464
    %v2467 = vsel %vm42, %v2460, 0
    %v2470 = vsel %vm42, %v2461, 0
    %2472 = vmatprep.subr.mxu0 0.0
    %2473 = vmatpush1.msra.mxu0 %v1695
    %2474 = vmatprep.subr.mxu0 0.0
    %2475 = vmatpush1.msra.mxu0 %v1696
    %2476 = vmatprep.subr.mxu0 0.0
    %2477 = vmatpush1.msra.mxu0 %v1697
    %2478 = vmatprep.subr.mxu0 0.0
    %2479 = vmatpush1.msra.mxu0 %v1698
    %2480 = vmatprep.subr.mxu0 0.0
    %2481 = vmatpush1.msra.mxu0 0.0
    %2482 = vmatprep.subr.mxu0 0.0
    %2483 = vmatpush1.msra.mxu0 0.0
    %2484 = vmatprep.subr.mxu0 0.0
    %2485 = vmatpush1.msra.mxu0 0.0
    %2486 = vmatprep.subr.mxu0 0.0
    %2487 = vmatpush1.msra.mxu0 0.0
    %2488 = vmatprep.subr.mxu0 0.0
    %2489 = vmatpush1.msra.mxu0 0.0
    %2490 = vmatprep.subr.mxu0 0.0
    %2491 = vmatpush1.msra.mxu0 0.0
    %2492 = vmatprep.subr.mxu0 0.0
    %2493 = vmatpush1.msra.mxu0 0.0
    %2494 = vmatprep.subr.mxu0 0.0
    %2495 = vmatpush1.msra.mxu0 0.0
    %2496 = vmatprep.subr.mxu0 0.0
    %2497 = vmatpush1.msra.mxu0 0.0
    %2498 = vmatprep.subr.mxu0 0.0
    %2499 = vmatpush1.msra.mxu0 0.0
    %2500 = vmatprep.subr.mxu0 0.0
    %2501 = vmatpush1.msra.mxu0 0.0
    %2502 = vmatprep.subr.mxu0 0.0
    %2503 = vmatpush1.msra.mxu0 0.0
    %2504 = vmatprep.subr.mxu0 0.0
    %2505 = vmatpush1.msra.mxu0 0.0
    %2506 = vmatprep.subr.mxu0 0.0
    %2507 = vmatpush1.msra.mxu0 0.0
    %2508 = vmatprep.subr.mxu0 0.0
    %2509 = vmatpush1.msra.mxu0 0.0
    %2510 = vmatprep.subr.mxu0 0.0
    %2511 = vmatpush1.msra.mxu0 0.0
    %2512 = vmatprep.subr.mxu0 0.0
    %2513 = vmatpush1.msra.mxu0 0.0
    %2514 = vmatprep.subr.mxu0 0.0
    %2515 = vmatpush1.msra.mxu0 0.0
    %2516 = vmatprep.subr.mxu0 0.0
    %2517 = vmatpush1.msra.mxu0 0.0
    %2518 = vmatprep.subr.mxu0 0.0
    %2519 = vmatpush1.msra.mxu0 0.0
    %2520 = vmatprep.subr.mxu0 0.0
    %2521 = vmatpush1.msra.mxu0 0.0
    %2522 = vmatprep.subr.mxu0 0.0
    %2523 = vmatpush1.msra.mxu0 0.0
    %2524 = vmatprep.subr.mxu0 0.0
    %2525 = vmatpush1.msra.mxu0 0.0
    %2526 = vmatprep.subr.mxu0 0.0
    %2527 = vmatpush1.msra.mxu0 0.0
    %2528 = vmatprep.subr.mxu0 0.0
    %2529 = vmatpush1.msra.mxu0 0.0
    %2530 = vmatprep.subr.mxu0 0.0
    %2531 = vmatpush1.msra.mxu0 0.0
    %2532 = vmatprep.subr.mxu0 0.0
    %2533 = vmatpush1.msra.mxu0 0.0
    %2534 = vmatprep.subr.mxu0 0.0
    %2535 = vmatpush1.msra.mxu0 0.0
    %2536 = vmatprep.mubr.f32.mxu0 0.0
    %2537 = vmatmul.mubr.f32.gmra.mrb[0].mxu0 %v2467
    %v2538 = vpop.f32.mrb[0].mxu0
    %v2539 = vadd.f32 %v2465, %v2538
    %v2540 = vpop.f32.mrb[0].mxu0
    %2541 = vmatprep.mubr.f32.mxu0 0.0
    %2542 = vmatmul.mubr.f32.gmra.mrb[0].mxu0 %v2470
    %v2543 = vpop.f32.mrb[0].mxu0
    %v2544 = vadd.f32 %v2465, %v2543
    %v2545 = vpop.f32.mrb[0].mxu0
    %2546 = vdwg.mxu0
    %v2547 = vadd.f32 %v1435, %v2539
    %v2548 = vadd.f32 %v1436, %v2544
    %v2549 = vsel %vm42, %v2547, 0.0
    %2550 = vadd.xlane.f32.xlu0 %v2549
    %v2551 = vpop.xlane.xlu0 %2550
    %v2552 = vsel %vm42, %v2548, 0.0
    %2553 = vadd.xlane.f32.xlu0 %v2552
    %v2554 = vpop.xlane.xlu0 %2553
    %v2555 = vmul.f32 %v2551, %v1169
    %v2556 = vmul.f32 %v2554, %v1169
    %v2557 = vsub.f32 %v2547, %v2555
    %v2558 = vsub.f32 %v2548, %v2556
    %v2559 = vmul.f32 %v2557, %v2557
    %v2560 = vmul.f32 %v2558, %v2558
    %v2561 = vsel %vm42, %v2559, 0.0
    %2562 = vadd.xlane.f32.xlu0 %v2561
    %v2563 = vpop.xlane.xlu0 %2562
    %v2564 = vsel %vm42, %v2560, 0.0
    %2565 = vadd.xlane.f32.xlu0 %v2564
    %v2566 = vpop.xlane.xlu0 %2565
    %v2567 = vmul.f32 %v2563, %v1169
    %v2568 = vmul.f32 %v2566, %v1169
    %v2569 = vadd.f32 %v2567, 1e-05
    %v2570 = vadd.f32 %v2568, 1e-05
    %v2571 = vrsqrt.pop %v2569
    %v2572 = vrsqrt.pop %v2570
    %v2573 = vmul.f32 %v2557, %v2571
    %v2574 = vmul.f32 %v2558, %v2572
    %v2575 = vld [vmem:[%s3 + $0xe] sm:$0x1]
    %v2576 = vlaneseq
    %v2577 = vshrl.u32 %v2576, 7
    %v2578 = vsub.s32 0, %v2577
    %v2579 = vrot.slane %v2575, %v2578
    %v2580 = vmul.f32 %v2573, %v2579
    %v2581 = vmul.f32 %v2574, %v2579
    %v2582 = vld [vmem:[%s3 + $0xf] sm:$0x1]
    %v2583 = vlaneseq
    %v2584 = vshrl.u32 %v2583, 7
    %v2585 = vsub.s32 0, %v2584
    %v2586 = vrot.slane %v2582, %v2585
    %v2587 = vadd.f32 %v2580, %v2586
    %v2588 = vadd.f32 %v2581, %v2586
    %v2589 = vld [vmem:[%s2 + $0x160] sm:$0xff]
    %v2590 = vld [vmem:[%s2 + $0x168] sm:$0xff]
    %v2591 = vld [vmem:[%s2 + $0x170] sm:$0xff]
    %v2592 = vld [vmem:[%s2 + $0x178] sm:$0xff]
    %v2593 = vld [vmem:[%s3 + $0x10] sm:$0x1]
    %v2594 = vlaneseq
    %v2595 = vshrl.u32 %v2594, 7
    %v2596 = vsub.s32 0, %v2595
    %v2597 = vrot.slane %v2593, %v2596
    %v2599 = vsel %vm42, %v2587, 0
    %v2602 = vsel %vm42, %v2588, 0
    %2604 = vmatprep.subr.mxu0 0.0
    %2605 = vmatpush1.msra.mxu0 %v2589
    %2606 = vmatprep.subr.mxu0 0.0
    %2607 = vmatpush1.msra.mxu0 %v2590
    %2608 = vmatprep.subr.mxu0 0.0
    %2609 = vmatpush1.msra.mxu0 %v2591
    %2610 = vmatprep.subr.mxu0 0.0
    %2611 = vmatpush1.msra.mxu0 %v2592
    %2612 = vmatprep.subr.mxu0 0.0
    %2613 = vmatpush1.msra.mxu0 0.0
    %2614 = vmatprep.subr.mxu0 0.0
    %2615 = vmatpush1.msra.mxu0 0.0
    %2616 = vmatprep.subr.mxu0 0.0
    %2617 = vmatpush1.msra.mxu0 0.0
    %2618 = vmatprep.subr.mxu0 0.0
    %2619 = vmatpush1.msra.mxu0 0.0
    %2620 = vmatprep.subr.mxu0 0.0
    %2621 = vmatpush1.msra.mxu0 0.0
    %2622 = vmatprep.subr.mxu0 0.0
    %2623 = vmatpush1.msra.mxu0 0.0
    %2624 = vmatprep.subr.mxu0 0.0
    %2625 = vmatpush1.msra.mxu0 0.0
    %2626 = vmatprep.subr.mxu0 0.0
    %2627 = vmatpush1.msra.mxu0 0.0
    %2628 = vmatprep.subr.mxu0 0.0
    %2629 = vmatpush1.msra.mxu0 0.0
    %2630 = vmatprep.subr.mxu0 0.0
    %2631 = vmatpush1.msra.mxu0 0.0
    %2632 = vmatprep.subr.mxu0 0.0
    %2633 = vmatpush1.msra.mxu0 0.0
    %2634 = vmatprep.subr.mxu0 0.0
    %2635 = vmatpush1.msra.mxu0 0.0
    %2636 = vmatprep.subr.mxu0 0.0
    %2637 = vmatpush1.msra.mxu0 0.0
    %2638 = vmatprep.subr.mxu0 0.0
    %2639 = vmatpush1.msra.mxu0 0.0
    %2640 = vmatprep.subr.mxu0 0.0
    %2641 = vmatpush1.msra.mxu0 0.0
    %2642 = vmatprep.subr.mxu0 0.0
    %2643 = vmatpush1.msra.mxu0 0.0
    %2644 = vmatprep.subr.mxu0 0.0
    %2645 = vmatpush1.msra.mxu0 0.0
    %2646 = vmatprep.subr.mxu0 0.0
    %2647 = vmatpush1.msra.mxu0 0.0
    %2648 = vmatprep.subr.mxu0 0.0
    %2649 = vmatpush1.msra.mxu0 0.0
    %2650 = vmatprep.subr.mxu0 0.0
    %2651 = vmatpush1.msra.mxu0 0.0
    %2652 = vmatprep.subr.mxu0 0.0
    %2653 = vmatpush1.msra.mxu0 0.0
    %2654 = vmatprep.subr.mxu0 0.0
    %2655 = vmatpush1.msra.mxu0 0.0
    %2656 = vmatprep.subr.mxu0 0.0
    %2657 = vmatpush1.msra.mxu0 0.0
    %2658 = vmatprep.subr.mxu0 0.0
    %2659 = vmatpush1.msra.mxu0 0.0
    %2660 = vmatprep.subr.mxu0 0.0
    %2661 = vmatpush1.msra.mxu0 0.0
    %2662 = vmatprep.subr.mxu0 0.0
    %2663 = vmatpush1.msra.mxu0 0.0
    %2664 = vmatprep.subr.mxu0 0.0
    %2665 = vmatpush1.msra.mxu0 0.0
    %2666 = vmatprep.subr.mxu0 0.0
    %2667 = vmatpush1.msra.mxu0 0.0
    %2668 = vmatprep.mubr.f32.mxu0 0.0
    %2669 = vmatmul.mubr.f32.gmra.mrb[0].mxu0 %v2599
    %v2670 = vpop.f32.mrb[0].mxu0
    %v2671 = vadd.f32 %v2597, %v2670
    %v2672 = vpop.f32.mrb[0].mxu0
    %2673 = vmatprep.mubr.f32.mxu0 0.0
    %2674 = vmatmul.mubr.f32.gmra.mrb[0].mxu0 %v2602
    %v2675 = vpop.f32.mrb[0].mxu0
    %v2676 = vadd.f32 %v2597, %v2675
    %v2677 = vpop.f32.mrb[0].mxu0
    %2678 = vdwg.mxu0
    %v2679 = vld [vmem:[%s2 + $0x180] sm:$0xff]
    %v2680 = vld [vmem:[%s2 + $0x188] sm:$0xff]
    %v2681 = vld [vmem:[%s2 + $0x190] sm:$0xff]
    %v2682 = vld [vmem:[%s2 + $0x198] sm:$0xff]
    %v2683 = vld [vmem:[%s3 + $0x11] sm:$0x1]
    %v2684 = vlaneseq
    %v2685 = vshrl.u32 %v2684, 7
    %v2686 = vsub.s32 0, %v2685
    %v2687 = vrot.slane %v2683, %v2686
    %v2689 = vsel %vm42, %v1433, 0
    %v2692 = vsel %vm42, %v1434, 0
    %2694 = vmatprep.subr.mxu0 0.0
    %2695 = vmatpush1.msra.mxu0 %v2679
    %2696 = vmatprep.subr.mxu0 0.0
    %2697 = vmatpush1.msra.mxu0 %v2680
    %2698 = vmatprep.subr.mxu0 0.0
    %2699 = vmatpush1.msra.mxu0 %v2681
    %2700 = vmatprep.subr.mxu0 0.0
    %2701 = vmatpush1.msra.mxu0 %v2682
    %2702 = vmatprep.subr.mxu0 0.0
    %2703 = vmatpush1.msra.mxu0 0.0
    %2704 = vmatprep.subr.mxu0 0.0
    %2705 = vmatpush1.msra.mxu0 0.0
    %2706 = vmatprep.subr.mxu0 0.0
    %2707 = vmatpush1.msra.mxu0 0.0
    %2708 = vmatprep.subr.mxu0 0.0
    %2709 = vmatpush1.msra.mxu0 0.0
    %2710 = vmatprep.subr.mxu0 0.0
    %2711 = vmatpush1.msra.mxu0 0.0
    %2712 = vmatprep.subr.mxu0 0.0
    %2713 = vmatpush1.msra.mxu0 0.0
    %2714 = vmatprep.subr.mxu0 0.0
    %2715 = vmatpush1.msra.mxu0 0.0
    %2716 = vmatprep.subr.mxu0 0.0
    %2717 = vmatpush1.msra.mxu0 0.0
    %2718 = vmatprep.subr.mxu0 0.0
    %2719 = vmatpush1.msra.mxu0 0.0
    %2720 = vmatprep.subr.mxu0 0.0
    %2721 = vmatpush1.msra.mxu0 0.0
    %2722 = vmatprep.subr.mxu0 0.0
    %2723 = vmatpush1.msra.mxu0 0.0
    %2724 = vmatprep.subr.mxu0 0.0
    %2725 = vmatpush1.msra.mxu0 0.0
    %2726 = vmatprep.subr.mxu0 0.0
    %2727 = vmatpush1.msra.mxu0 0.0
    %2728 = vmatprep.subr.mxu0 0.0
    %2729 = vmatpush1.msra.mxu0 0.0
    %2730 = vmatprep.subr.mxu0 0.0
    %2731 = vmatpush1.msra.mxu0 0.0
    %2732 = vmatprep.subr.mxu0 0.0
    %2733 = vmatpush1.msra.mxu0 0.0
    %2734 = vmatprep.subr.mxu0 0.0
    %2735 = vmatpush1.msra.mxu0 0.0
    %2736 = vmatprep.subr.mxu0 0.0
    %2737 = vmatpush1.msra.mxu0 0.0
    %2738 = vmatprep.subr.mxu0 0.0
    %2739 = vmatpush1.msra.mxu0 0.0
    %2740 = vmatprep.subr.mxu0 0.0
    %2741 = vmatpush1.msra.mxu0 0.0
    %2742 = vmatprep.subr.mxu0 0.0
    %2743 = vmatpush1.msra.mxu0 0.0
    %2744 = vmatprep.subr.mxu0 0.0
    %2745 = vmatpush1.msra.mxu0 0.0
    %2746 = vmatprep.subr.mxu0 0.0
    %2747 = vmatpush1.msra.mxu0 0.0
    %2748 = vmatprep.subr.mxu0 0.0
    %2749 = vmatpush1.msra.mxu0 0.0
    %2750 = vmatprep.subr.mxu0 0.0
    %2751 = vmatpush1.msra.mxu0 0.0
    %2752 = vmatprep.subr.mxu0 0.0
    %2753 = vmatpush1.msra.mxu0 0.0
    %2754 = vmatprep.subr.mxu0 0.0
    %2755 = vmatpush1.msra.mxu0 0.0
    %2756 = vmatprep.subr.mxu0 0.0
    %2757 = vmatpush1.msra.mxu0 0.0
    %2758 = vmatprep.mubr.f32.mxu0 0.0
    %2759 = vmatmul.mubr.f32.gmra.mrb[0].mxu0 %v2689
    %v2760 = vpop.f32.mrb[0].mxu0
    %v2761 = vadd.f32 %v2687, %v2760
    %v2762 = vpop.f32.mrb[0].mxu0
    %2763 = vmatprep.mubr.f32.mxu0 0.0
    %2764 = vmatmul.mubr.f32.gmra.mrb[0].mxu0 %v2692
    %v2765 = vpop.f32.mrb[0].mxu0
    %v2766 = vadd.f32 %v2687, %v2765
    %v2767 = vpop.f32.mrb[0].mxu0
    %2768 = vdwg.mxu0
    %v2769 = vld [vmem:[%s2 + $0x1a0] sm:$0xff]
    %v2770 = vld [vmem:[%s2 + $0x1a8] sm:$0xff]
    %v2771 = vld [vmem:[%s2 + $0x1b0] sm:$0xff]
    %v2772 = vld [vmem:[%s2 + $0x1b8] sm:$0xff]
    %v2773 = vld [vmem:[%s3 + $0x12] sm:$0x1]
    %v2774 = vlaneseq
    %v2775 = vshrl.u32 %v2774, 7
    %v2776 = vsub.s32 0, %v2775
    %v2777 = vrot.slane %v2773, %v2776
    %2778 = vmatprep.subr.mxu0 0.0
    %2779 = vmatpush1.msra.mxu0 %v2769
    %2780 = vmatprep.subr.mxu0 0.0
    %2781 = vmatpush1.msra.mxu0 %v2770
    %2782 = vmatprep.subr.mxu0 0.0
    %2783 = vmatpush1.msra.mxu0 %v2771
    %2784 = vmatprep.subr.mxu0 0.0
    %2785 = vmatpush1.msra.mxu0 %v2772
    %2786 = vmatprep.subr.mxu0 0.0
    %2787 = vmatpush1.msra.mxu0 0.0
    %2788 = vmatprep.subr.mxu0 0.0
    %2789 = vmatpush1.msra.mxu0 0.0
    %2790 = vmatprep.subr.mxu0 0.0
    %2791 = vmatpush1.msra.mxu0 0.0
    %2792 = vmatprep.subr.mxu0 0.0
    %2793 = vmatpush1.msra.mxu0 0.0
    %2794 = vmatprep.subr.mxu0 0.0
    %2795 = vmatpush1.msra.mxu0 0.0
    %2796 = vmatprep.subr.mxu0 0.0
    %2797 = vmatpush1.msra.mxu0 0.0
    %2798 = vmatprep.subr.mxu0 0.0
    %2799 = vmatpush1.msra.mxu0 0.0
    %2800 = vmatprep.subr.mxu0 0.0
    %2801 = vmatpush1.msra.mxu0 0.0
    %2802 = vmatprep.subr.mxu0 0.0
    %2803 = vmatpush1.msra.mxu0 0.0
    %2804 = vmatprep.subr.mxu0 0.0
    %2805 = vmatpush1.msra.mxu0 0.0
    %2806 = vmatprep.subr.mxu0 0.0
    %2807 = vmatpush1.msra.mxu0 0.0
    %2808 = vmatprep.subr.mxu0 0.0
    %2809 = vmatpush1.msra.mxu0 0.0
    %2810 = vmatprep.subr.mxu0 0.0
    %2811 = vmatpush1.msra.mxu0 0.0
    %2812 = vmatprep.subr.mxu0 0.0
    %2813 = vmatpush1.msra.mxu0 0.0
    %2814 = vmatprep.subr.mxu0 0.0
    %2815 = vmatpush1.msra.mxu0 0.0
    %2816 = vmatprep.subr.mxu0 0.0
    %2817 = vmatpush1.msra.mxu0 0.0
    %2818 = vmatprep.subr.mxu0 0.0
    %2819 = vmatpush1.msra.mxu0 0.0
    %2820 = vmatprep.subr.mxu0 0.0
    %2821 = vmatpush1.msra.mxu0 0.0
    %2822 = vmatprep.subr.mxu0 0.0
    %2823 = vmatpush1.msra.mxu0 0.0
    %2824 = vmatprep.subr.mxu0 0.0
    %2825 = vmatpush1.msra.mxu0 0.0
    %2826 = vmatprep.subr.mxu0 0.0
    %2827 = vmatpush1.msra.mxu0 0.0
    %2828 = vmatprep.subr.mxu0 0.0
    %2829 = vmatpush1.msra.mxu0 0.0
    %2830 = vmatprep.subr.mxu0 0.0
    %2831 = vmatpush1.msra.mxu0 0.0
    %2832 = vmatprep.subr.mxu0 0.0
    %2833 = vmatpush1.msra.mxu0 0.0
    %2834 = vmatprep.subr.mxu0 0.0
    %2835 = vmatpush1.msra.mxu0 0.0
    %2836 = vmatprep.subr.mxu0 0.0
    %2837 = vmatpush1.msra.mxu0 0.0
    %2838 = vmatprep.subr.mxu0 0.0
    %2839 = vmatpush1.msra.mxu0 0.0
    %2840 = vmatprep.subr.mxu0 0.0
    %2841 = vmatpush1.msra.mxu0 0.0
    %2842 = vmatprep.mubr.f32.mxu0 0.0
    %2843 = vmatmul.mubr.f32.gmra.mrb[0].mxu0 %v2689
    %v2844 = vpop.f32.mrb[0].mxu0
    %v2845 = vadd.f32 %v2777, %v2844
    %v2846 = vpop.f32.mrb[0].mxu0
    %2847 = vmatprep.mubr.f32.mxu0 0.0
    %2848 = vmatmul.mubr.f32.gmra.mrb[0].mxu0 %v2692
    %v2849 = vpop.f32.mrb[0].mxu0
    %v2850 = vadd.f32 %v2777, %v2849
    %v2851 = vpop.f32.mrb[0].mxu0
    %2852 = vdwg.mxu0
    %v2853 = vld [vmem:[%s2 + $0x1c0] sm:$0xff]
    %v2854 = vld [vmem:[%s2 + $0x1c8] sm:$0xff]
    %v2855 = vld [vmem:[%s2 + $0x1d0] sm:$0xff]
    %v2856 = vld [vmem:[%s2 + $0x1d8] sm:$0xff]
    %v2857 = vld [vmem:[%s3 + $0x13] sm:$0x1]
    %v2858 = vmul.f32 %v2761, %v300
    %v2859 = vmul.f32 %v2766, %v300
    %v2861 = vsel %vm42, %v2671, 0
    %v2864 = vsel %vm42, %v2676, 0
    %v2867 = vsel %vm42, %v2858, 0
    %v2870 = vsel %vm42, %v2859, 0
    %2872 = vmatprep.subr.mxu0 0.0
    %2873 = vmatpush1.xpose.msra.mxu0 %v2867
    %2874 = vmatprep.subr.mxu0 0.0
    %2875 = vmatpush1.xpose.msra.mxu0 %v2870
    %2876 = vmatprep.subr.mxu0 0.0
    %2877 = vmatpush1.xpose.msra.mxu0 0.0
    %2878 = vmatprep.subr.mxu0 0.0
    %2879 = vmatpush1.xpose.msra.mxu0 0.0
    %2880 = vmatprep.subr.mxu0 0.0
    %2881 = vmatpush1.xpose.msra.mxu0 0.0
    %2882 = vmatprep.subr.mxu0 0.0
    %2883 = vmatpush1.xpose.msra.mxu0 0.0
    %2884 = vmatprep.subr.mxu0 0.0
    %2885 = vmatpush1.xpose.msra.mxu0 0.0
    %2886 = vmatprep.subr.mxu0 0.0
    %2887 = vmatpush1.xpose.msra.mxu0 0.0
    %2888 = vmatprep.subr.mxu0 0.0
    %2889 = vmatpush1.xpose.msra.mxu0 0.0
    %2890 = vmatprep.subr.mxu0 0.0
    %2891 = vmatpush1.xpose.msra.mxu0 0.0
    %2892 = vmatprep.subr.mxu0 0.0
    %2893 = vmatpush1.xpose.msra.mxu0 0.0
    %2894 = vmatprep.subr.mxu0 0.0
    %2895 = vmatpush1.xpose.msra.mxu0 0.0
    %2896 = vmatprep.subr.mxu0 0.0
    %2897 = vmatpush1.xpose.msra.mxu0 0.0
    %2898 = vmatprep.subr.mxu0 0.0
    %2899 = vmatpush1.xpose.msra.mxu0 0.0
    %2900 = vmatprep.subr.mxu0 0.0
    %2901 = vmatpush1.xpose.msra.mxu0 0.0
    %2902 = vmatprep.subr.mxu0 0.0
    %2903 = vmatpush1.xpose.msra.mxu0 0.0
    %2904 = vmatprep.subr.mxu0 0.0
    %2905 = vmatpush1.xpose.msra.mxu0 0.0
    %2906 = vmatprep.subr.mxu0 0.0
    %2907 = vmatpush1.xpose.msra.mxu0 0.0
    %2908 = vmatprep.subr.mxu0 0.0
    %2909 = vmatpush1.xpose.msra.mxu0 0.0
    %2910 = vmatprep.subr.mxu0 0.0
    %2911 = vmatpush1.xpose.msra.mxu0 0.0
    %2912 = vmatprep.subr.mxu0 0.0
    %2913 = vmatpush1.xpose.msra.mxu0 0.0
    %2914 = vmatprep.subr.mxu0 0.0
    %2915 = vmatpush1.xpose.msra.mxu0 0.0
    %2916 = vmatprep.subr.mxu0 0.0
    %2917 = vmatpush1.xpose.msra.mxu0 0.0
    %2918 = vmatprep.subr.mxu0 0.0
    %2919 = vmatpush1.xpose.msra.mxu0 0.0
    %2920 = vmatprep.subr.mxu0 0.0
    %2921 = vmatpush1.xpose.msra.mxu0 0.0
    %2922 = vmatprep.subr.mxu0 0.0
    %2923 = vmatpush1.xpose.msra.mxu0 0.0
    %2924 = vmatprep.subr.mxu0 0.0
    %2925 = vmatpush1.xpose.msra.mxu0 0.0
    %2926 = vmatprep.subr.mxu0 0.0
    %2927 = vmatpush1.xpose.msra.mxu0 0.0
    %2928 = vmatprep.subr.mxu0 0.0
    %2929 = vmatpush1.xpose.msra.mxu0 0.0
    %2930 = vmatprep.subr.mxu0 0.0
    %2931 = vmatpush1.xpose.msra.mxu0 0.0
    %2932 = vmatprep.subr.mxu0 0.0
    %2933 = vmatpush1.xpose.msra.mxu0 0.0
    %2934 = vmatprep.subr.mxu0 0.0
    %2935 = vmatpush1.xpose.msra.mxu0 0.0
    %2936 = vmatprep.mubr.f32.mxu0 0.0
    %2937 = vmatmul.mubr.f32.gmra.mrb[0].mxu0 %v2861
    %v2938 = vpop.f32.mrb[0].mxu0
    %v2939 = vadd.f32 %v29, %v2938
    %v2940 = vpop.f32.mrb[0].mxu0
    %2941 = vmatprep.mubr.f32.mxu0 0.0
    %2942 = vmatmul.mubr.f32.gmra.mrb[0].mxu0 %v2864
    %v2943 = vpop.f32.mrb[0].mxu0
    %v2944 = vadd.f32 %v30, %v2943
    %v2945 = vpop.f32.mrb[0].mxu0
    %2946 = vdwg.mxu0
    %v2947 = vsel %vm390, %v2939, -inf
    %2948 = vmax.xlane.f32.xlu0 %v2947
    %v2949 = vpop.xlane.xlu0 %2948
    %v2950 = vsel %vm390, %v2944, -inf
    %2951 = vmax.xlane.f32.xlu0 %v2950
    %v2952 = vpop.xlane.xlu0 %2951
    %v2953 = vsub.f32 %v2939, %v2949
    %v2954 = vsub.f32 %v2944, %v2952
    %v2955 = vmul.f32 %v2953, 1.442695
    %v2956 = vpow.pop %v2955
    %v2957 = vmul.f32 %v2954, 1.442695
    %v2958 = vpow.pop %v2957
    %v2959 = vsel %vm390, %v2956, 0.0
    %2960 = vadd.xlane.f32.xlu0 %v2959
    %v2961 = vpop.xlane.xlu0 %2960
    %v2962 = vsel %vm390, %v2958, 0.0
    %2963 = vadd.xlane.f32.xlu0 %v2962
    %v2964 = vpop.xlane.xlu0 %2963
    %v2965 = vrcp.pop %v2961
    %v2966 = vrcp.pop %v2964
    %v2967 = vmul.f32 %v2956, %v2965
    %v2968 = vmul.f32 %v2958, %v2966
    %v2969 = vmul.f32 %v2845, %v300
    %v2970 = vmul.f32 %v2850, %v300
    %v2971 = vmul.f32 %v2761, %v418
    %v2972 = vmul.f32 %v2766, %v418
    %v2974 = vsel %vm42, %v2971, 0
    %v2977 = vsel %vm42, %v2972, 0
    %2979 = vmatprep.subr.mxu0 0.0
    %2980 = vmatpush1.xpose.msra.mxu0 %v2974
    %2981 = vmatprep.subr.mxu0 0.0
    %2982 = vmatpush1.xpose.msra.mxu0 %v2977
    %2983 = vmatprep.subr.mxu0 0.0
    %2984 = vmatpush1.xpose.msra.mxu0 0.0
    %2985 = vmatprep.subr.mxu0 0.0
    %2986 = vmatpush1.xpose.msra.mxu0 0.0
    %2987 = vmatprep.subr.mxu0 0.0
    %2988 = vmatpush1.xpose.msra.mxu0 0.0
    %2989 = vmatprep.subr.mxu0 0.0
    %2990 = vmatpush1.xpose.msra.mxu0 0.0
    %2991 = vmatprep.subr.mxu0 0.0
    %2992 = vmatpush1.xpose.msra.mxu0 0.0
    %2993 = vmatprep.subr.mxu0 0.0
    %2994 = vmatpush1.xpose.msra.mxu0 0.0
    %2995 = vmatprep.subr.mxu0 0.0
    %2996 = vmatpush1.xpose.msra.mxu0 0.0
    %2997 = vmatprep.subr.mxu0 0.0
    %2998 = vmatpush1.xpose.msra.mxu0 0.0
    %2999 = vmatprep.subr.mxu0 0.0
    %3000 = vmatpush1.xpose.msra.mxu0 0.0
    %3001 = vmatprep.subr.mxu0 0.0
    %3002 = vmatpush1.xpose.msra.mxu0 0.0
    %3003 = vmatprep.subr.mxu0 0.0
    %3004 = vmatpush1.xpose.msra.mxu0 0.0
    %3005 = vmatprep.subr.mxu0 0.0
    %3006 = vmatpush1.xpose.msra.mxu0 0.0
    %3007 = vmatprep.subr.mxu0 0.0
    %3008 = vmatpush1.xpose.msra.mxu0 0.0
    %3009 = vmatprep.subr.mxu0 0.0
    %3010 = vmatpush1.xpose.msra.mxu0 0.0
    %3011 = vmatprep.subr.mxu0 0.0
    %3012 = vmatpush1.xpose.msra.mxu0 0.0
    %3013 = vmatprep.subr.mxu0 0.0
    %3014 = vmatpush1.xpose.msra.mxu0 0.0
    %3015 = vmatprep.subr.mxu0 0.0
    %3016 = vmatpush1.xpose.msra.mxu0 0.0
    %3017 = vmatprep.subr.mxu0 0.0
    %3018 = vmatpush1.xpose.msra.mxu0 0.0
    %3019 = vmatprep.subr.mxu0 0.0
    %3020 = vmatpush1.xpose.msra.mxu0 0.0
    %3021 = vmatprep.subr.mxu0 0.0
    %3022 = vmatpush1.xpose.msra.mxu0 0.0
    %3023 = vmatprep.subr.mxu0 0.0
    %3024 = vmatpush1.xpose.msra.mxu0 0.0
    %3025 = vmatprep.subr.mxu0 0.0
    %3026 = vmatpush1.xpose.msra.mxu0 0.0
    %3027 = vmatprep.subr.mxu0 0.0
    %3028 = vmatpush1.xpose.msra.mxu0 0.0
    %3029 = vmatprep.subr.mxu0 0.0
    %3030 = vmatpush1.xpose.msra.mxu0 0.0
    %3031 = vmatprep.subr.mxu0 0.0
    %3032 = vmatpush1.xpose.msra.mxu0 0.0
    %3033 = vmatprep.subr.mxu0 0.0
    %3034 = vmatpush1.xpose.msra.mxu0 0.0
    %3035 = vmatprep.subr.mxu0 0.0
    %3036 = vmatpush1.xpose.msra.mxu0 0.0
    %3037 = vmatprep.subr.mxu0 0.0
    %3038 = vmatpush1.xpose.msra.mxu0 0.0
    %3039 = vmatprep.subr.mxu0 0.0
    %3040 = vmatpush1.xpose.msra.mxu0 0.0
    %3041 = vmatprep.subr.mxu0 0.0
    %3042 = vmatpush1.xpose.msra.mxu0 0.0
    %3043 = vmatprep.mubr.f32.mxu0 0.0
    %3044 = vmatmul.mubr.f32.gmra.mrb[0].mxu0 %v2861
    %v3045 = vpop.f32.mrb[0].mxu0
    %v3046 = vadd.f32 %v29, %v3045
    %v3047 = vpop.f32.mrb[0].mxu0
    %3048 = vmatprep.mubr.f32.mxu0 0.0
    %3049 = vmatmul.mubr.f32.gmra.mrb[0].mxu0 %v2864
    %v3050 = vpop.f32.mrb[0].mxu0
    %v3051 = vadd.f32 %v30, %v3050
    %v3052 = vpop.f32.mrb[0].mxu0
    %3053 = vdwg.mxu0
    %v3054 = vsel %vm390, %v3046, -inf
    %3055 = vmax.xlane.f32.xlu0 %v3054
    %v3056 = vpop.xlane.xlu0 %3055
    %v3057 = vsel %vm390, %v3051, -inf
    %3058 = vmax.xlane.f32.xlu0 %v3057
    %v3059 = vpop.xlane.xlu0 %3058
    %v3060 = vsub.f32 %v3046, %v3056
    %v3061 = vsub.f32 %v3051, %v3059
    %v3062 = vmul.f32 %v3060, 1.442695
    %v3063 = vpow.pop %v3062
    %v3064 = vmul.f32 %v3061, 1.442695
    %v3065 = vpow.pop %v3064
    %v3066 = vsel %vm390, %v3063, 0.0
    %3067 = vadd.xlane.f32.xlu0 %v3066
    %v3068 = vpop.xlane.xlu0 %3067
    %v3069 = vsel %vm390, %v3065, 0.0
    %3070 = vadd.xlane.f32.xlu0 %v3069
    %v3071 = vpop.xlane.xlu0 %3070
    %v3072 = vrcp.pop %v3068
    %v3073 = vrcp.pop %v3071
    %v3074 = vmul.f32 %v3063, %v3072
    %v3075 = vmul.f32 %v3065, %v3073
    %v3076 = vmul.f32 %v2845, %v418
    %v3077 = vmul.f32 %v2850, %v418
    %v3079 = vsel %vm390, %v3074, 0
    %v3082 = vsel %vm390, %v3075, 0
    %3084 = vmatprep.subr.mxu0 0.0
    %3085 = vmatpush1.msra.mxu0 %v3076
    %3086 = vmatprep.subr.mxu0 0.0
    %3087 = vmatpush1.msra.mxu0 %v3077
    %3088 = vmatprep.subr.mxu0 0.0
    %3089 = vmatpush1.msra.mxu0 0.0
    %3090 = vmatprep.subr.mxu0 0.0
    %3091 = vmatpush1.msra.mxu0 0.0
    %3092 = vmatprep.subr.mxu0 0.0
    %3093 = vmatpush1.msra.mxu0 0.0
    %3094 = vmatprep.subr.mxu0 0.0
    %3095 = vmatpush1.msra.mxu0 0.0
    %3096 = vmatprep.subr.mxu0 0.0
    %3097 = vmatpush1.msra.mxu0 0.0
    %3098 = vmatprep.subr.mxu0 0.0
    %3099 = vmatpush1.msra.mxu0 0.0
    %3100 = vmatprep.subr.mxu0 0.0
    %3101 = vmatpush1.msra.mxu0 0.0
    %3102 = vmatprep.subr.mxu0 0.0
    %3103 = vmatpush1.msra.mxu0 0.0
    %3104 = vmatprep.subr.mxu0 0.0
    %3105 = vmatpush1.msra.mxu0 0.0
    %3106 = vmatprep.subr.mxu0 0.0
    %3107 = vmatpush1.msra.mxu0 0.0
    %3108 = vmatprep.subr.mxu0 0.0
    %3109 = vmatpush1.msra.mxu0 0.0
    %3110 = vmatprep.subr.mxu0 0.0
    %3111 = vmatpush1.msra.mxu0 0.0
    %3112 = vmatprep.subr.mxu0 0.0
    %3113 = vmatpush1.msra.mxu0 0.0
    %3114 = vmatprep.subr.mxu0 0.0
    %3115 = vmatpush1.msra.mxu0 0.0
    %3116 = vmatprep.subr.mxu0 0.0
    %3117 = vmatpush1.msra.mxu0 0.0
    %3118 = vmatprep.subr.mxu0 0.0
    %3119 = vmatpush1.msra.mxu0 0.0
    %3120 = vmatprep.subr.mxu0 0.0
    %3121 = vmatpush1.msra.mxu0 0.0
    %3122 = vmatprep.subr.mxu0 0.0
    %3123 = vmatpush1.msra.mxu0 0.0
    %3124 = vmatprep.subr.mxu0 0.0
    %3125 = vmatpush1.msra.mxu0 0.0
    %3126 = vmatprep.subr.mxu0 0.0
    %3127 = vmatpush1.msra.mxu0 0.0
    %3128 = vmatprep.subr.mxu0 0.0
    %3129 = vmatpush1.msra.mxu0 0.0
    %3130 = vmatprep.subr.mxu0 0.0
    %3131 = vmatpush1.msra.mxu0 0.0
    %3132 = vmatprep.subr.mxu0 0.0
    %3133 = vmatpush1.msra.mxu0 0.0
    %3134 = vmatprep.subr.mxu0 0.0
    %3135 = vmatpush1.msra.mxu0 0.0
    %3136 = vmatprep.subr.mxu0 0.0
    %3137 = vmatpush1.msra.mxu0 0.0
    %3138 = vmatprep.subr.mxu0 0.0
    %3139 = vmatpush1.msra.mxu0 0.0
    %3140 = vmatprep.subr.mxu0 0.0
    %3141 = vmatpush1.msra.mxu0 0.0
    %3142 = vmatprep.subr.mxu0 0.0
    %3143 = vmatpush1.msra.mxu0 0.0
    %3144 = vmatprep.subr.mxu0 0.0
    %3145 = vmatpush1.msra.mxu0 0.0
    %3146 = vmatprep.subr.mxu0 0.0
    %3147 = vmatpush1.msra.mxu0 0.0
    %3148 = vmatprep.mubr.f32.mxu0 0.0
    %3149 = vmatmul.mubr.f32.gmra.mrb[0].mxu0 %v3079
    %v3150 = vpop.f32.mrb[0].mxu0
    %v3151 = vadd.f32 0.0, %v3150
    %v3152 = vpop.f32.mrb[0].mxu0
    %3153 = vmatprep.mubr.f32.mxu0 0.0
    %3154 = vmatmul.mubr.f32.gmra.mrb[0].mxu0 %v3082
    %v3155 = vpop.f32.mrb[0].mxu0
    %v3156 = vadd.f32 0.0, %v3155
    %v3157 = vpop.f32.mrb[0].mxu0
    %3158 = vdwg.mxu0
    %v3160 = vsel %vm390, %v2967, 0
    %v3163 = vsel %vm390, %v2968, 0
    %3165 = vmatprep.subr.mxu0 0.0
    %3166 = vmatpush1.msra.mxu0 %v2969
    %3167 = vmatprep.subr.mxu0 0.0
    %3168 = vmatpush1.msra.mxu0 %v2970
    %3169 = vmatprep.subr.mxu0 0.0
    %3170 = vmatpush1.msra.mxu0 0.0
    %3171 = vmatprep.subr.mxu0 0.0
    %3172 = vmatpush1.msra.mxu0 0.0
    %3173 = vmatprep.subr.mxu0 0.0
    %3174 = vmatpush1.msra.mxu0 0.0
    %3175 = vmatprep.subr.mxu0 0.0
    %3176 = vmatpush1.msra.mxu0 0.0
    %3177 = vmatprep.subr.mxu0 0.0
    %3178 = vmatpush1.msra.mxu0 0.0
    %3179 = vmatprep.subr.mxu0 0.0
    %3180 = vmatpush1.msra.mxu0 0.0
    %3181 = vmatprep.subr.mxu0 0.0
    %3182 = vmatpush1.msra.mxu0 0.0
    %3183 = vmatprep.subr.mxu0 0.0
    %3184 = vmatpush1.msra.mxu0 0.0
    %3185 = vmatprep.subr.mxu0 0.0
    %3186 = vmatpush1.msra.mxu0 0.0
    %3187 = vmatprep.subr.mxu0 0.0
    %3188 = vmatpush1.msra.mxu0 0.0
    %3189 = vmatprep.subr.mxu0 0.0
    %3190 = vmatpush1.msra.mxu0 0.0
    %3191 = vmatprep.subr.mxu0 0.0
    %3192 = vmatpush1.msra.mxu0 0.0
    %3193 = vmatprep.subr.mxu0 0.0
    %3194 = vmatpush1.msra.mxu0 0.0
    %3195 = vmatprep.subr.mxu0 0.0
    %3196 = vmatpush1.msra.mxu0 0.0
    %3197 = vmatprep.subr.mxu0 0.0
    %3198 = vmatpush1.msra.mxu0 0.0
    %3199 = vmatprep.subr.mxu0 0.0
    %3200 = vmatpush1.msra.mxu0 0.0
    %3201 = vmatprep.subr.mxu0 0.0
    %3202 = vmatpush1.msra.mxu0 0.0
    %3203 = vmatprep.subr.mxu0 0.0
    %3204 = vmatpush1.msra.mxu0 0.0
    %3205 = vmatprep.subr.mxu0 0.0
    %3206 = vmatpush1.msra.mxu0 0.0
    %3207 = vmatprep.subr.mxu0 0.0
    %3208 = vmatpush1.msra.mxu0 0.0
    %3209 = vmatprep.subr.mxu0 0.0
    %3210 = vmatpush1.msra.mxu0 0.0
    %3211 = vmatprep.subr.mxu0 0.0
    %3212 = vmatpush1.msra.mxu0 0.0
    %3213 = vmatprep.subr.mxu0 0.0
    %3214 = vmatpush1.msra.mxu0 0.0
    %3215 = vmatprep.subr.mxu0 0.0
    %3216 = vmatpush1.msra.mxu0 0.0
    %3217 = vmatprep.subr.mxu0 0.0
    %3218 = vmatpush1.msra.mxu0 0.0
    %3219 = vmatprep.subr.mxu0 0.0
    %3220 = vmatpush1.msra.mxu0 0.0
    %3221 = vmatprep.subr.mxu0 0.0
    %3222 = vmatpush1.msra.mxu0 0.0
    %3223 = vmatprep.subr.mxu0 0.0
    %3224 = vmatpush1.msra.mxu0 0.0
    %3225 = vmatprep.subr.mxu0 0.0
    %3226 = vmatpush1.msra.mxu0 0.0
    %3227 = vmatprep.subr.mxu0 0.0
    %3228 = vmatpush1.msra.mxu0 0.0
    %3229 = vmatprep.mubr.f32.mxu0 0.0
    %3230 = vmatmul.mubr.f32.gmra.mrb[0].mxu0 %v3160
    %v3231 = vpop.f32.mrb[0].mxu0
    %v3232 = vadd.f32 %v3151, %v3231
    %v3233 = vpop.f32.mrb[0].mxu0
    %3234 = vmatprep.mubr.f32.mxu0 0.0
    %3235 = vmatmul.mubr.f32.gmra.mrb[0].mxu0 %v3163
    %v3236 = vpop.f32.mrb[0].mxu0
    %v3237 = vadd.f32 %v3156, %v3236
    %v3238 = vpop.f32.mrb[0].mxu0
    %3239 = vdwg.mxu0
    %v3240 = vmul.f32 %v2761, %v691
    %v3241 = vmul.f32 %v2766, %v691
    %v3243 = vsel %vm42, %v3240, 0
    %v3246 = vsel %vm42, %v3241, 0
    %3248 = vmatprep.subr.mxu0 0.0
    %3249 = vmatpush1.xpose.msra.mxu0 %v3243
    %3250 = vmatprep.subr.mxu0 0.0
    %3251 = vmatpush1.xpose.msra.mxu0 %v3246
    %3252 = vmatprep.subr.mxu0 0.0
    %3253 = vmatpush1.xpose.msra.mxu0 0.0
    %3254 = vmatprep.subr.mxu0 0.0
    %3255 = vmatpush1.xpose.msra.mxu0 0.0
    %3256 = vmatprep.subr.mxu0 0.0
    %3257 = vmatpush1.xpose.msra.mxu0 0.0
    %3258 = vmatprep.subr.mxu0 0.0
    %3259 = vmatpush1.xpose.msra.mxu0 0.0
    %3260 = vmatprep.subr.mxu0 0.0
    %3261 = vmatpush1.xpose.msra.mxu0 0.0
    %3262 = vmatprep.subr.mxu0 0.0
    %3263 = vmatpush1.xpose.msra.mxu0 0.0
    %3264 = vmatprep.subr.mxu0 0.0
    %3265 = vmatpush1.xpose.msra.mxu0 0.0
    %3266 = vmatprep.subr.mxu0 0.0
    %3267 = vmatpush1.xpose.msra.mxu0 0.0
    %3268 = vmatprep.subr.mxu0 0.0
    %3269 = vmatpush1.xpose.msra.mxu0 0.0
    %3270 = vmatprep.subr.mxu0 0.0
    %3271 = vmatpush1.xpose.msra.mxu0 0.0
    %3272 = vmatprep.subr.mxu0 0.0
    %3273 = vmatpush1.xpose.msra.mxu0 0.0
    %3274 = vmatprep.subr.mxu0 0.0
    %3275 = vmatpush1.xpose.msra.mxu0 0.0
    %3276 = vmatprep.subr.mxu0 0.0
    %3277 = vmatpush1.xpose.msra.mxu0 0.0
    %3278 = vmatprep.subr.mxu0 0.0
    %3279 = vmatpush1.xpose.msra.mxu0 0.0
    %3280 = vmatprep.subr.mxu0 0.0
    %3281 = vmatpush1.xpose.msra.mxu0 0.0
    %3282 = vmatprep.subr.mxu0 0.0
    %3283 = vmatpush1.xpose.msra.mxu0 0.0
    %3284 = vmatprep.subr.mxu0 0.0
    %3285 = vmatpush1.xpose.msra.mxu0 0.0
    %3286 = vmatprep.subr.mxu0 0.0
    %3287 = vmatpush1.xpose.msra.mxu0 0.0
    %3288 = vmatprep.subr.mxu0 0.0
    %3289 = vmatpush1.xpose.msra.mxu0 0.0
    %3290 = vmatprep.subr.mxu0 0.0
    %3291 = vmatpush1.xpose.msra.mxu0 0.0
    %3292 = vmatprep.subr.mxu0 0.0
    %3293 = vmatpush1.xpose.msra.mxu0 0.0
    %3294 = vmatprep.subr.mxu0 0.0
    %3295 = vmatpush1.xpose.msra.mxu0 0.0
    %3296 = vmatprep.subr.mxu0 0.0
    %3297 = vmatpush1.xpose.msra.mxu0 0.0
    %3298 = vmatprep.subr.mxu0 0.0
    %3299 = vmatpush1.xpose.msra.mxu0 0.0
    %3300 = vmatprep.subr.mxu0 0.0
    %3301 = vmatpush1.xpose.msra.mxu0 0.0
    %3302 = vmatprep.subr.mxu0 0.0
    %3303 = vmatpush1.xpose.msra.mxu0 0.0
    %3304 = vmatprep.subr.mxu0 0.0
    %3305 = vmatpush1.xpose.msra.mxu0 0.0
    %3306 = vmatprep.subr.mxu0 0.0
    %3307 = vmatpush1.xpose.msra.mxu0 0.0
    %3308 = vmatprep.subr.mxu0 0.0
    %3309 = vmatpush1.xpose.msra.mxu0 0.0
    %3310 = vmatprep.subr.mxu0 0.0
    %3311 = vmatpush1.xpose.msra.mxu0 0.0
    %3312 = vmatprep.mubr.f32.mxu0 0.0
    %3313 = vmatmul.mubr.f32.gmra.mrb[0].mxu0 %v2861
    %v3314 = vpop.f32.mrb[0].mxu0
    %v3315 = vadd.f32 %v29, %v3314
    %v3316 = vpop.f32.mrb[0].mxu0
    %3317 = vmatprep.mubr.f32.mxu0 0.0
    %3318 = vmatmul.mubr.f32.gmra.mrb[0].mxu0 %v2864
    %v3319 = vpop.f32.mrb[0].mxu0
    %v3320 = vadd.f32 %v30, %v3319
    %v3321 = vpop.f32.mrb[0].mxu0
    %3322 = vdwg.mxu0
    %v3323 = vsel %vm390, %v3315, -inf
    %3324 = vmax.xlane.f32.xlu0 %v3323
    %v3325 = vpop.xlane.xlu0 %3324
    %v3326 = vsel %vm390, %v3320, -inf
    %3327 = vmax.xlane.f32.xlu0 %v3326
    %v3328 = vpop.xlane.xlu0 %3327
    %v3329 = vsub.f32 %v3315, %v3325
    %v3330 = vsub.f32 %v3320, %v3328
    %v3331 = vmul.f32 %v3329, 1.442695
    %v3332 = vpow.pop %v3331
    %v3333 = vmul.f32 %v3330, 1.442695
    %v3334 = vpow.pop %v3333
    %v3335 = vsel %vm390, %v3332, 0.0
    %3336 = vadd.xlane.f32.xlu0 %v3335
    %v3337 = vpop.xlane.xlu0 %3336
    %v3338 = vsel %vm390, %v3334, 0.0
    %3339 = vadd.xlane.f32.xlu0 %v3338
    %v3340 = vpop.xlane.xlu0 %3339
    %v3341 = vrcp.pop %v3337
    %v3342 = vrcp.pop %v3340
    %v3343 = vmul.f32 %v3332, %v3341
    %v3344 = vmul.f32 %v3334, %v3342
    %v3345 = vmul.f32 %v2845, %v691
    %v3346 = vmul.f32 %v2850, %v691
    %v3348 = vsel %vm390, %v3343, 0
    %v3351 = vsel %vm390, %v3344, 0
    %3353 = vmatprep.subr.mxu0 0.0
    %3354 = vmatpush1.msra.mxu0 %v3345
    %3355 = vmatprep.subr.mxu0 0.0
    %3356 = vmatpush1.msra.mxu0 %v3346
    %3357 = vmatprep.subr.mxu0 0.0
    %3358 = vmatpush1.msra.mxu0 0.0
    %3359 = vmatprep.subr.mxu0 0.0
    %3360 = vmatpush1.msra.mxu0 0.0
    %3361 = vmatprep.subr.mxu0 0.0
    %3362 = vmatpush1.msra.mxu0 0.0
    %3363 = vmatprep.subr.mxu0 0.0
    %3364 = vmatpush1.msra.mxu0 0.0
    %3365 = vmatprep.subr.mxu0 0.0
    %3366 = vmatpush1.msra.mxu0 0.0
    %3367 = vmatprep.subr.mxu0 0.0
    %3368 = vmatpush1.msra.mxu0 0.0
    %3369 = vmatprep.subr.mxu0 0.0
    %3370 = vmatpush1.msra.mxu0 0.0
    %3371 = vmatprep.subr.mxu0 0.0
    %3372 = vmatpush1.msra.mxu0 0.0
    %3373 = vmatprep.subr.mxu0 0.0
    %3374 = vmatpush1.msra.mxu0 0.0
    %3375 = vmatprep.subr.mxu0 0.0
    %3376 = vmatpush1.msra.mxu0 0.0
    %3377 = vmatprep.subr.mxu0 0.0
    %3378 = vmatpush1.msra.mxu0 0.0
    %3379 = vmatprep.subr.mxu0 0.0
    %3380 = vmatpush1.msra.mxu0 0.0
    %3381 = vmatprep.subr.mxu0 0.0
    %3382 = vmatpush1.msra.mxu0 0.0
    %3383 = vmatprep.subr.mxu0 0.0
    %3384 = vmatpush1.msra.mxu0 0.0
    %3385 = vmatprep.subr.mxu0 0.0
    %3386 = vmatpush1.msra.mxu0 0.0
    %3387 = vmatprep.subr.mxu0 0.0
    %3388 = vmatpush1.msra.mxu0 0.0
    %3389 = vmatprep.subr.mxu0 0.0
    %3390 = vmatpush1.msra.mxu0 0.0
    %3391 = vmatprep.subr.mxu0 0.0
    %3392 = vmatpush1.msra.mxu0 0.0
    %3393 = vmatprep.subr.mxu0 0.0
    %3394 = vmatpush1.msra.mxu0 0.0
    %3395 = vmatprep.subr.mxu0 0.0
    %3396 = vmatpush1.msra.mxu0 0.0
    %3397 = vmatprep.subr.mxu0 0.0
    %3398 = vmatpush1.msra.mxu0 0.0
    %3399 = vmatprep.subr.mxu0 0.0
    %3400 = vmatpush1.msra.mxu0 0.0
    %3401 = vmatprep.subr.mxu0 0.0
    %3402 = vmatpush1.msra.mxu0 0.0
    %3403 = vmatprep.subr.mxu0 0.0
    %3404 = vmatpush1.msra.mxu0 0.0
    %3405 = vmatprep.subr.mxu0 0.0
    %3406 = vmatpush1.msra.mxu0 0.0
    %3407 = vmatprep.subr.mxu0 0.0
    %3408 = vmatpush1.msra.mxu0 0.0
    %3409 = vmatprep.subr.mxu0 0.0
    %3410 = vmatpush1.msra.mxu0 0.0
    %3411 = vmatprep.subr.mxu0 0.0
    %3412 = vmatpush1.msra.mxu0 0.0
    %3413 = vmatprep.subr.mxu0 0.0
    %3414 = vmatpush1.msra.mxu0 0.0
    %3415 = vmatprep.subr.mxu0 0.0
    %3416 = vmatpush1.msra.mxu0 0.0
    %3417 = vmatprep.mubr.f32.mxu0 0.0
    %3418 = vmatmul.mubr.f32.gmra.mrb[0].mxu0 %v3348
    %v3419 = vpop.f32.mrb[0].mxu0
    %v3420 = vadd.f32 0.0, %v3419
    %v3421 = vpop.f32.mrb[0].mxu0
    %3422 = vmatprep.mubr.f32.mxu0 0.0
    %3423 = vmatmul.mubr.f32.gmra.mrb[0].mxu0 %v3351
    %v3424 = vpop.f32.mrb[0].mxu0
    %v3425 = vadd.f32 0.0, %v3424
    %v3426 = vpop.f32.mrb[0].mxu0
    %3427 = vdwg.mxu0
    %v3428 = vadd.f32 %v3232, %v3420
    %v3429 = vadd.f32 %v3237, %v3425
    %v3430 = vmul.f32 %v2761, %v885
    %v3431 = vmul.f32 %v2766, %v885
    %v3433 = vsel %vm42, %v3430, 0
    %v3436 = vsel %vm42, %v3431, 0
    %3438 = vmatprep.subr.mxu0 0.0
    %3439 = vmatpush1.xpose.msra.mxu0 %v3433
    %3440 = vmatprep.subr.mxu0 0.0
    %3441 = vmatpush1.xpose.msra.mxu0 %v3436
    %3442 = vmatprep.subr.mxu0 0.0
    %3443 = vmatpush1.xpose.msra.mxu0 0.0
    %3444 = vmatprep.subr.mxu0 0.0
    %3445 = vmatpush1.xpose.msra.mxu0 0.0
    %3446 = vmatprep.subr.mxu0 0.0
    %3447 = vmatpush1.xpose.msra.mxu0 0.0
    %3448 = vmatprep.subr.mxu0 0.0
    %3449 = vmatpush1.xpose.msra.mxu0 0.0
    %3450 = vmatprep.subr.mxu0 0.0
    %3451 = vmatpush1.xpose.msra.mxu0 0.0
    %3452 = vmatprep.subr.mxu0 0.0
    %3453 = vmatpush1.xpose.msra.mxu0 0.0
    %3454 = vmatprep.subr.mxu0 0.0
    %3455 = vmatpush1.xpose.msra.mxu0 0.0
    %3456 = vmatprep.subr.mxu0 0.0
    %3457 = vmatpush1.xpose.msra.mxu0 0.0
    %3458 = vmatprep.subr.mxu0 0.0
    %3459 = vmatpush1.xpose.msra.mxu0 0.0
    %3460 = vmatprep.subr.mxu0 0.0
    %3461 = vmatpush1.xpose.msra.mxu0 0.0
    %3462 = vmatprep.subr.mxu0 0.0
    %3463 = vmatpush1.xpose.msra.mxu0 0.0
    %3464 = vmatprep.subr.mxu0 0.0
    %3465 = vmatpush1.xpose.msra.mxu0 0.0
    %3466 = vmatprep.subr.mxu0 0.0
    %3467 = vmatpush1.xpose.msra.mxu0 0.0
    %3468 = vmatprep.subr.mxu0 0.0
    %3469 = vmatpush1.xpose.msra.mxu0 0.0
    %3470 = vmatprep.subr.mxu0 0.0
    %3471 = vmatpush1.xpose.msra.mxu0 0.0
    %3472 = vmatprep.subr.mxu0 0.0
    %3473 = vmatpush1.xpose.msra.mxu0 0.0
    %3474 = vmatprep.subr.mxu0 0.0
    %3475 = vmatpush1.xpose.msra.mxu0 0.0
    %3476 = vmatprep.subr.mxu0 0.0
    %3477 = vmatpush1.xpose.msra.mxu0 0.0
    %3478 = vmatprep.subr.mxu0 0.0
    %3479 = vmatpush1.xpose.msra.mxu0 0.0
    %3480 = vmatprep.subr.mxu0 0.0
    %3481 = vmatpush1.xpose.msra.mxu0 0.0
    %3482 = vmatprep.subr.mxu0 0.0
    %3483 = vmatpush1.xpose.msra.mxu0 0.0
    %3484 = vmatprep.subr.mxu0 0.0
    %3485 = vmatpush1.xpose.msra.mxu0 0.0
    %3486 = vmatprep.subr.mxu0 0.0
    %3487 = vmatpush1.xpose.msra.mxu0 0.0
    %3488 = vmatprep.subr.mxu0 0.0
    %3489 = vmatpush1.xpose.msra.mxu0 0.0
    %3490 = vmatprep.subr.mxu0 0.0
    %3491 = vmatpush1.xpose.msra.mxu0 0.0
    %3492 = vmatprep.subr.mxu0 0.0
    %3493 = vmatpush1.xpose.msra.mxu0 0.0
    %3494 = vmatprep.subr.mxu0 0.0
    %3495 = vmatpush1.xpose.msra.mxu0 0.0
    %3496 = vmatprep.subr.mxu0 0.0
    %3497 = vmatpush1.xpose.msra.mxu0 0.0
    %3498 = vmatprep.subr.mxu0 0.0
    %3499 = vmatpush1.xpose.msra.mxu0 0.0
    %3500 = vmatprep.subr.mxu0 0.0
    %3501 = vmatpush1.xpose.msra.mxu0 0.0
    %3502 = vmatprep.mubr.f32.mxu0 0.0
    %3503 = vmatmul.mubr.f32.gmra.mrb[0].mxu0 %v2861
    %v3504 = vpop.f32.mrb[0].mxu0
    %v3505 = vadd.f32 %v29, %v3504
    %v3506 = vpop.f32.mrb[0].mxu0
    %3507 = vmatprep.mubr.f32.mxu0 0.0
    %3508 = vmatmul.mubr.f32.gmra.mrb[0].mxu0 %v2864
    %v3509 = vpop.f32.mrb[0].mxu0
    %v3510 = vadd.f32 %v30, %v3509
    %v3511 = vpop.f32.mrb[0].mxu0
    %3512 = vdwg.mxu0
    %v3513 = vsel %vm390, %v3505, -inf
    %3514 = vmax.xlane.f32.xlu0 %v3513
    %v3515 = vpop.xlane.xlu0 %3514
    %v3516 = vsel %vm390, %v3510, -inf
    %3517 = vmax.xlane.f32.xlu0 %v3516
    %v3518 = vpop.xlane.xlu0 %3517
    %v3519 = vsub.f32 %v3505, %v3515
    %v3520 = vsub.f32 %v3510, %v3518
    %v3521 = vmul.f32 %v3519, 1.442695
    %v3522 = vpow.pop %v3521
    %v3523 = vmul.f32 %v3520, 1.442695
    %v3524 = vpow.pop %v3523
    %v3525 = vsel %vm390, %v3522, 0.0
    %3526 = vadd.xlane.f32.xlu0 %v3525
    %v3527 = vpop.xlane.xlu0 %3526
    %v3528 = vsel %vm390, %v3524, 0.0
    %3529 = vadd.xlane.f32.xlu0 %v3528
    %v3530 = vpop.xlane.xlu0 %3529
    %v3531 = vrcp.pop %v3527
    %v3532 = vrcp.pop %v3530
    %v3533 = vmul.f32 %v3522, %v3531
    %v3534 = vmul.f32 %v3524, %v3532
    %v3535 = vmul.f32 %v2845, %v885
    %v3536 = vmul.f32 %v2850, %v885
    %v3538 = vsel %vm390, %v3533, 0
    %v3541 = vsel %vm390, %v3534, 0
    %3543 = vmatprep.subr.mxu0 0.0
    %3544 = vmatpush1.msra.mxu0 %v3535
    %3545 = vmatprep.subr.mxu0 0.0
    %3546 = vmatpush1.msra.mxu0 %v3536
    %3547 = vmatprep.subr.mxu0 0.0
    %3548 = vmatpush1.msra.mxu0 0.0
    %3549 = vmatprep.subr.mxu0 0.0
    %3550 = vmatpush1.msra.mxu0 0.0
    %3551 = vmatprep.subr.mxu0 0.0
    %3552 = vmatpush1.msra.mxu0 0.0
    %3553 = vmatprep.subr.mxu0 0.0
    %3554 = vmatpush1.msra.mxu0 0.0
    %3555 = vmatprep.subr.mxu0 0.0
    %3556 = vmatpush1.msra.mxu0 0.0
    %3557 = vmatprep.subr.mxu0 0.0
    %3558 = vmatpush1.msra.mxu0 0.0
    %3559 = vmatprep.subr.mxu0 0.0
    %3560 = vmatpush1.msra.mxu0 0.0
    %3561 = vmatprep.subr.mxu0 0.0
    %3562 = vmatpush1.msra.mxu0 0.0
    %3563 = vmatprep.subr.mxu0 0.0
    %3564 = vmatpush1.msra.mxu0 0.0
    %3565 = vmatprep.subr.mxu0 0.0
    %3566 = vmatpush1.msra.mxu0 0.0
    %3567 = vmatprep.subr.mxu0 0.0
    %3568 = vmatpush1.msra.mxu0 0.0
    %3569 = vmatprep.subr.mxu0 0.0
    %3570 = vmatpush1.msra.mxu0 0.0
    %3571 = vmatprep.subr.mxu0 0.0
    %3572 = vmatpush1.msra.mxu0 0.0
    %3573 = vmatprep.subr.mxu0 0.0
    %3574 = vmatpush1.msra.mxu0 0.0
    %3575 = vmatprep.subr.mxu0 0.0
    %3576 = vmatpush1.msra.mxu0 0.0
    %3577 = vmatprep.subr.mxu0 0.0
    %3578 = vmatpush1.msra.mxu0 0.0
    %3579 = vmatprep.subr.mxu0 0.0
    %3580 = vmatpush1.msra.mxu0 0.0
    %3581 = vmatprep.subr.mxu0 0.0
    %3582 = vmatpush1.msra.mxu0 0.0
    %3583 = vmatprep.subr.mxu0 0.0
    %3584 = vmatpush1.msra.mxu0 0.0
    %3585 = vmatprep.subr.mxu0 0.0
    %3586 = vmatpush1.msra.mxu0 0.0
    %3587 = vmatprep.subr.mxu0 0.0
    %3588 = vmatpush1.msra.mxu0 0.0
    %3589 = vmatprep.subr.mxu0 0.0
    %3590 = vmatpush1.msra.mxu0 0.0
    %3591 = vmatprep.subr.mxu0 0.0
    %3592 = vmatpush1.msra.mxu0 0.0
    %3593 = vmatprep.subr.mxu0 0.0
    %3594 = vmatpush1.msra.mxu0 0.0
    %3595 = vmatprep.subr.mxu0 0.0
    %3596 = vmatpush1.msra.mxu0 0.0
    %3597 = vmatprep.subr.mxu0 0.0
    %3598 = vmatpush1.msra.mxu0 0.0
    %3599 = vmatprep.subr.mxu0 0.0
    %3600 = vmatpush1.msra.mxu0 0.0
    %3601 = vmatprep.subr.mxu0 0.0
    %3602 = vmatpush1.msra.mxu0 0.0
    %3603 = vmatprep.subr.mxu0 0.0
    %3604 = vmatpush1.msra.mxu0 0.0
    %3605 = vmatprep.subr.mxu0 0.0
    %3606 = vmatpush1.msra.mxu0 0.0
    %3607 = vmatprep.mubr.f32.mxu0 0.0
    %3608 = vmatmul.mubr.f32.gmra.mrb[0].mxu0 %v3538
    %v3609 = vpop.f32.mrb[0].mxu0
    %v3610 = vadd.f32 0.0, %v3609
    %v3611 = vpop.f32.mrb[0].mxu0
    %3612 = vmatprep.mubr.f32.mxu0 0.0
    %3613 = vmatmul.mubr.f32.gmra.mrb[0].mxu0 %v3541
    %v3614 = vpop.f32.mrb[0].mxu0
    %v3615 = vadd.f32 0.0, %v3614
    %v3616 = vpop.f32.mrb[0].mxu0
    %3617 = vdwg.mxu0
    %v3618 = vadd.f32 %v3428, %v3610
    %v3619 = vadd.f32 %v3429, %v3615
    %v3620 = vlaneseq
    %v3621 = vshrl.u32 %v3620, 7
    %v3622 = vsub.s32 0, %v3621
    %v3623 = vrot.slane %v2857, %v3622
    %v3625 = vsel %vm42, %v3618, 0
    %v3628 = vsel %vm42, %v3619, 0
    %3630 = vmatprep.subr.mxu0 0.0
    %3631 = vmatpush1.msra.mxu0 %v2853
    %3632 = vmatprep.subr.mxu0 0.0
    %3633 = vmatpush1.msra.mxu0 %v2854
    %3634 = vmatprep.subr.mxu0 0.0
    %3635 = vmatpush1.msra.mxu0 %v2855
    %3636 = vmatprep.subr.mxu0 0.0
    %3637 = vmatpush1.msra.mxu0 %v2856
    %3638 = vmatprep.subr.mxu0 0.0
    %3639 = vmatpush1.msra.mxu0 0.0
    %3640 = vmatprep.subr.mxu0 0.0
    %3641 = vmatpush1.msra.mxu0 0.0
    %3642 = vmatprep.subr.mxu0 0.0
    %3643 = vmatpush1.msra.mxu0 0.0
    %3644 = vmatprep.subr.mxu0 0.0
    %3645 = vmatpush1.msra.mxu0 0.0
    %3646 = vmatprep.subr.mxu0 0.0
    %3647 = vmatpush1.msra.mxu0 0.0
    %3648 = vmatprep.subr.mxu0 0.0
    %3649 = vmatpush1.msra.mxu0 0.0
    %3650 = vmatprep.subr.mxu0 0.0
    %3651 = vmatpush1.msra.mxu0 0.0
    %3652 = vmatprep.subr.mxu0 0.0
    %3653 = vmatpush1.msra.mxu0 0.0
    %3654 = vmatprep.subr.mxu0 0.0
    %3655 = vmatpush1.msra.mxu0 0.0
    %3656 = vmatprep.subr.mxu0 0.0
    %3657 = vmatpush1.msra.mxu0 0.0
    %3658 = vmatprep.subr.mxu0 0.0
    %3659 = vmatpush1.msra.mxu0 0.0
    %3660 = vmatprep.subr.mxu0 0.0
    %3661 = vmatpush1.msra.mxu0 0.0
    %3662 = vmatprep.subr.mxu0 0.0
    %3663 = vmatpush1.msra.mxu0 0.0
    %3664 = vmatprep.subr.mxu0 0.0
    %3665 = vmatpush1.msra.mxu0 0.0
    %3666 = vmatprep.subr.mxu0 0.0
    %3667 = vmatpush1.msra.mxu0 0.0
    %3668 = vmatprep.subr.mxu0 0.0
    %3669 = vmatpush1.msra.mxu0 0.0
    %3670 = vmatprep.subr.mxu0 0.0
    %3671 = vmatpush1.msra.mxu0 0.0
    %3672 = vmatprep.subr.mxu0 0.0
    %3673 = vmatpush1.msra.mxu0 0.0
    %3674 = vmatprep.subr.mxu0 0.0
    %3675 = vmatpush1.msra.mxu0 0.0
    %3676 = vmatprep.subr.mxu0 0.0
    %3677 = vmatpush1.msra.mxu0 0.0
    %3678 = vmatprep.subr.mxu0 0.0
    %3679 = vmatpush1.msra.mxu0 0.0
    %3680 = vmatprep.subr.mxu0 0.0
    %3681 = vmatpush1.msra.mxu0 0.0
    %3682 = vmatprep.subr.mxu0 0.0
    %3683 = vmatpush1.msra.mxu0 0.0
    %3684 = vmatprep.subr.mxu0 0.0
    %3685 = vmatpush1.msra.mxu0 0.0
    %3686 = vmatprep.subr.mxu0 0.0
    %3687 = vmatpush1.msra.mxu0 0.0
    %3688 = vmatprep.subr.mxu0 0.0
    %3689 = vmatpush1.msra.mxu0 0.0
    %3690 = vmatprep.subr.mxu0 0.0
    %3691 = vmatpush1.msra.mxu0 0.0
    %3692 = vmatprep.subr.mxu0 0.0
    %3693 = vmatpush1.msra.mxu0 0.0
    %3694 = vmatprep.mubr.f32.mxu0 0.0
    %3695 = vmatmul.mubr.f32.gmra.mrb[0].mxu0 %v3625
    %v3696 = vpop.f32.mrb[0].mxu0
    %v3697 = vadd.f32 %v3623, %v3696
    %v3698 = vpop.f32.mrb[0].mxu0
    %3699 = vmatprep.mubr.f32.mxu0 0.0
    %3700 = vmatmul.mubr.f32.gmra.mrb[0].mxu0 %v3628
    %v3701 = vpop.f32.mrb[0].mxu0
    %v3702 = vadd.f32 %v3623, %v3701
    %v3703 = vpop.f32.mrb[0].mxu0
    %3704 = vdwg.mxu0
    %v3705 = vadd.f32 %v2587, %v3697
    %v3706 = vadd.f32 %v2588, %v3702
    %v3707 = vsel %vm42, %v3705, 0.0
    %3708 = vadd.xlane.f32.xlu0 %v3707
    %v3709 = vpop.xlane.xlu0 %3708
    %v3710 = vsel %vm42, %v3706, 0.0
    %3711 = vadd.xlane.f32.xlu0 %v3710
    %v3712 = vpop.xlane.xlu0 %3711
    %v3713 = vmul.f32 %v3709, %v1169
    %v3714 = vmul.f32 %v3712, %v1169
    %v3715 = vsub.f32 %v3705, %v3713
    %v3716 = vsub.f32 %v3706, %v3714
    %v3717 = vmul.f32 %v3715, %v3715
    %v3718 = vmul.f32 %v3716, %v3716
    %v3719 = vsel %vm42, %v3717, 0.0
    %3720 = vadd.xlane.f32.xlu0 %v3719
    %v3721 = vpop.xlane.xlu0 %3720
    %v3722 = vsel %vm42, %v3718, 0.0
    %3723 = vadd.xlane.f32.xlu0 %v3722
    %v3724 = vpop.xlane.xlu0 %3723
    %v3725 = vmul.f32 %v3721, %v1169
    %v3726 = vmul.f32 %v3724, %v1169
    %v3727 = vadd.f32 %v3725, 1e-05
    %v3728 = vadd.f32 %v3726, 1e-05
    %v3729 = vrsqrt.pop %v3727
    %v3730 = vrsqrt.pop %v3728
    %v3731 = vmul.f32 %v3715, %v3729
    %v3732 = vmul.f32 %v3716, %v3730
    %v3733 = vld [vmem:[%s3 + $0x14] sm:$0x1]
    %v3734 = vlaneseq
    %v3735 = vshrl.u32 %v3734, 7
    %v3736 = vsub.s32 0, %v3735
    %v3737 = vrot.slane %v3733, %v3736
    %v3738 = vmul.f32 %v3731, %v3737
    %v3739 = vmul.f32 %v3732, %v3737
    %v3740 = vld [vmem:[%s3 + $0x15] sm:$0x1]
    %v3741 = vlaneseq
    %v3742 = vshrl.u32 %v3741, 7
    %v3743 = vsub.s32 0, %v3742
    %v3744 = vrot.slane %v3740, %v3743
    %v3745 = vadd.f32 %v3738, %v3744
    %v3746 = vadd.f32 %v3739, %v3744
    %v3747 = vld [vmem:[%s2 + $0x1e0] sm:$0xff]
    %v3748 = vld [vmem:[%s2 + $0x1e8] sm:$0xff]
    %v3749 = vld [vmem:[%s2 + $0x1f0] sm:$0xff]
    %v3750 = vld [vmem:[%s2 + $0x1f8] sm:$0xff]
    %v3751 = vld [vmem:[%s3 + $0x16] sm:$0x1]
    %v3752 = vlaneseq
    %v3753 = vshrl.u32 %v3752, 7
    %v3754 = vsub.s32 0, %v3753
    %v3755 = vrot.slane %v3751, %v3754
    %v3757 = vsel %vm42, %v3745, 0
    %v3760 = vsel %vm42, %v3746, 0
    %3762 = vmatprep.subr.mxu0 0.0
    %3763 = vmatpush1.msra.mxu0 %v3747
    %3764 = vmatprep.subr.mxu0 0.0
    %3765 = vmatpush1.msra.mxu0 %v3748
    %3766 = vmatprep.subr.mxu0 0.0
    %3767 = vmatpush1.msra.mxu0 %v3749
    %3768 = vmatprep.subr.mxu0 0.0
    %3769 = vmatpush1.msra.mxu0 %v3750
    %3770 = vmatprep.subr.mxu0 0.0
    %3771 = vmatpush1.msra.mxu0 0.0
    %3772 = vmatprep.subr.mxu0 0.0
    %3773 = vmatpush1.msra.mxu0 0.0
    %3774 = vmatprep.subr.mxu0 0.0
    %3775 = vmatpush1.msra.mxu0 0.0
    %3776 = vmatprep.subr.mxu0 0.0
    %3777 = vmatpush1.msra.mxu0 0.0
    %3778 = vmatprep.subr.mxu0 0.0
    %3779 = vmatpush1.msra.mxu0 0.0
    %3780 = vmatprep.subr.mxu0 0.0
    %3781 = vmatpush1.msra.mxu0 0.0
    %3782 = vmatprep.subr.mxu0 0.0
    %3783 = vmatpush1.msra.mxu0 0.0
    %3784 = vmatprep.subr.mxu0 0.0
    %3785 = vmatpush1.msra.mxu0 0.0
    %3786 = vmatprep.subr.mxu0 0.0
    %3787 = vmatpush1.msra.mxu0 0.0
    %3788 = vmatprep.subr.mxu0 0.0
    %3789 = vmatpush1.msra.mxu0 0.0
    %3790 = vmatprep.subr.mxu0 0.0
    %3791 = vmatpush1.msra.mxu0 0.0
    %3792 = vmatprep.subr.mxu0 0.0
    %3793 = vmatpush1.msra.mxu0 0.0
    %3794 = vmatprep.subr.mxu0 0.0
    %3795 = vmatpush1.msra.mxu0 0.0
    %3796 = vmatprep.subr.mxu0 0.0
    %3797 = vmatpush1.msra.mxu0 0.0
    %3798 = vmatprep.subr.mxu0 0.0
    %3799 = vmatpush1.msra.mxu0 0.0
    %3800 = vmatprep.subr.mxu0 0.0
    %3801 = vmatpush1.msra.mxu0 0.0
    %3802 = vmatprep.subr.mxu0 0.0
    %3803 = vmatpush1.msra.mxu0 0.0
    %3804 = vmatprep.subr.mxu0 0.0
    %3805 = vmatpush1.msra.mxu0 0.0
    %3806 = vmatprep.subr.mxu0 0.0
    %3807 = vmatpush1.msra.mxu0 0.0
    %3808 = vmatprep.subr.mxu0 0.0
    %3809 = vmatpush1.msra.mxu0 0.0
    %3810 = vmatprep.subr.mxu0 0.0
    %3811 = vmatpush1.msra.mxu0 0.0
    %3812 = vmatprep.subr.mxu0 0.0
    %3813 = vmatpush1.msra.mxu0 0.0
    %3814 = vmatprep.subr.mxu0 0.0
    %3815 = vmatpush1.msra.mxu0 0.0
    %3816 = vmatprep.subr.mxu0 0.0
    %3817 = vmatpush1.msra.mxu0 0.0
    %3818 = vmatprep.subr.mxu0 0.0
    %3819 = vmatpush1.msra.mxu0 0.0
    %3820 = vmatprep.subr.mxu0 0.0
    %3821 = vmatpush1.msra.mxu0 0.0
    %3822 = vmatprep.subr.mxu0 0.0
    %3823 = vmatpush1.msra.mxu0 0.0
    %3824 = vmatprep.subr.mxu0 0.0
    %3825 = vmatpush1.msra.mxu0 0.0
    %3826 = vmatprep.mubr.f32.mxu0 0.0
    %3827 = vmatmul.mubr.f32.gmra.mrb[0].mxu0 %v3757
    %v3828 = vpop.f32.mrb[0].mxu0
    %v3829 = vadd.f32 %v3755, %v3828
    %v3830 = vpop.f32.mrb[0].mxu0
    %3831 = vmatprep.mubr.f32.mxu0 0.0
    %3832 = vmatmul.mubr.f32.gmra.mrb[0].mxu0 %v3760
    %v3833 = vpop.f32.mrb[0].mxu0
    %v3834 = vadd.f32 %v3755, %v3833
    %v3835 = vpop.f32.mrb[0].mxu0
    %3836 = vdwg.mxu0
    %v3837 = vmax.f32 %v3829, 0.0
    %v3838 = vmax.f32 %v3834, 0.0
    %v3839 = vld [vmem:[%s2 + $0x200] sm:$0xff]
    %v3840 = vld [vmem:[%s2 + $0x208] sm:$0xff]
    %v3841 = vld [vmem:[%s2 + $0x210] sm:$0xff]
    %v3842 = vld [vmem:[%s2 + $0x218] sm:$0xff]
    %v3843 = vld [vmem:[%s2 + $0x220] sm:$0xff]
    %v3844 = vld [vmem:[%s2 + $0x228] sm:$0xff]
    %v3845 = vld [vmem:[%s2 + $0x230] sm:$0xff]
    %v3846 = vld [vmem:[%s2 + $0x238] sm:$0xff]
    %v3848 = vsel %vm1304, %v3837, 0
    %v3851 = vsel %vm1304, %v3838, 0
    %3853 = vmatprep.subr.mxu0 0.0
    %3854 = vmatpush1.msra.mxu0 %v3839
    %3855 = vmatprep.subr.mxu0 0.0
    %3856 = vmatpush1.msra.mxu0 %v3840
    %3857 = vmatprep.subr.mxu0 0.0
    %3858 = vmatpush1.msra.mxu0 %v3841
    %3859 = vmatprep.subr.mxu0 0.0
    %3860 = vmatpush1.msra.mxu0 %v3842
    %3861 = vmatprep.subr.mxu0 0.0
    %3862 = vmatpush1.msra.mxu0 %v3843
    %3863 = vmatprep.subr.mxu0 0.0
    %3864 = vmatpush1.msra.mxu0 %v3844
    %3865 = vmatprep.subr.mxu0 0.0
    %3866 = vmatpush1.msra.mxu0 %v3845
    %3867 = vmatprep.subr.mxu0 0.0
    %3868 = vmatpush1.msra.mxu0 %v3846
    %3869 = vmatprep.subr.mxu0 0.0
    %3870 = vmatpush1.msra.mxu0 0.0
    %3871 = vmatprep.subr.mxu0 0.0
    %3872 = vmatpush1.msra.mxu0 0.0
    %3873 = vmatprep.subr.mxu0 0.0
    %3874 = vmatpush1.msra.mxu0 0.0
    %3875 = vmatprep.subr.mxu0 0.0
    %3876 = vmatpush1.msra.mxu0 0.0
    %3877 = vmatprep.subr.mxu0 0.0
    %3878 = vmatpush1.msra.mxu0 0.0
    %3879 = vmatprep.subr.mxu0 0.0
    %3880 = vmatpush1.msra.mxu0 0.0
    %3881 = vmatprep.subr.mxu0 0.0
    %3882 = vmatpush1.msra.mxu0 0.0
    %3883 = vmatprep.subr.mxu0 0.0
    %3884 = vmatpush1.msra.mxu0 0.0
    %3885 = vmatprep.subr.mxu0 0.0
    %3886 = vmatpush1.msra.mxu0 0.0
    %3887 = vmatprep.subr.mxu0 0.0
    %3888 = vmatpush1.msra.mxu0 0.0
    %3889 = vmatprep.subr.mxu0 0.0
    %3890 = vmatpush1.msra.mxu0 0.0
    %3891 = vmatprep.subr.mxu0 0.0
    %3892 = vmatpush1.msra.mxu0 0.0
    %3893 = vmatprep.subr.mxu0 0.0
    %3894 = vmatpush1.msra.mxu0 0.0
    %3895 = vmatprep.subr.mxu0 0.0
    %3896 = vmatpush1.msra.mxu0 0.0
    %3897 = vmatprep.subr.mxu0 0.0
    %3898 = vmatpush1.msra.mxu0 0.0
    %3899 = vmatprep.subr.mxu0 0.0
    %3900 = vmatpush1.msra.mxu0 0.0
    %3901 = vmatprep.subr.mxu0 0.0
    %3902 = vmatpush1.msra.mxu0 0.0
    %3903 = vmatprep.subr.mxu0 0.0
    %3904 = vmatpush1.msra.mxu0 0.0
    %3905 = vmatprep.subr.mxu0 0.0
    %3906 = vmatpush1.msra.mxu0 0.0
    %3907 = vmatprep.subr.mxu0 0.0
    %3908 = vmatpush1.msra.mxu0 0.0
    %3909 = vmatprep.subr.mxu0 0.0
    %3910 = vmatpush1.msra.mxu0 0.0
    %3911 = vmatprep.subr.mxu0 0.0
    %3912 = vmatpush1.msra.mxu0 0.0
    %3913 = vmatprep.subr.mxu0 0.0
    %3914 = vmatpush1.msra.mxu0 0.0
    %3915 = vmatprep.subr.mxu0 0.0
    %3916 = vmatpush1.msra.mxu0 0.0
    %3917 = vmatprep.mubr.f32.mxu0 0.0
    %3918 = vmatmul.mubr.f32.gmra.mrb[0].mxu0 %v3848
    %v3919 = vpop.f32.mrb[0].mxu0
    %v3920 = vadd.f32 0.0, %v3919
    %v3921 = vpop.f32.mrb[0].mxu0
    %3922 = vmatprep.mubr.f32.mxu0 0.0
    %3923 = vmatmul.mubr.f32.gmra.mrb[0].mxu0 %v3851
    %v3924 = vpop.f32.mrb[0].mxu0
    %v3925 = vadd.f32 0.0, %v3924
    %v3926 = vpop.f32.mrb[0].mxu0
    %3927 = vdwg.mxu0
    %v3928 = vadd.f32 %v3745, %v3920
    %v3929 = vadd.f32 %v3746, %v3925
    %v3930 = vld [vmem:[%s3 + $0x17] sm:$0x1]
    %v3931 = vlaneseq
    %v3932 = vshrl.u32 %v3931, 7
    %v3933 = vsub.s32 0, %v3932
    %v3934 = vrot.slane %v3930, %v3933
    %v3935 = vadd.f32 %v3928, %v3934
    %v3936 = vadd.f32 %v3929, %v3934
    %v3937 = vsel %vm42, %v3935, 0.0
    %3938 = vadd.xlane.f32.xlu0 %v3937
    %v3939 = vpop.xlane.xlu0 %3938
    %v3940 = vsel %vm42, %v3936, 0.0
    %3941 = vadd.xlane.f32.xlu0 %v3940
    %v3942 = vpop.xlane.xlu0 %3941
    %v3943 = vmul.f32 %v3939, %v1169
    %v3944 = vmul.f32 %v3942, %v1169
    %v3945 = vsub.f32 %v3935, %v3943
    %v3946 = vsub.f32 %v3936, %v3944
    %v3947 = vmul.f32 %v3945, %v3945
    %v3948 = vmul.f32 %v3946, %v3946
    %v3949 = vsel %vm42, %v3947, 0.0
    %3950 = vadd.xlane.f32.xlu0 %v3949
    %v3951 = vpop.xlane.xlu0 %3950
    %v3952 = vsel %vm42, %v3948, 0.0
    %3953 = vadd.xlane.f32.xlu0 %v3952
    %v3954 = vpop.xlane.xlu0 %3953
    %v3955 = vmul.f32 %v3951, %v1169
    %v3956 = vmul.f32 %v3954, %v1169
    %v3957 = vadd.f32 %v3955, 1e-05
    %v3958 = vadd.f32 %v3956, 1e-05
    %v3959 = vrsqrt.pop %v3957
    %v3960 = vrsqrt.pop %v3958
    %v3961 = vmul.f32 %v3945, %v3959
    %v3962 = vmul.f32 %v3946, %v3960
    %v3963 = vld [vmem:[%s3 + $0x18] sm:$0x1]
    %v3964 = vlaneseq
    %v3965 = vshrl.u32 %v3964, 7
    %v3966 = vsub.s32 0, %v3965
    %v3967 = vrot.slane %v3963, %v3966
    %v3968 = vmul.f32 %v3961, %v3967
    %v3969 = vmul.f32 %v3962, %v3967
    %v3970 = vld [vmem:[%s3 + $0x19] sm:$0x1]
    %v3971 = vlaneseq
    %v3972 = vshrl.u32 %v3971, 7
    %v3973 = vsub.s32 0, %v3972
    %v3974 = vrot.slane %v3970, %v3973
    %v3975 = vadd.f32 %v3968, %v3974
    %v3976 = vadd.f32 %v3969, %v3974
    %v3977 = vld [vmem:[%s2 + $0x240] sm:$0xff]
    %v3978 = vld [vmem:[%s2 + $0x248] sm:$0xff]
    %v3979 = vld [vmem:[%s2 + $0x250] sm:$0xff]
    %v3980 = vld [vmem:[%s2 + $0x258] sm:$0xff]
    %v3981 = vld [vmem:[%s3 + $0x1a] sm:$0x1]
    %v3982 = vlaneseq
    %v3983 = vshrl.u32 %v3982, 7
    %v3984 = vsub.s32 0, %v3983
    %v3985 = vrot.slane %v3981, %v3984
    %v3987 = vsel %vm42, %v3975, 0
    %v3990 = vsel %vm42, %v3976, 0
    %3992 = vmatprep.subr.mxu0 0.0
    %3993 = vmatpush1.msra.mxu0 %v3977
    %3994 = vmatprep.subr.mxu0 0.0
    %3995 = vmatpush1.msra.mxu0 %v3978
    %3996 = vmatprep.subr.mxu0 0.0
    %3997 = vmatpush1.msra.mxu0 %v3979
    %3998 = vmatprep.subr.mxu0 0.0
    %3999 = vmatpush1.msra.mxu0 %v3980
    %4000 = vmatprep.subr.mxu0 0.0
    %4001 = vmatpush1.msra.mxu0 0.0
    %4002 = vmatprep.subr.mxu0 0.0
    %4003 = vmatpush1.msra.mxu0 0.0
    %4004 = vmatprep.subr.mxu0 0.0
    %4005 = vmatpush1.msra.mxu0 0.0
    %4006 = vmatprep.subr.mxu0 0.0
    %4007 = vmatpush1.msra.mxu0 0.0
    %4008 = vmatprep.subr.mxu0 0.0
    %4009 = vmatpush1.msra.mxu0 0.0
    %4010 = vmatprep.subr.mxu0 0.0
    %4011 = vmatpush1.msra.mxu0 0.0
    %4012 = vmatprep.subr.mxu0 0.0
    %4013 = vmatpush1.msra.mxu0 0.0
    %4014 = vmatprep.subr.mxu0 0.0
    %4015 = vmatpush1.msra.mxu0 0.0
    %4016 = vmatprep.subr.mxu0 0.0
    %4017 = vmatpush1.msra.mxu0 0.0
    %4018 = vmatprep.subr.mxu0 0.0
    %4019 = vmatpush1.msra.mxu0 0.0
    %4020 = vmatprep.subr.mxu0 0.0
    %4021 = vmatpush1.msra.mxu0 0.0
    %4022 = vmatprep.subr.mxu0 0.0
    %4023 = vmatpush1.msra.mxu0 0.0
    %4024 = vmatprep.subr.mxu0 0.0
    %4025 = vmatpush1.msra.mxu0 0.0
    %4026 = vmatprep.subr.mxu0 0.0
    %4027 = vmatpush1.msra.mxu0 0.0
    %4028 = vmatprep.subr.mxu0 0.0
    %4029 = vmatpush1.msra.mxu0 0.0
    %4030 = vmatprep.subr.mxu0 0.0
    %4031 = vmatpush1.msra.mxu0 0.0
    %4032 = vmatprep.subr.mxu0 0.0
    %4033 = vmatpush1.msra.mxu0 0.0
    %4034 = vmatprep.subr.mxu0 0.0
    %4035 = vmatpush1.msra.mxu0 0.0
    %4036 = vmatprep.subr.mxu0 0.0
    %4037 = vmatpush1.msra.mxu0 0.0
    %4038 = vmatprep.subr.mxu0 0.0
    %4039 = vmatpush1.msra.mxu0 0.0
    %4040 = vmatprep.subr.mxu0 0.0
    %4041 = vmatpush1.msra.mxu0 0.0
    %4042 = vmatprep.subr.mxu0 0.0
    %4043 = vmatpush1.msra.mxu0 0.0
    %4044 = vmatprep.subr.mxu0 0.0
    %4045 = vmatpush1.msra.mxu0 0.0
    %4046 = vmatprep.subr.mxu0 0.0
    %4047 = vmatpush1.msra.mxu0 0.0
    %4048 = vmatprep.subr.mxu0 0.0
    %4049 = vmatpush1.msra.mxu0 0.0
    %4050 = vmatprep.subr.mxu0 0.0
    %4051 = vmatpush1.msra.mxu0 0.0
    %4052 = vmatprep.subr.mxu0 0.0
    %4053 = vmatpush1.msra.mxu0 0.0
    %4054 = vmatprep.subr.mxu0 0.0
    %4055 = vmatpush1.msra.mxu0 0.0
    %4056 = vmatprep.mubr.f32.mxu0 0.0
    %4057 = vmatmul.mubr.f32.gmra.mrb[0].mxu0 %v3987
    %v4058 = vpop.f32.mrb[0].mxu0
    %v4059 = vadd.f32 %v3985, %v4058
    %v4060 = vpop.f32.mrb[0].mxu0
    %4061 = vmatprep.mubr.f32.mxu0 0.0
    %4062 = vmatmul.mubr.f32.gmra.mrb[0].mxu0 %v3990
    %v4063 = vpop.f32.mrb[0].mxu0
    %v4064 = vadd.f32 %v3985, %v4063
    %v4065 = vpop.f32.mrb[0].mxu0
    %4066 = vdwg.mxu0
    %4067 = vst.msk [vmem:[#allocation2] sm:$0xff] %vm42, %v4059
    %4068 = vst.msk [vmem:[#allocation2 + $0x8] sm:$0xff] %vm42, %v4064
    // Predicated region
    $region22: #{model_forward.1} parent=1 // pred_check
      _
    $region23: #{model_forward.1} parent=1 // pred_check_branch
      %4070 = sbr.rel (0) target = $region25
    $region24: #{model_forward.1} parent=1 // pred_region
      %s4072 = ssub.s32 256, 256
      %4073 = vsyncadd [#allocation3], %s4072
      %s4074 = sshll.u32 [#allocation2], 4
      %s4075 = int_to_ptr.vmem [resolvable:$true] %s4074
      %4080 = dma.vmem_to_hbm [thread:$0]  %s4075, 256, %s5, [#allocation3], 128, 128, 8
    $region25: #{model_forward.1} parent=1 // pred_fallthru
      _
    // Predicated region
    $region26: #{model_forward.1} parent=1 // pred_check
      _
    $region27: #{model_forward.1} parent=1 // pred_check_branch
      %4082 = sbr.rel (0) target = $region29
    $region28: #{model_forward.1} parent=1 // pred_region
      %4083 = dma.done [#allocation3], 256
    $region29: #{model_forward.1} parent=1 // pred_fallthru
      _
    %4084 = vsyncpa [#allocation3], 1

</llo_original>
